<compile_context>
chip_gen: v5e
topology: v5e:2x2
jax: 0.10.0
libtpu: 0.0.40
codegen_flags: <defaults>
</compile_context>

<pallas_src>
import jax
import jax.numpy as jnp
from jax.experimental import pallas as pl
from jax.experimental.pallas import tpu as pltpu

BN_EPS = 1e-5

_PARAMS = pltpu.CompilerParams(
    dimension_semantics=("parallel",),
    # Explicit: v5e's default scoped limit is 16 MiB; 32 MiB is safe on all gens
    # (v7x has only 64 MiB physical VMEM per TensorCore, so do not raise further).
    vmem_limit_bytes=32 * 1024 * 1024,
)


def _round_up(x, m):
    return (x + m - 1) // m * m


def _const_spec(shape):
    """BlockSpec for an operand that stays VMEM-resident across all grid steps."""
    return pl.BlockSpec(shape, lambda i: (0,) * len(shape))


# ----------------------------------------------------------------------------
# K1: conv1 (3x3, 3->128) + ReLU + BN1 + 2x2 maxpool  (pool fused via pool-phase-
# major patches; only conv outputs surviving the floor pool are ever computed).
# ----------------------------------------------------------------------------
def _conv_relu_bn_pool_kernel(x_ref, w_ref, ss_ref, o_ref):
    """x: (4, TM, K) pool-phase-major patches; w: (K, C); ss: (2, C) = [scale; shift].

    o[m, :] = max_phase  bn(relu(x[phase, m, :] @ w))   (Conv -> ReLU -> BN -> pool)
    """
    scale = ss_ref[0:1, :]
    shift = ss_ref[1:2, :]

    def phase(p):
        y = jnp.dot(x_ref[p], w_ref[...], preferred_element_type=jnp.float32)
        return jnp.maximum(y, 0.0) * scale + shift        # BN before pool (gamma<0 safe)

    r = phase(0)
    for p in range(1, 4):
        r = jnp.maximum(r, phase(p))
    o_ref[...] = r.astype(o_ref.dtype)


def conv_relu_bn_pool(patches, w, ss, *, max_tile_m=2048):
    """patches: (4, M, K) phase-major f32; w: (K, C) bf16; ss: (2, C) f32.
    Returns (M, C) bf16 pooled activation.  M axis tiled + 'parallel'."""
    _, m, k = patches.shape
    c = w.shape[1]
    # Big tiles (K=27 blocks are tiny: ~4 MiB double-buffered even at tm=2048) but
    # guarantee >=2 grid steps when M allows so both v7x TensorCores are used.
    if m > 8:
        tm = min(max_tile_m, _round_up(pl.cdiv(m, 2), 8))
    else:
        tm = _round_up(m, 8)
    m_pad = _round_up(m, tm)
    if m_pad != m:
        patches = jnp.pad(patches, ((0, 0), (0, m_pad - m), (0, 0)))
    out = pl.pallas_call(
        _conv_relu_bn_pool_kernel,
        out_shape=jax.ShapeDtypeStruct((m_pad, c), jnp.bfloat16),
        grid=(m_pad // tm,),
        in_specs=[
            pl.BlockSpec((4, tm, k), lambda i: (0, i, 0)),
            _const_spec((k, c)),        # weights stay VMEM-resident
            _const_spec((2, c)),        # scale/shift travel as one operand
        ],
        out_specs=pl.BlockSpec((tm, c), lambda i: (i, 0)),
        compiler_params=_PARAMS,
    )(patches.astype(jnp.bfloat16), w, ss)
    return out[:m]


# ----------------------------------------------------------------------------
# K2: conv2 (3x3 dilation=2, 128->256) + ReLU + BN2 + 2x2 maxpool, with the whole
# tail (convblock3 folded into pointwise, pointwise+ReLU+BN, gap, convblock4
# (+ReLU+BN), convblock5) fused into the epilogue.  im2col happens in VMEM.
# ----------------------------------------------------------------------------
def _conv2_tail_kernel(x_ref, w2_ref, ss2_ref, wpw_ref, sspw_ref,
                       w4_ref, ss4_ref, w5_ref, o_ref, patch_ref):
    """x: (TB, 9, 9, 128) bf16 post-pool1 activation; o: (TB, 1, 10) f32 logits.

    patch_ref: (16*TB, 1152) f32 VMEM scratch holding the in-kernel im2col, row
    group g = (dh, dw, ho, wo)  (pool phase major, pooled spatial position minor).
    """
    tb = x_ref.shape[0]

    # --- in-VMEM im2col for the dilated conv; only positions surviving the pool ---
    g = 0
    for dh in (0, 1):                      # pool phase (rows)
        for dw in (0, 1):                  # pool phase (cols)
            for ho in (0, 1):              # pooled output position (rows)
                for wo in (0, 1):          # pooled output position (cols)
                    taps = [x_ref[:, 2 * ho + dh + 2 * kh, 2 * wo + dw + 2 * kw, :]
                            for kh in range(3) for kw in range(3)]
                    patch_ref[g * tb:(g + 1) * tb, :] = (
                        jnp.concatenate(taps, axis=-1).astype(patch_ref.dtype))
                    g += 1

    # --- conv2 (single MXU pass over all 16 row groups) + ReLU + BN2 ---
    y = jnp.dot(patch_ref[...].astype(jnp.bfloat16), w2_ref[...],
                preferred_element_type=jnp.float32)
    y = jnp.maximum(y, 0.0) * ss2_ref[0:1, :] + ss2_ref[1:2, :]

    # --- 2x2 max pool == max over the 4 phase row-groups (BN already applied) ---
    pooled = y[0:4 * tb]
    for ph in range(1, 4):
        pooled = jnp.maximum(pooled, y[ph * 4 * tb:(ph + 1) * 4 * tb])

    # --- convblock3 (folded into wpw) + pointwise + ReLU + BN ---
    z = jnp.dot(pooled.astype(jnp.bfloat16), wpw_ref[...],
                preferred_element_type=jnp.float32)
    z = jnp.maximum(z, 0.0) * sspw_ref[0:1, :] + sspw_ref[1:2, :]

    # --- gap AvgPool2d(2): mean over the 4 pooled spatial positions ---
    gap = 0.25 * (z[0:tb] + z[tb:2 * tb] + z[2 * tb:3 * tb] + z[3 * tb:4 * tb])

    # --- convblock4 (stride-2 on a 1x1 map == identity) + ReLU + BN ---
    h = jnp.dot(gap.astype(jnp.bfloat16), w4_ref[...],
                preferred_element_type=jnp.float32)
    h = jnp.maximum(h, 0.0) * ss4_ref[0:1, :] + ss4_ref[1:2, :]

    # --- convblock5 -> logits ---
    logits = jnp.dot(h.astype(jnp.bfloat16), w5_ref[...],
                     preferred_element_type=jnp.float32)
    o_ref[:, 0, :] = logits.astype(o_ref.dtype)


def conv2_tail(x2, w2, ss2, wpw, sspw, w4, ss4, w5):
    """x2: (N, 9, 9, 128) bf16 post-pool1 activation -> logits (N, 10) f32."""
    n = x2.shape[0]
    # >=2 batch tiles whenever N>=2 (v7x megacore); cap the tile at 8 samples.
    tb = 8 if n >= 16 else max(1, n // 2)
    n_pad = _round_up(n, tb)
    if n_pad != n:
        x2 = jnp.pad(x2, ((0, n_pad - n), (0, 0), (0, 0), (0, 0)))
    k2, c2 = w2.shape
    cpw, c4, c5 = wpw.shape[1], w4.shape[1], w5.shape[1]
    out = pl.pallas_call(
        _conv2_tail_kernel,
        out_shape=jax.ShapeDtypeStruct((n_pad, 1, c5), jnp.float32),
        grid=(n_pad // tb,),
        in_specs=[
            pl.BlockSpec((tb, 9, 9, 128), lambda i: (i, 0, 0, 0)),
            _const_spec((k2, c2)),       # conv2 weight (1152, 256), VMEM-resident
            _const_spec((2, c2)),
            _const_spec((256, cpw)),     # pointwise weight with convblock3 folded in
            _const_spec((2, cpw)),
            _const_spec((cpw, c4)),
            _const_spec((2, c4)),
            _const_spec((c4, c5)),
        ],
        out_specs=pl.BlockSpec((tb, 1, c5), lambda i: (i, 0, 0)),
        scratch_shapes=[pltpu.VMEM((16 * tb, k2), jnp.float32)],
        compiler_params=_PARAMS,
    )(x2.astype(jnp.bfloat16), w2, ss2, wpw, sspw, w4, ss4, w5)
    return out.reshape(n_pad, c5)[:n]


# ----------------------------------------------------------------------------
# Plain-JAX glue: conv1 patch building, parameters, forward
# ----------------------------------------------------------------------------
def conv_pool_patches(x, ksize, dilation):
    """Pool-phase-major im2col for a valid (dilated) ksize x ksize conv followed by
    a floor 2x2/2 max pool.  Only conv positions surviving the pool are kept.

    x: (N, H, W, C) -> (patches (4, N*Hp*Wp, ksize*ksize*C), (N, Hp, Wp)); feature
    order is (kh, kw, c), row order within a phase is (n, ho, wo).
    """
    n, h, w, c = x.shape
    hc = h - (ksize - 1) * dilation
    wc = w - (ksize - 1) * dilation
    hp, wp = hc // 2, wc // 2
    # 1) full im2col via k*k shifted views (9 slices + 1 concat, not 36 slices)
    taps = [x[:, kh * dilation:kh * dilation + hc, kw * dilation:kw * dilation + wc, :]
            for kh in range(ksize) for kw in range(ksize)]
    full = jnp.concatenate(taps, axis=-1)            # (N, Hc, Wc, k*k*C)
    # 2) keep only the conv positions that survive the floor pool, phase-major
    phases = [full[:, dh:dh + 2 * hp:2, dw:dw + 2 * wp:2, :].reshape(n * hp * wp, -1)
              for dh in (0, 1) for dw in (0, 1)]
    return jnp.stack(phases, axis=0), (n, hp, wp)


def _bn_scale_shift(gamma, beta, mean, var):
    scale = gamma / jnp.sqrt(var + BN_EPS)
    shift = beta - mean * scale
    return jnp.stack([scale, shift], axis=0).astype(jnp.float32)   # (2, C)


def init_params(key):
    ks = jax.random.split(key, 6)

    def conv_w(k, kh, kw, cin, cout):
        fan_in = kh * kw * cin
        w = jax.random.normal(k, (kh, kw, cin, cout), jnp.float32)
        return (w * (2.0 / fan_in) ** 0.5).reshape(kh * kw * cin, cout)

    w3 = jax.random.normal(ks[2], (256,), jnp.float32) * 0.1       # depthwise 1x1
    w_pw = conv_w(ks[3], 1, 1, 256, 128)
    p = {
        # MXU operands stored bf16 (accumulate + epilogue stay f32 in-kernel).
        "w1": conv_w(ks[0], 3, 3, 3, 128).astype(jnp.bfloat16),
        "w2": conv_w(ks[1], 3, 3, 128, 256).astype(jnp.bfloat16),
        # convblock3 folded into pointwise: (x*w3) @ Wpw == x @ (diag(w3) @ Wpw)
        # (valid: bias-free grouped 1x1 with nothing between it and the pointwise)
        "w_pw": (w3[:, None] * w_pw).astype(jnp.bfloat16),
        "w4": conv_w(ks[4], 1, 1, 128, 64).astype(jnp.bfloat16),
        "w5": conv_w(ks[5], 1, 1, 64, 10).astype(jnp.bfloat16),
    }
    for name, ch in (("bn1", 128), ("bn2", 256), ("bn_pw", 128), ("bn4", 64)):
        p[f"{name}_ss"] = _bn_scale_shift(jnp.ones((ch,)), jnp.zeros((ch,)),
                                          jnp.zeros((ch,)), jnp.ones((ch,)))
    return p


def net_forward(x_nchw, params):
    # accept NCHW (PyTorch convention), compute in NHWC (channels on lanes)
    x = jnp.transpose(x_nchw, (0, 2, 3, 1)).astype(jnp.float32)

    # K1: convblock1 (3x3, 3->128) + ReLU + BN + Dropout(identity) + MaxPool(2,2)
    patches, (n, hp, wp) = conv_pool_patches(x, ksize=3, dilation=1)
    y = conv_relu_bn_pool(patches, params["w1"], params["bn1_ss"])
    if (hp, wp) != (9, 9):
        raise ValueError("fused conv2+tail kernel expects a 9x9 post-pool1 map "
                         f"(got {hp}x{wp}); use a 20x20 input")
    x2 = y.reshape(n, hp, wp, 128)          # row-major reshape; no transpose

    # K2: convblock2 + pool + convblock3(folded) + pointwise + gap + convblock4
    #     + convblock5, all fused; returns logits (N, 10)  (== x.view(-1, 10))
    return conv2_tail(x2, params["w2"], params["bn2_ss"],
                      params["w_pw"], params["bn_pw_ss"],
                      params["w4"], params["bn4_ss"], params["w5"])


if __name__ == "__main__":
    key = jax.random.PRNGKey(0)
    pkey, xkey = jax.random.split(key)
    params = init_params(pkey)

    # 20x20 input keeps every stage's spatial size >= 1 and yields a 1x1 map before
    # the final .view(-1, 10), matching the PyTorch module's assumptions.
    x = jax.random.normal(xkey, (2, 3, 20, 20), jnp.float32)   # NCHW like PyTorch

    out = jax.jit(lambda inp: net_forward(inp, params))(x)
    out = jax.block_until_ready(out)
    assert out.shape == (2, 10), out.shape
    assert bool(jnp.all(jnp.isfinite(out)))
    print("KERNEL_OK")
</pallas_src>

<mosaic_0001>
module attributes {stable_mosaic.version = 11 : i64} {
  func.func @_conv_relu_bn_pool_kernel(%arg0: i32, %arg1: memref<4x88x27xbf16, #tpu.memory_space<vmem>>, %arg2: memref<27x128xbf16, #tpu.memory_space<vmem>>, %arg3: memref<2x128xf32, #tpu.memory_space<vmem>>, %arg4: memref<88x128xbf16, #tpu.memory_space<vmem>>) attributes {dimension_semantics = [#tpu.dimension_semantics<parallel>], iteration_bounds = array<i64: 2>, scalar_prefetch = 0 : i64, scratch_operands = 0 : i64, tpu.core_type = #tpu.core_type<tc>, window_params = [{transform_indices = @transform_0, window_bounds = array<i64: 4, 88, 27>}, {pipeline_mode = #tpu.pipeline_mode<synchronous>, transform_indices = @transform_1, window_bounds = array<i64: 27, 128>}, {pipeline_mode = #tpu.pipeline_mode<synchronous>, transform_indices = @transform_2, window_bounds = array<i64: 2, 128>}, {transform_indices = @transform_3, window_bounds = array<i64: 88, 128>}]} {
    %c0 = arith.constant 0 : index
    %c0_0 = arith.constant 0 : index
    %0 = vector.load %arg3[%c0, %c0_0] : memref<2x128xf32, #tpu.memory_space<vmem>>, vector<1x128xf32>
    %c1 = arith.constant 1 : index
    %c0_1 = arith.constant 0 : index
    %1 = vector.load %arg3[%c1, %c0_1] : memref<2x128xf32, #tpu.memory_space<vmem>>, vector<1x128xf32>
    %c0_2 = arith.constant 0 : index
    %c0_3 = arith.constant 0 : index
    %c0_4 = arith.constant 0 : index
    %2 = vector.load %arg1[%c0_2, %c0_3, %c0_4] : memref<4x88x27xbf16, #tpu.memory_space<vmem>>, vector<1x88x27xbf16>
    %3 = vector.shape_cast %2 : vector<1x88x27xbf16> to vector<88x27xbf16>
    %c0_5 = arith.constant 0 : index
    %c0_6 = arith.constant 0 : index
    %4 = vector.load %arg2[%c0_5, %c0_6] : memref<27x128xbf16, #tpu.memory_space<vmem>>, vector<27x128xbf16>
    %cst = arith.constant dense<0.000000e+00> : vector<88x128xf32>
    %5 = tpu.matmul %3, %4, %cst {dimension_numbers = #tpu.dot_dimension_numbers<[1], [0], [0], [1], [0, 0, 1, 1], [], []>} : vector<88x27xbf16>, vector<27x128xbf16>, vector<88x128xf32> -> vector<88x128xf32>
    %cst_7 = arith.constant 0.000000e+00 : f32
    %6 = vector.broadcast %cst_7 : f32 to vector<88x128xf32>
    %7 = arith.maximumf %5, %6 : vector<88x128xf32>
    %8 = vector.broadcast %0 : vector<1x128xf32> to vector<88x128xf32>
    %9 = arith.mulf %7, %8 : vector<88x128xf32>
    %10 = vector.broadcast %1 : vector<1x128xf32> to vector<88x128xf32>
    %11 = arith.addf %9, %10 : vector<88x128xf32>
    %c1_8 = arith.constant 1 : index
    %c0_9 = arith.constant 0 : index
    %c0_10 = arith.constant 0 : index
    %12 = vector.load %arg1[%c1_8, %c0_9, %c0_10] : memref<4x88x27xbf16, #tpu.memory_space<vmem>>, vector<1x88x27xbf16>
    %13 = vector.shape_cast %12 : vector<1x88x27xbf16> to vector<88x27xbf16>
    %c0_11 = arith.constant 0 : index
    %c0_12 = arith.constant 0 : index
    %14 = vector.load %arg2[%c0_11, %c0_12] : memref<27x128xbf16, #tpu.memory_space<vmem>>, vector<27x128xbf16>
    %cst_13 = arith.constant dense<0.000000e+00> : vector<88x128xf32>
    %15 = tpu.matmul %13, %14, %cst_13 {dimension_numbers = #tpu.dot_dimension_numbers<[1], [0], [0], [1], [0, 0, 1, 1], [], []>} : vector<88x27xbf16>, vector<27x128xbf16>, vector<88x128xf32> -> vector<88x128xf32>
    %cst_14 = arith.constant 0.000000e+00 : f32
    %16 = vector.broadcast %cst_14 : f32 to vector<88x128xf32>
    %17 = arith.maximumf %15, %16 : vector<88x128xf32>
    %18 = vector.broadcast %0 : vector<1x128xf32> to vector<88x128xf32>
    %19 = arith.mulf %17, %18 : vector<88x128xf32>
    %20 = vector.broadcast %1 : vector<1x128xf32> to vector<88x128xf32>
    %21 = arith.addf %19, %20 : vector<88x128xf32>
    %22 = arith.maximumf %11, %21 : vector<88x128xf32>
    %c2 = arith.constant 2 : index
    %c0_15 = arith.constant 0 : index
    %c0_16 = arith.constant 0 : index
    %23 = vector.load %arg1[%c2, %c0_15, %c0_16] : memref<4x88x27xbf16, #tpu.memory_space<vmem>>, vector<1x88x27xbf16>
    %24 = vector.shape_cast %23 : vector<1x88x27xbf16> to vector<88x27xbf16>
    %c0_17 = arith.constant 0 : index
    %c0_18 = arith.constant 0 : index
    %25 = vector.load %arg2[%c0_17, %c0_18] : memref<27x128xbf16, #tpu.memory_space<vmem>>, vector<27x128xbf16>
    %cst_19 = arith.constant dense<0.000000e+00> : vector<88x128xf32>
    %26 = tpu.matmul %24, %25, %cst_19 {dimension_numbers = #tpu.dot_dimension_numbers<[1], [0], [0], [1], [0, 0, 1, 1], [], []>} : vector<88x27xbf16>, vector<27x128xbf16>, vector<88x128xf32> -> vector<88x128xf32>
    %cst_20 = arith.constant 0.000000e+00 : f32
    %27 = vector.broadcast %cst_20 : f32 to vector<88x128xf32>
    %28 = arith.maximumf %26, %27 : vector<88x128xf32>
    %29 = vector.broadcast %0 : vector<1x128xf32> to vector<88x128xf32>
    %30 = arith.mulf %28, %29 : vector<88x128xf32>
    %31 = vector.broadcast %1 : vector<1x128xf32> to vector<88x128xf32>
    %32 = arith.addf %30, %31 : vector<88x128xf32>
    %33 = arith.maximumf %22, %32 : vector<88x128xf32>
    %c3 = arith.constant 3 : index
    %c0_21 = arith.constant 0 : index
    %c0_22 = arith.constant 0 : index
    %34 = vector.load %arg1[%c3, %c0_21, %c0_22] : memref<4x88x27xbf16, #tpu.memory_space<vmem>>, vector<1x88x27xbf16>
    %35 = vector.shape_cast %34 : vector<1x88x27xbf16> to vector<88x27xbf16>
    %c0_23 = arith.constant 0 : index
    %c0_24 = arith.constant 0 : index
    %36 = vector.load %arg2[%c0_23, %c0_24] : memref<27x128xbf16, #tpu.memory_space<vmem>>, vector<27x128xbf16>
    %cst_25 = arith.constant dense<0.000000e+00> : vector<88x128xf32>
    %37 = tpu.matmul %35, %36, %cst_25 {dimension_numbers = #tpu.dot_dimension_numbers<[1], [0], [0], [1], [0, 0, 1, 1], [], []>} : vector<88x27xbf16>, vector<27x128xbf16>, vector<88x128xf32> -> vector<88x128xf32>
    %cst_26 = arith.constant 0.000000e+00 : f32
    %38 = vector.broadcast %cst_26 : f32 to vector<88x128xf32>
    %39 = arith.maximumf %37, %38 : vector<88x128xf32>
    %40 = vector.broadcast %0 : vector<1x128xf32> to vector<88x128xf32>
    %41 = arith.mulf %39, %40 : vector<88x128xf32>
    %42 = vector.broadcast %1 : vector<1x128xf32> to vector<88x128xf32>
    %43 = arith.addf %41, %42 : vector<88x128xf32>
    %44 = arith.maximumf %33, %43 : vector<88x128xf32>
    %45 = arith.truncf %44 : vector<88x128xf32> to vector<88x128xbf16>
    %c0_27 = arith.constant 0 : index
    %c0_28 = arith.constant 0 : index
    %46 = vector.load %arg4[%c0_27, %c0_28] : memref<88x128xbf16, #tpu.memory_space<vmem>>, vector<88x128xbf16>
    tpu.vector_store %arg4[%c0_27, %c0_28], %45 {strides = array<i32>} : memref<88x128xbf16, #tpu.memory_space<vmem>>, vector<88x128xbf16>,
    return
  }
  func.func @transform_0(%arg0: i32) -> (i32, i32, i32) {
    %c0_i32 = arith.constant 0 : i32
    %c0_i32_0 = arith.constant 0 : i32
    %c0_i32_1 = arith.constant 0 : i32
    return %c0_i32, %arg0, %c0_i32_0 : i32, i32, i32
  }
  func.func @transform_1(%arg0: i32) -> (i32, i32) {
    %c0_i32 = arith.constant 0 : i32
    %c0_i32_0 = arith.constant 0 : i32
    %c0_i32_1 = arith.constant 0 : i32
    return %c0_i32, %c0_i32_0 : i32, i32
  }
  func.func @transform_2(%arg0: i32) -> (i32, i32) {
    %c0_i32 = arith.constant 0 : i32
    %c0_i32_0 = arith.constant 0 : i32
    %c0_i32_1 = arith.constant 0 : i32
    return %c0_i32, %c0_i32_0 : i32, i32
  }
  func.func @transform_3(%arg0: i32) -> (i32, i32) {
    %c0_i32 = arith.constant 0 : i32
    %c0_i32_0 = arith.constant 0 : i32
    return %arg0, %c0_i32 : i32, i32
  }
}

module attributes {stable_mosaic.version = 11 : i64} {
  func.func @_conv2_tail_kernel(%arg0: i32, %arg1: memref<1x9x9x128xbf16, #tpu.memory_space<vmem>>, %arg2: memref<1152x256xbf16, #tpu.memory_space<vmem>>, %arg3: memref<2x256xf32, #tpu.memory_space<vmem>>, %arg4: memref<256x128xbf16, #tpu.memory_space<vmem>>, %arg5: memref<2x128xf32, #tpu.memory_space<vmem>>, %arg6: memref<128x64xbf16, #tpu.memory_space<vmem>>, %arg7: memref<2x64xf32, #tpu.memory_space<vmem>>, %arg8: memref<64x10xbf16, #tpu.memory_space<vmem>>, %arg9: memref<1x1x10xf32, #tpu.memory_space<vmem>>, %arg10: memref<16x1152xf32, #tpu.memory_space<vmem>>) attributes {dimension_semantics = [#tpu.dimension_semantics<parallel>], iteration_bounds = array<i64: 2>, scalar_prefetch = 0 : i64, scratch_operands = 1 : i64, tpu.core_type = #tpu.core_type<tc>, window_params = [{transform_indices = @transform_0, window_bounds = array<i64: 1, 9, 9, 128>}, {pipeline_mode = #tpu.pipeline_mode<synchronous>, transform_indices = @transform_1, window_bounds = array<i64: 1152, 256>}, {pipeline_mode = #tpu.pipeline_mode<synchronous>, transform_indices = @transform_2, window_bounds = array<i64: 2, 256>}, {pipeline_mode = #tpu.pipeline_mode<synchronous>, transform_indices = @transform_3, window_bounds = array<i64: 256, 128>}, {pipeline_mode = #tpu.pipeline_mode<synchronous>, transform_indices = @transform_4, window_bounds = array<i64: 2, 128>}, {pipeline_mode = #tpu.pipeline_mode<synchronous>, transform_indices = @transform_5, window_bounds = array<i64: 128, 64>}, {pipeline_mode = #tpu.pipeline_mode<synchronous>, transform_indices = @transform_6, window_bounds = array<i64: 2, 64>}, {pipeline_mode = #tpu.pipeline_mode<synchronous>, transform_indices = @transform_7, window_bounds = array<i64: 64, 10>}, {transform_indices = @transform_8, window_bounds = array<i64: 1, 1, 10>}]} {
    %c0 = arith.constant 0 : index
    %c0_0 = arith.constant 0 : index
    %c0_1 = arith.constant 0 : index
    %c0_2 = arith.constant 0 : index
    %0 = vector.load %arg1[%c0, %c0_0, %c0_1, %c0_2] : memref<1x9x9x128xbf16, #tpu.memory_space<vmem>>, vector<1x1x1x128xbf16>
    %1 = vector.shape_cast %0 : vector<1x1x1x128xbf16> to vector<1x128xbf16>
    %c0_3 = arith.constant 0 : index
    %c0_4 = arith.constant 0 : index
    %c2 = arith.constant 2 : index
    %c0_5 = arith.constant 0 : index
    %2 = vector.load %arg1[%c0_3, %c0_4, %c2, %c0_5] : memref<1x9x9x128xbf16, #tpu.memory_space<vmem>>, vector<1x1x1x128xbf16>
    %3 = vector.shape_cast %2 : vector<1x1x1x128xbf16> to vector<1x128xbf16>
    %c0_6 = arith.constant 0 : index
    %c0_7 = arith.constant 0 : index
    %c4 = arith.constant 4 : index
    %c0_8 = arith.constant 0 : index
    %4 = vector.load %arg1[%c0_6, %c0_7, %c4, %c0_8] : memref<1x9x9x128xbf16, #tpu.memory_space<vmem>>, vector<1x1x1x128xbf16>
    %5 = vector.shape_cast %4 : vector<1x1x1x128xbf16> to vector<1x128xbf16>
    %c0_9 = arith.constant 0 : index
    %c2_10 = arith.constant 2 : index
    %c0_11 = arith.constant 0 : index
    %c0_12 = arith.constant 0 : index
    %6 = vector.load %arg1[%c0_9, %c2_10, %c0_11, %c0_12] : memref<1x9x9x128xbf16, #tpu.memory_space<vmem>>, vector<1x1x1x128xbf16>
    %7 = vector.shape_cast %6 : vector<1x1x1x128xbf16> to vector<1x128xbf16>
    %c0_13 = arith.constant 0 : index
    %c2_14 = arith.constant 2 : index
    %c2_15 = arith.constant 2 : index
    %c0_16 = arith.constant 0 : index
    %8 = vector.load %arg1[%c0_13, %c2_14, %c2_15, %c0_16] : memref<1x9x9x128xbf16, #tpu.memory_space<vmem>>, vector<1x1x1x128xbf16>
    %9 = vector.shape_cast %8 : vector<1x1x1x128xbf16> to vector<1x128xbf16>
    %c0_17 = arith.constant 0 : index
    %c2_18 = arith.constant 2 : index
    %c4_19 = arith.constant 4 : index
    %c0_20 = arith.constant 0 : index
    %10 = vector.load %arg1[%c0_17, %c2_18, %c4_19, %c0_20] : memref<1x9x9x128xbf16, #tpu.memory_space<vmem>>, vector<1x1x1x128xbf16>
    %11 = vector.shape_cast %10 : vector<1x1x1x128xbf16> to vector<1x128xbf16>
    %c0_21 = arith.constant 0 : index
    %c4_22 = arith.constant 4 : index
    %c0_23 = arith.constant 0 : index
    %c0_24 = arith.constant 0 : index
    %12 = vector.load %arg1[%c0_21, %c4_22, %c0_23, %c0_24] : memref<1x9x9x128xbf16, #tpu.memory_space<vmem>>, vector<1x1x1x128xbf16>
    %13 = vector.shape_cast %12 : vector<1x1x1x128xbf16> to vector<1x128xbf16>
    %c0_25 = arith.constant 0 : index
    %c4_26 = arith.constant 4 : index
    %c2_27 = arith.constant 2 : index
    %c0_28 = arith.constant 0 : index
    %14 = vector.load %arg1[%c0_25, %c4_26, %c2_27, %c0_28] : memref<1x9x9x128xbf16, #tpu.memory_space<vmem>>, vector<1x1x1x128xbf16>
    %15 = vector.shape_cast %14 : vector<1x1x1x128xbf16> to vector<1x128xbf16>
    %c0_29 = arith.constant 0 : index
    %c4_30 = arith.constant 4 : index
    %c4_31 = arith.constant 4 : index
    %c0_32 = arith.constant 0 : index
    %16 = vector.load %arg1[%c0_29, %c4_30, %c4_31, %c0_32] : memref<1x9x9x128xbf16, #tpu.memory_space<vmem>>, vector<1x1x1x128xbf16>
    %17 = vector.shape_cast %16 : vector<1x1x1x128xbf16> to vector<1x128xbf16>
    %18 = tpu.concatenate %1, %3, %5, %7, %9, %11, %13, %15, %17 in 1 : vector<1x128xbf16>, vector<1x128xbf16>, vector<1x128xbf16>, vector<1x128xbf16>, vector<1x128xbf16>, vector<1x128xbf16>, vector<1x128xbf16>, vector<1x128xbf16>, vector<1x128xbf16> -> vector<1x1152xbf16>
    %19 = arith.extf %18 : vector<1x1152xbf16> to vector<1x1152xf32>
    %c0_33 = arith.constant 0 : index
    %c0_34 = arith.constant 0 : index
    %20 = vector.load %arg10[%c0_33, %c0_34] : memref<16x1152xf32, #tpu.memory_space<vmem>>, vector<1x1152xf32>
    tpu.vector_store %arg10[%c0_33, %c0_34], %19 {strides = array<i32>} : memref<16x1152xf32, #tpu.memory_space<vmem>>, vector<1x1152xf32>,
    %c0_35 = arith.constant 0 : index
    %c0_36 = arith.constant 0 : index
    %c2_37 = arith.constant 2 : index
    %c0_38 = arith.constant 0 : index
    %21 = vector.load %arg1[%c0_35, %c0_36, %c2_37, %c0_38] : memref<1x9x9x128xbf16, #tpu.memory_space<vmem>>, vector<1x1x1x128xbf16>
    %22 = vector.shape_cast %21 : vector<1x1x1x128xbf16> to vector<1x128xbf16>
    %c0_39 = arith.constant 0 : index
    %c0_40 = arith.constant 0 : index
    %c4_41 = arith.constant 4 : index
    %c0_42 = arith.constant 0 : index
    %23 = vector.load %arg1[%c0_39, %c0_40, %c4_41, %c0_42] : memref<1x9x9x128xbf16, #tpu.memory_space<vmem>>, vector<1x1x1x128xbf16>
    %24 = vector.shape_cast %23 : vector<1x1x1x128xbf16> to vector<1x128xbf16>
    %c0_43 = arith.constant 0 : index
    %c0_44 = arith.constant 0 : index
    %c6 = arith.constant 6 : index
    %c0_45 = arith.constant 0 : index
    %25 = vector.load %arg1[%c0_43, %c0_44, %c6, %c0_45] : memref<1x9x9x128xbf16, #tpu.memory_space<vmem>>, vector<1x1x1x128xbf16>
    %26 = vector.shape_cast %25 : vector<1x1x1x128xbf16> to vector<1x128xbf16>
    %c0_46 = arith.constant 0 : index
    %c2_47 = arith.constant 2 : index
    %c2_48 = arith.constant 2 : index
    %c0_49 = arith.constant 0 : index
    %27 = vector.load %arg1[%c0_46, %c2_47, %c2_48, %c0_49] : memref<1x9x9x128xbf16, #tpu.memory_space<vmem>>, vector<1x1x1x128xbf16>
    %28 = vector.shape_cast %27 : vector<1x1x1x128xbf16> to vector<1x128xbf16>
    %c0_50 = arith.constant 0 : index
    %c2_51 = arith.constant 2 : index
    %c4_52 = arith.constant 4 : index
    %c0_53 = arith.constant 0 : index
    %29 = vector.load %arg1[%c0_50, %c2_51, %c4_52, %c0_53] : memref<1x9x9x128xbf16, #tpu.memory_space<vmem>>, vector<1x1x1x128xbf16>
    %30 = vector.shape_cast %29 : vector<1x1x1x128xbf16> to vector<1x128xbf16>
    %c0_54 = arith.constant 0 : index
    %c2_55 = arith.constant 2 : index
    %c6_56 = arith.constant 6 : index
    %c0_57 = arith.constant 0 : index
    %31 = vector.load %arg1[%c0_54, %c2_55, %c6_56, %c0_57] : memref<1x9x9x128xbf16, #tpu.memory_space<vmem>>, vector<1x1x1x128xbf16>
    %32 = vector.shape_cast %31 : vector<1x1x1x128xbf16> to vector<1x128xbf16>
    %c0_58 = arith.constant 0 : index
    %c4_59 = arith.constant 4 : index
    %c2_60 = arith.constant 2 : index
    %c0_61 = arith.constant 0 : index
    %33 = vector.load %arg1[%c0_58, %c4_59, %c2_60, %c0_61] : memref<1x9x9x128xbf16, #tpu.memory_space<vmem>>, vector<1x1x1x128xbf16>
    %34 = vector.shape_cast %33 : vector<1x1x1x128xbf16> to vector<1x128xbf16>
    %c0_62 = arith.constant 0 : index
    %c4_63 = arith.constant 4 : index
    %c4_64 = arith.constant 4 : index
    %c0_65 = arith.constant 0 : index
    %35 = vector.load %arg1[%c0_62, %c4_63, %c4_64, %c0_65] : memref<1x9x9x128xbf16, #tpu.memory_space<vmem>>, vector<1x1x1x128xbf16>
    %36 = vector.shape_cast %35 : vector<1x1x1x128xbf16> to vector<1x128xbf16>
    %c0_66 = arith.constant 0 : index
    %c4_67 = arith.constant 4 : index
    %c6_68 = arith.constant 6 : index
    %c0_69 = arith.constant 0 : index
    %37 = vector.load %arg1[%c0_66, %c4_67, %c6_68, %c0_69] : memref<1x9x9x128xbf16, #tpu.memory_space<vmem>>, vector<1x1x1x128xbf16>
    %38 = vector.shape_cast %37 : vector<1x1x1x128xbf16> to vector<1x128xbf16>
    %39 = tpu.concatenate %22, %24, %26, %28, %30, %32, %34, %36, %38 in 1 : vector<1x128xbf16>, vector<1x128xbf16>, vector<1x128xbf16>, vector<1x128xbf16>, vector<1x128xbf16>, vector<1x128xbf16>, vector<1x128xbf16>, vector<1x128xbf16>, vector<1x128xbf16> -> vector<1x1152xbf16>
    %40 = arith.extf %39 : vector<1x1152xbf16> to vector<1x1152xf32>
    %c1 = arith.constant 1 : index
    %c0_70 = arith.constant 0 : index
    %41 = vector.load %arg10[%c1, %c0_70] : memref<16x1152xf32, #tpu.memory_space<vmem>>, vector<1x1152xf32>
    tpu.vector_store %arg10[%c1, %c0_70], %40 {strides = array<i32>} : memref<16x1152xf32, #tpu.memory_space<vmem>>, vector<1x1152xf32>,
    %c0_71 = arith.constant 0 : index
    %c2_72 = arith.constant 2 : index
    %c0_73 = arith.constant 0 : index
    %c0_74 = arith.constant 0 : index
    %42 = vector.load %arg1[%c0_71, %c2_72, %c0_73, %c0_74] : memref<1x9x9x128xbf16, #tpu.memory_space<vmem>>, vector<1x1x1x128xbf16>
    %43 = vector.shape_cast %42 : vector<1x1x1x128xbf16> to vector<1x128xbf16>
    %c0_75 = arith.constant 0 : index
    %c2_76 = arith.constant 2 : index
    %c2_77 = arith.constant 2 : index
    %c0_78 = arith.constant 0 : index
    %44 = vector.load %arg1[%c0_75, %c2_76, %c2_77, %c0_78] : memref<1x9x9x128xbf16, #tpu.memory_space<vmem>>, vector<1x1x1x128xbf16>
    %45 = vector.shape_cast %44 : vector<1x1x1x128xbf16> to vector<1x128xbf16>
    %c0_79 = arith.constant 0 : index
    %c2_80 = arith.constant 2 : index
    %c4_81 = arith.constant 4 : index
    %c0_82 = arith.constant 0 : index
    %46 = vector.load %arg1[%c0_79, %c2_80, %c4_81, %c0_82] : memref<1x9x9x128xbf16, #tpu.memory_space<vmem>>, vector<1x1x1x128xbf16>
    %47 = vector.shape_cast %46 : vector<1x1x1x128xbf16> to vector<1x128xbf16>
    %c0_83 = arith.constant 0 : index
    %c4_84 = arith.constant 4 : index
    %c0_85 = arith.constant 0 : index
    %c0_86 = arith.constant 0 : index
    %48 = vector.load %arg1[%c0_83, %c4_84, %c0_85, %c0_86] : memref<1x9x9x128xbf16, #tpu.memory_space<vmem>>, vector<1x1x1x128xbf16>
    %49 = vector.shape_cast %48 : vector<1x1x1x128xbf16> to vector<1x128xbf16>
    %c0_87 = arith.constant 0 : index
    %c4_88 = arith.constant 4 : index
    %c2_89 = arith.constant 2 : index
    %c0_90 = arith.constant 0 : index
    %50 = vector.load %arg1[%c0_87, %c4_88, %c2_89, %c0_90] : memref<1x9x9x128xbf16, #tpu.memory_space<vmem>>, vector<1x1x1x128xbf16>
    %51 = vector.shape_cast %50 : vector<1x1x1x128xbf16> to vector<1x128xbf16>
    %c0_91 = arith.constant 0 : index
    %c4_92 = arith.constant 4 : index
    %c4_93 = arith.constant 4 : index
    %c0_94 = arith.constant 0 : index
    %52 = vector.load %arg1[%c0_91, %c4_92, %c4_93, %c0_94] : memref<1x9x9x128xbf16, #tpu.memory_space<vmem>>, vector<1x1x1x128xbf16>
    %53 = vector.shape_cast %52 : vector<1x1x1x128xbf16> to vector<1x128xbf16>
    %c0_95 = arith.constant 0 : index
    %c6_96 = arith.constant 6 : index
    %c0_97 = arith.constant 0 : index
    %c0_98 = arith.constant 0 : index
    %54 = vector.load %arg1[%c0_95, %c6_96, %c0_97, %c0_98] : memref<1x9x9x128xbf16, #tpu.memory_space<vmem>>, vector<1x1x1x128xbf16>
    %55 = vector.shape_cast %54 : vector<1x1x1x128xbf16> to vector<1x128xbf16>
    %c0_99 = arith.constant 0 : index
    %c6_100 = arith.constant 6 : index
    %c2_101 = arith.constant 2 : index
    %c0_102 = arith.constant 0 : index
    %56 = vector.load %arg1[%c0_99, %c6_100, %c2_101, %c0_102] : memref<1x9x9x128xbf16, #tpu.memory_space<vmem>>, vector<1x1x1x128xbf16>
    %57 = vector.shape_cast %56 : vector<1x1x1x128xbf16> to vector<1x128xbf16>
    %c0_103 = arith.constant 0 : index
    %c6_104 = arith.constant 6 : index
    %c4_105 = arith.constant 4 : index
    %c0_106 = arith.constant 0 : index
    %58 = vector.load %arg1[%c0_103, %c6_104, %c4_105, %c0_106] : memref<1x9x9x128xbf16, #tpu.memory_space<vmem>>, vector<1x1x1x128xbf16>
    %59 = vector.shape_cast %58 : vector<1x1x1x128xbf16> to vector<1x128xbf16>
    %60 = tpu.concatenate %43, %45, %47, %49, %51, %53, %55, %57, %59 in 1 : vector<1x128xbf16>, vector<1x128xbf16>, vector<1x128xbf16>, vector<1x128xbf16>, vector<1x128xbf16>, vector<1x128xbf16>, vector<1x128xbf16>, vector<1x128xbf16>, vector<1x128xbf16> -> vector<1x1152xbf16>
    %61 = arith.extf %60 : vector<1x1152xbf16> to vector<1x1152xf32>
    %c2_107 = arith.constant 2 : index
    %c0_108 = arith.constant 0 : index
    %62 = vector.load %arg10[%c2_107, %c0_108] : memref<16x1152xf32, #tpu.memory_space<vmem>>, vector<1x1152xf32>
    tpu.vector_store %arg10[%c2_107, %c0_108], %61 {strides = array<i32>} : memref<16x1152xf32, #tpu.memory_space<vmem>>, vector<1x1152xf32>,
    %c0_109 = arith.constant 0 : index
    %c2_110 = arith.constant 2 : index
    %c2_111 = arith.constant 2 : index
    %c0_112 = arith.constant 0 : index
    %63 = vector.load %arg1[%c0_109, %c2_110, %c2_111, %c0_112] : memref<1x9x9x128xbf16, #tpu.memory_space<vmem>>, vector<1x1x1x128xbf16>
    %64 = vector.shape_cast %63 : vector<1x1x1x128xbf16> to vector<1x128xbf16>
    %c0_113 = arith.constant 0 : index
    %c2_114 = arith.constant 2 : index
    %c4_115 = arith.constant 4 : index
    %c0_116 = arith.constant 0 : index
    %65 = vector.load %arg1[%c0_113, %c2_114, %c4_115, %c0_116] : memref<1x9x9x128xbf16, #tpu.memory_space<vmem>>, vector<1x1x1x128xbf16>
    %66 = vector.shape_cast %65 : vector<1x1x1x128xbf16> to vector<1x128xbf16>
    %c0_117 = arith.constant 0 : index
    %c2_118 = arith.constant 2 : index
    %c6_119 = arith.constant 6 : index
    %c0_120 = arith.constant 0 : index
    %67 = vector.load %arg1[%c0_117, %c2_118, %c6_119, %c0_120] : memref<1x9x9x128xbf16, #tpu.memory_space<vmem>>, vector<1x1x1x128xbf16>
    %68 = vector.shape_cast %67 : vector<1x1x1x128xbf16> to vector<1x128xbf16>
    %c0_121 = arith.constant 0 : index
    %c4_122 = arith.constant 4 : index
    %c2_123 = arith.constant 2 : index
    %c0_124 = arith.constant 0 : index
    %69 = vector.load %arg1[%c0_121, %c4_122, %c2_123, %c0_124] : memref<1x9x9x128xbf16, #tpu.memory_space<vmem>>, vector<1x1x1x128xbf16>
    %70 = vector.shape_cast %69 : vector<1x1x1x128xbf16> to vector<1x128xbf16>
    %c0_125 = arith.constant 0 : index
    %c4_126 = arith.constant 4 : index
    %c4_127 = arith.constant 4 : index
    %c0_128 = arith.constant 0 : index
    %71 = vector.load %arg1[%c0_125, %c4_126, %c4_127, %c0_128] : memref<1x9x9x128xbf16, #tpu.memory_space<vmem>>, vector<1x1x1x128xbf16>
    %72 = vector.shape_cast %71 : vector<1x1x1x128xbf16> to vector<1x128xbf16>
    %c0_129 = arith.constant 0 : index
    %c4_130 = arith.constant 4 : index
    %c6_131 = arith.constant 6 : index
    %c0_132 = arith.constant 0 : index
    %73 = vector.load %arg1[%c0_129, %c4_130, %c6_131, %c0_132] : memref<1x9x9x128xbf16, #tpu.memory_space<vmem>>, vector<1x1x1x128xbf16>
    %74 = vector.shape_cast %73 : vector<1x1x1x128xbf16> to vector<1x128xbf16>
    %c0_133 = arith.constant 0 : index
    %c6_134 = arith.constant 6 : index
    %c2_135 = arith.constant 2 : index
    %c0_136 = arith.constant 0 : index
    %75 = vector.load %arg1[%c0_133, %c6_134, %c2_135, %c0_136] : memref<1x9x9x128xbf16, #tpu.memory_space<vmem>>, vector<1x1x1x128xbf16>
    %76 = vector.shape_cast %75 : vector<1x1x1x128xbf16> to vector<1x128xbf16>
    %c0_137 = arith.constant 0 : index
    %c6_138 = arith.constant 6 : index
    %c4_139 = arith.constant 4 : index
    %c0_140 = arith.constant 0 : index
    %77 = vector.load %arg1[%c0_137, %c6_138, %c4_139, %c0_140] : memref<1x9x9x128xbf16, #tpu.memory_space<vmem>>, vector<1x1x1x128xbf16>
    %78 = vector.shape_cast %77 : vector<1x1x1x128xbf16> to vector<1x128xbf16>
    %c0_141 = arith.constant 0 : index
    %c6_142 = arith.constant 6 : index
    %c6_143 = arith.constant 6 : index
    %c0_144 = arith.constant 0 : index
    %79 = vector.load %arg1[%c0_141, %c6_142, %c6_143, %c0_144] : memref<1x9x9x128xbf16, #tpu.memory_space<vmem>>, vector<1x1x1x128xbf16>
    %80 = vector.shape_cast %79 : vector<1x1x1x128xbf16> to vector<1x128xbf16>
    %81 = tpu.concatenate %64, %66, %68, %70, %72, %74, %76, %78, %80 in 1 : vector<1x128xbf16>, vector<1x128xbf16>, vector<1x128xbf16>, vector<1x128xbf16>, vector<1x128xbf16>, vector<1x128xbf16>, vector<1x128xbf16>, vector<1x128xbf16>, vector<1x128xbf16> -> vector<1x1152xbf16>
    %82 = arith.extf %81 : vector<1x1152xbf16> to vector<1x1152xf32>
    %c3 = arith.constant 3 : index
    %c0_145 = arith.constant 0 : index
    %83 = vector.load %arg10[%c3, %c0_145] : memref<16x1152xf32, #tpu.memory_space<vmem>>, vector<1x1152xf32>
    tpu.vector_store %arg10[%c3, %c0_145], %82 {strides = array<i32>} : memref<16x1152xf32, #tpu.memory_space<vmem>>, vector<1x1152xf32>,
    %c0_146 = arith.constant 0 : index
    %c0_147 = arith.constant 0 : index
    %c1_148 = arith.constant 1 : index
    %c0_149 = arith.constant 0 : index
    %84 = vector.load %arg1[%c0_146, %c0_147, %c1_148, %c0_149] : memref<1x9x9x128xbf16, #tpu.memory_space<vmem>>, vector<1x1x1x128xbf16>
    %85 = vector.shape_cast %84 : vector<1x1x1x128xbf16> to vector<1x128xbf16>
    %c0_150 = arith.constant 0 : index
    %c0_151 = arith.constant 0 : index
    %c3_152 = arith.constant 3 : index
    %c0_153 = arith.constant 0 : index
    %86 = vector.load %arg1[%c0_150, %c0_151, %c3_152, %c0_153] : memref<1x9x9x128xbf16, #tpu.memory_space<vmem>>, vector<1x1x1x128xbf16>
    %87 = vector.shape_cast %86 : vector<1x1x1x128xbf16> to vector<1x128xbf16>
    %c0_154 = arith.constant 0 : index
    %c0_155 = arith.constant 0 : index
    %c5 = arith.constant 5 : index
    %c0_156 = arith.constant 0 : index
    %88 = vector.load %arg1[%c0_154, %c0_155, %c5, %c0_156] : memref<1x9x9x128xbf16, #tpu.memory_space<vmem>>, vector<1x1x1x128xbf16>
    %89 = vector.shape_cast %88 : vector<1x1x1x128xbf16> to vector<1x128xbf16>
    %c0_157 = arith.constant 0 : index
    %c2_158 = arith.constant 2 : index
    %c1_159 = arith.constant 1 : index
    %c0_160 = arith.constant 0 : index
    %90 = vector.load %arg1[%c0_157, %c2_158, %c1_159, %c0_160] : memref<1x9x9x128xbf16, #tpu.memory_space<vmem>>, vector<1x1x1x128xbf16>
    %91 = vector.shape_cast %90 : vector<1x1x1x128xbf16> to vector<1x128xbf16>
    %c0_161 = arith.constant 0 : index
    %c2_162 = arith.constant 2 : index
    %c3_163 = arith.constant 3 : index
    %c0_164 = arith.constant 0 : index
    %92 = vector.load %arg1[%c0_161, %c2_162, %c3_163, %c0_164] : memref<1x9x9x128xbf16, #tpu.memory_space<vmem>>, vector<1x1x1x128xbf16>
    %93 = vector.shape_cast %92 : vector<1x1x1x128xbf16> to vector<1x128xbf16>
    %c0_165 = arith.constant 0 : index
    %c2_166 = arith.constant 2 : index
    %c5_167 = arith.constant 5 : index
    %c0_168 = arith.constant 0 : index
    %94 = vector.load %arg1[%c0_165, %c2_166, %c5_167, %c0_168] : memref<1x9x9x128xbf16, #tpu.memory_space<vmem>>, vector<1x1x1x128xbf16>
    %95 = vector.shape_cast %94 : vector<1x1x1x128xbf16> to vector<1x128xbf16>
    %c0_169 = arith.constant 0 : index
    %c4_170 = arith.constant 4 : index
    %c1_171 = arith.constant 1 : index
    %c0_172 = arith.constant 0 : index
    %96 = vector.load %arg1[%c0_169, %c4_170, %c1_171, %c0_172] : memref<1x9x9x128xbf16, #tpu.memory_space<vmem>>, vector<1x1x1x128xbf16>
    %97 = vector.shape_cast %96 : vector<1x1x1x128xbf16> to vector<1x128xbf16>
    %c0_173 = arith.constant 0 : index
    %c4_174 = arith.constant 4 : index
    %c3_175 = arith.constant 3 : index
    %c0_176 = arith.constant 0 : index
    %98 = vector.load %arg1[%c0_173, %c4_174, %c3_175, %c0_176] : memref<1x9x9x128xbf16, #tpu.memory_space<vmem>>, vector<1x1x1x128xbf16>
    %99 = vector.shape_cast %98 : vector<1x1x1x128xbf16> to vector<1x128xbf16>
    %c0_177 = arith.constant 0 : index
    %c4_178 = arith.constant 4 : index
    %c5_179 = arith.constant 5 : index
    %c0_180 = arith.constant 0 : index
    %100 = vector.load %arg1[%c0_177, %c4_178, %c5_179, %c0_180] : memref<1x9x9x128xbf16, #tpu.memory_space<vmem>>, vector<1x1x1x128xbf16>
    %101 = vector.shape_cast %100 : vector<1x1x1x128xbf16> to vector<1x128xbf16>
    %102 = tpu.concatenate %85, %87, %89, %91, %93, %95, %97, %99, %101 in 1 : vector<1x128xbf16>, vector<1x128xbf16>, vector<1x128xbf16>, vector<1x128xbf16>, vector<1x128xbf16>, vector<1x128xbf16>, vector<1x128xbf16>, vector<1x128xbf16>, vector<1x128xbf16> -> vector<1x1152xbf16>
    %103 = arith.extf %102 : vector<1x1152xbf16> to vector<1x1152xf32>
    %c4_181 = arith.constant 4 : index
    %c0_182 = arith.constant 0 : index
    %104 = vector.load %arg10[%c4_181, %c0_182] : memref<16x1152xf32, #tpu.memory_space<vmem>>, vector<1x1152xf32>
    tpu.vector_store %arg10[%c4_181, %c0_182], %103 {strides = array<i32>} : memref<16x1152xf32, #tpu.memory_space<vmem>>, vector<1x1152xf32>,
    %c0_183 = arith.constant 0 : index
    %c0_184 = arith.constant 0 : index
    %c3_185 = arith.constant 3 : index
    %c0_186 = arith.constant 0 : index
    %105 = vector.load %arg1[%c0_183, %c0_184, %c3_185, %c0_186] : memref<1x9x9x128xbf16, #tpu.memory_space<vmem>>, vector<1x1x1x128xbf16>
    %106 = vector.shape_cast %105 : vector<1x1x1x128xbf16> to vector<1x128xbf16>
    %c0_187 = arith.constant 0 : index
    %c0_188 = arith.constant 0 : index
    %c5_189 = arith.constant 5 : index
    %c0_190 = arith.constant 0 : index
    %107 = vector.load %arg1[%c0_187, %c0_188, %c5_189, %c0_190] : memref<1x9x9x128xbf16, #tpu.memory_space<vmem>>, vector<1x1x1x128xbf16>
    %108 = vector.shape_cast %107 : vector<1x1x1x128xbf16> to vector<1x128xbf16>
    %c0_191 = arith.constant 0 : index
    %c0_192 = arith.constant 0 : index
    %c7 = arith.constant 7 : index
    %c0_193 = arith.constant 0 : index
    %109 = vector.load %arg1[%c0_191, %c0_192, %c7, %c0_193] : memref<1x9x9x128xbf16, #tpu.memory_space<vmem>>, vector<1x1x1x128xbf16>
    %110 = vector.shape_cast %109 : vector<1x1x1x128xbf16> to vector<1x128xbf16>
    %c0_194 = arith.constant 0 : index
    %c2_195 = arith.constant 2 : index
    %c3_196 = arith.constant 3 : index
    %c0_197 = arith.constant 0 : index
    %111 = vector.load %arg1[%c0_194, %c2_195, %c3_196, %c0_197] : memref<1x9x9x128xbf16, #tpu.memory_space<vmem>>, vector<1x1x1x128xbf16>
    %112 = vector.shape_cast %111 : vector<1x1x1x128xbf16> to vector<1x128xbf16>
    %c0_198 = arith.constant 0 : index
    %c2_199 = arith.constant 2 : index
    %c5_200 = arith.constant 5 : index
    %c0_201 = arith.constant 0 : index
    %113 = vector.load %arg1[%c0_198, %c2_199, %c5_200, %c0_201] : memref<1x9x9x128xbf16, #tpu.memory_space<vmem>>, vector<1x1x1x128xbf16>
    %114 = vector.shape_cast %113 : vector<1x1x1x128xbf16> to vector<1x128xbf16>
    %c0_202 = arith.constant 0 : index
    %c2_203 = arith.constant 2 : index
    %c7_204 = arith.constant 7 : index
    %c0_205 = arith.constant 0 : index
    %115 = vector.load %arg1[%c0_202, %c2_203, %c7_204, %c0_205] : memref<1x9x9x128xbf16, #tpu.memory_space<vmem>>, vector<1x1x1x128xbf16>
    %116 = vector.shape_cast %115 : vector<1x1x1x128xbf16> to vector<1x128xbf16>
    %c0_206 = arith.constant 0 : index
    %c4_207 = arith.constant 4 : index
    %c3_208 = arith.constant 3 : index
    %c0_209 = arith.constant 0 : index
    %117 = vector.load %arg1[%c0_206, %c4_207, %c3_208, %c0_209] : memref<1x9x9x128xbf16, #tpu.memory_space<vmem>>, vector<1x1x1x128xbf16>
    %118 = vector.shape_cast %117 : vector<1x1x1x128xbf16> to vector<1x128xbf16>
    %c0_210 = arith.constant 0 : index
    %c4_211 = arith.constant 4 : index
    %c5_212 = arith.constant 5 : index
    %c0_213 = arith.constant 0 : index
    %119 = vector.load %arg1[%c0_210, %c4_211, %c5_212, %c0_213] : memref<1x9x9x128xbf16, #tpu.memory_space<vmem>>, vector<1x1x1x128xbf16>
    %120 = vector.shape_cast %119 : vector<1x1x1x128xbf16> to vector<1x128xbf16>
    %c0_214 = arith.constant 0 : index
    %c4_215 = arith.constant 4 : index
    %c7_216 = arith.constant 7 : index
    %c0_217 = arith.constant 0 : index
    %121 = vector.load %arg1[%c0_214, %c4_215, %c7_216, %c0_217] : memref<1x9x9x128xbf16, #tpu.memory_space<vmem>>, vector<1x1x1x128xbf16>
    %122 = vector.shape_cast %121 : vector<1x1x1x128xbf16> to vector<1x128xbf16>
    %123 = tpu.concatenate %106, %108, %110, %112, %114, %116, %118, %120, %122 in 1 : vector<1x128xbf16>, vector<1x128xbf16>, vector<1x128xbf16>, vector<1x128xbf16>, vector<1x128xbf16>, vector<1x128xbf16>, vector<1x128xbf16>, vector<1x128xbf16>, vector<1x128xbf16> -> vector<1x1152xbf16>
    %124 = arith.extf %123 : vector<1x1152xbf16> to vector<1x1152xf32>
    %c5_218 = arith.constant 5 : index
    %c0_219 = arith.constant 0 : index
    %125 = vector.load %arg10[%c5_218, %c0_219] : memref<16x1152xf32, #tpu.memory_space<vmem>>, vector<1x1152xf32>
    tpu.vector_store %arg10[%c5_218, %c0_219], %124 {strides = array<i32>} : memref<16x1152xf32, #tpu.memory_space<vmem>>, vector<1x1152xf32>,
    %c0_220 = arith.constant 0 : index
    %c2_221 = arith.constant 2 : index
    %c1_222 = arith.constant 1 : index
    %c0_223 = arith.constant 0 : index
    %126 = vector.load %arg1[%c0_220, %c2_221, %c1_222, %c0_223] : memref<1x9x9x128xbf16, #tpu.memory_space<vmem>>, vector<1x1x1x128xbf16>
    %127 = vector.shape_cast %126 : vector<1x1x1x128xbf16> to vector<1x128xbf16>
    %c0_224 = arith.constant 0 : index
    %c2_225 = arith.constant 2 : index
    %c3_226 = arith.constant 3 : index
    %c0_227 = arith.constant 0 : index
    %128 = vector.load %arg1[%c0_224, %c2_225, %c3_226, %c0_227] : memref<1x9x9x128xbf16, #tpu.memory_space<vmem>>, vector<1x1x1x128xbf16>
    %129 = vector.shape_cast %128 : vector<1x1x1x128xbf16> to vector<1x128xbf16>
    %c0_228 = arith.constant 0 : index
    %c2_229 = arith.constant 2 : index
    %c5_230 = arith.constant 5 : index
    %c0_231 = arith.constant 0 : index
    %130 = vector.load %arg1[%c0_228, %c2_229, %c5_230, %c0_231] : memref<1x9x9x128xbf16, #tpu.memory_space<vmem>>, vector<1x1x1x128xbf16>
    %131 = vector.shape_cast %130 : vector<1x1x1x128xbf16> to vector<1x128xbf16>
    %c0_232 = arith.constant 0 : index
    %c4_233 = arith.constant 4 : index
    %c1_234 = arith.constant 1 : index
    %c0_235 = arith.constant 0 : index
    %132 = vector.load %arg1[%c0_232, %c4_233, %c1_234, %c0_235] : memref<1x9x9x128xbf16, #tpu.memory_space<vmem>>, vector<1x1x1x128xbf16>
    %133 = vector.shape_cast %132 : vector<1x1x1x128xbf16> to vector<1x128xbf16>
    %c0_236 = arith.constant 0 : index
    %c4_237 = arith.constant 4 : index
    %c3_238 = arith.constant 3 : index
    %c0_239 = arith.constant 0 : index
    %134 = vector.load %arg1[%c0_236, %c4_237, %c3_238, %c0_239] : memref<1x9x9x128xbf16, #tpu.memory_space<vmem>>, vector<1x1x1x128xbf16>
    %135 = vector.shape_cast %134 : vector<1x1x1x128xbf16> to vector<1x128xbf16>
    %c0_240 = arith.constant 0 : index
    %c4_241 = arith.constant 4 : index
    %c5_242 = arith.constant 5 : index
    %c0_243 = arith.constant 0 : index
    %136 = vector.load %arg1[%c0_240, %c4_241, %c5_242, %c0_243] : memref<1x9x9x128xbf16, #tpu.memory_space<vmem>>, vector<1x1x1x128xbf16>
    %137 = vector.shape_cast %136 : vector<1x1x1x128xbf16> to vector<1x128xbf16>
    %c0_244 = arith.constant 0 : index
    %c6_245 = arith.constant 6 : index
    %c1_246 = arith.constant 1 : index
    %c0_247 = arith.constant 0 : index
    %138 = vector.load %arg1[%c0_244, %c6_245, %c1_246, %c0_247] : memref<1x9x9x128xbf16, #tpu.memory_space<vmem>>, vector<1x1x1x128xbf16>
    %139 = vector.shape_cast %138 : vector<1x1x1x128xbf16> to vector<1x128xbf16>
    %c0_248 = arith.constant 0 : index
    %c6_249 = arith.constant 6 : index
    %c3_250 = arith.constant 3 : index
    %c0_251 = arith.constant 0 : index
    %140 = vector.load %arg1[%c0_248, %c6_249, %c3_250, %c0_251] : memref<1x9x9x128xbf16, #tpu.memory_space<vmem>>, vector<1x1x1x128xbf16>
    %141 = vector.shape_cast %140 : vector<1x1x1x128xbf16> to vector<1x128xbf16>
    %c0_252 = arith.constant 0 : index
    %c6_253 = arith.constant 6 : index
    %c5_254 = arith.constant 5 : index
    %c0_255 = arith.constant 0 : index
    %142 = vector.load %arg1[%c0_252, %c6_253, %c5_254, %c0_255] : memref<1x9x9x128xbf16, #tpu.memory_space<vmem>>, vector<1x1x1x128xbf16>
    %143 = vector.shape_cast %142 : vector<1x1x1x128xbf16> to vector<1x128xbf16>
    %144 = tpu.concatenate %127, %129, %131, %133, %135, %137, %139, %141, %143 in 1 : vector<1x128xbf16>, vector<1x128xbf16>, vector<1x128xbf16>, vector<1x128xbf16>, vector<1x128xbf16>, vector<1x128xbf16>, vector<1x128xbf16>, vector<1x128xbf16>, vector<1x128xbf16> -> vector<1x1152xbf16>
    %145 = arith.extf %144 : vector<1x1152xbf16> to vector<1x1152xf32>
    %c6_256 = arith.constant 6 : index
    %c0_257 = arith.constant 0 : index
    %146 = vector.load %arg10[%c6_256, %c0_257] : memref<16x1152xf32, #tpu.memory_space<vmem>>, vector<1x1152xf32>
    tpu.vector_store %arg10[%c6_256, %c0_257], %145 {strides = array<i32>} : memref<16x1152xf32, #tpu.memory_space<vmem>>, vector<1x1152xf32>,
    %c0_258 = arith.constant 0 : index
    %c2_259 = arith.constant 2 : index
    %c3_260 = arith.constant 3 : index
    %c0_261 = arith.constant 0 : index
    %147 = vector.load %arg1[%c0_258, %c2_259, %c3_260, %c0_261] : memref<1x9x9x128xbf16, #tpu.memory_space<vmem>>, vector<1x1x1x128xbf16>
    %148 = vector.shape_cast %147 : vector<1x1x1x128xbf16> to vector<1x128xbf16>
    %c0_262 = arith.constant 0 : index
    %c2_263 = arith.constant 2 : index
    %c5_264 = arith.constant 5 : index
    %c0_265 = arith.constant 0 : index
    %149 = vector.load %arg1[%c0_262, %c2_263, %c5_264, %c0_265] : memref<1x9x9x128xbf16, #tpu.memory_space<vmem>>, vector<1x1x1x128xbf16>
    %150 = vector.shape_cast %149 : vector<1x1x1x128xbf16> to vector<1x128xbf16>
    %c0_266 = arith.constant 0 : index
    %c2_267 = arith.constant 2 : index
    %c7_268 = arith.constant 7 : index
    %c0_269 = arith.constant 0 : index
    %151 = vector.load %arg1[%c0_266, %c2_267, %c7_268, %c0_269] : memref<1x9x9x128xbf16, #tpu.memory_space<vmem>>, vector<1x1x1x128xbf16>
    %152 = vector.shape_cast %151 : vector<1x1x1x128xbf16> to vector<1x128xbf16>
    %c0_270 = arith.constant 0 : index
    %c4_271 = arith.constant 4 : index
    %c3_272 = arith.constant 3 : index
    %c0_273 = arith.constant 0 : index
    %153 = vector.load %arg1[%c0_270, %c4_271, %c3_272, %c0_273] : memref<1x9x9x128xbf16, #tpu.memory_space<vmem>>, vector<1x1x1x128xbf16>
    %154 = vector.shape_cast %153 : vector<1x1x1x128xbf16> to vector<1x128xbf16>
    %c0_274 = arith.constant 0 : index
    %c4_275 = arith.constant 4 : index
    %c5_276 = arith.constant 5 : index
    %c0_277 = arith.constant 0 : index
    %155 = vector.load %arg1[%c0_274, %c4_275, %c5_276, %c0_277] : memref<1x9x9x128xbf16, #tpu.memory_space<vmem>>, vector<1x1x1x128xbf16>
    %156 = vector.shape_cast %155 : vector<1x1x1x128xbf16> to vector<1x128xbf16>
    %c0_278 = arith.constant 0 : index
    %c4_279 = arith.constant 4 : index
    %c7_280 = arith.constant 7 : index
    %c0_281 = arith.constant 0 : index
    %157 = vector.load %arg1[%c0_278, %c4_279, %c7_280, %c0_281] : memref<1x9x9x128xbf16, #tpu.memory_space<vmem>>, vector<1x1x1x128xbf16>
    %158 = vector.shape_cast %157 : vector<1x1x1x128xbf16> to vector<1x128xbf16>
    %c0_282 = arith.constant 0 : index
    %c6_283 = arith.constant 6 : index
    %c3_284 = arith.constant 3 : index
    %c0_285 = arith.constant 0 : index
    %159 = vector.load %arg1[%c0_282, %c6_283, %c3_284, %c0_285] : memref<1x9x9x128xbf16, #tpu.memory_space<vmem>>, vector<1x1x1x128xbf16>
    %160 = vector.shape_cast %159 : vector<1x1x1x128xbf16> to vector<1x128xbf16>
    %c0_286 = arith.constant 0 : index
    %c6_287 = arith.constant 6 : index
    %c5_288 = arith.constant 5 : index
    %c0_289 = arith.constant 0 : index
    %161 = vector.load %arg1[%c0_286, %c6_287, %c5_288, %c0_289] : memref<1x9x9x128xbf16, #tpu.memory_space<vmem>>, vector<1x1x1x128xbf16>
    %162 = vector.shape_cast %161 : vector<1x1x1x128xbf16> to vector<1x128xbf16>
    %c0_290 = arith.constant 0 : index
    %c6_291 = arith.constant 6 : index
    %c7_292 = arith.constant 7 : index
    %c0_293 = arith.constant 0 : index
    %163 = vector.load %arg1[%c0_290, %c6_291, %c7_292, %c0_293] : memref<1x9x9x128xbf16, #tpu.memory_space<vmem>>, vector<1x1x1x128xbf16>
    %164 = vector.shape_cast %163 : vector<1x1x1x128xbf16> to vector<1x128xbf16>
    %165 = tpu.concatenate %148, %150, %152, %154, %156, %158, %160, %162, %164 in 1 : vector<1x128xbf16>, vector<1x128xbf16>, vector<1x128xbf16>, vector<1x128xbf16>, vector<1x128xbf16>, vector<1x128xbf16>, vector<1x128xbf16>, vector<1x128xbf16>, vector<1x128xbf16> -> vector<1x1152xbf16>
    %166 = arith.extf %165 : vector<1x1152xbf16> to vector<1x1152xf32>
    %c7_294 = arith.constant 7 : index
    %c0_295 = arith.constant 0 : index
    %167 = vector.load %arg10[%c7_294, %c0_295] : memref<16x1152xf32, #tpu.memory_space<vmem>>, vector<1x1152xf32>
    tpu.vector_store %arg10[%c7_294, %c0_295], %166 {strides = array<i32>} : memref<16x1152xf32, #tpu.memory_space<vmem>>, vector<1x1152xf32>,
    %c0_296 = arith.constant 0 : index
    %c1_297 = arith.constant 1 : index
    %c0_298 = arith.constant 0 : index
    %c0_299 = arith.constant 0 : index
    %168 = vector.load %arg1[%c0_296, %c1_297, %c0_298, %c0_299] : memref<1x9x9x128xbf16, #tpu.memory_space<vmem>>, vector<1x1x1x128xbf16>
    %169 = vector.shape_cast %168 : vector<1x1x1x128xbf16> to vector<1x128xbf16>
    %c0_300 = arith.constant 0 : index
    %c1_301 = arith.constant 1 : index
    %c2_302 = arith.constant 2 : index
    %c0_303 = arith.constant 0 : index
    %170 = vector.load %arg1[%c0_300, %c1_301, %c2_302, %c0_303] : memref<1x9x9x128xbf16, #tpu.memory_space<vmem>>, vector<1x1x1x128xbf16>
    %171 = vector.shape_cast %170 : vector<1x1x1x128xbf16> to vector<1x128xbf16>
    %c0_304 = arith.constant 0 : index
    %c1_305 = arith.constant 1 : index
    %c4_306 = arith.constant 4 : index
    %c0_307 = arith.constant 0 : index
    %172 = vector.load %arg1[%c0_304, %c1_305, %c4_306, %c0_307] : memref<1x9x9x128xbf16, #tpu.memory_space<vmem>>, vector<1x1x1x128xbf16>
    %173 = vector.shape_cast %172 : vector<1x1x1x128xbf16> to vector<1x128xbf16>
    %c0_308 = arith.constant 0 : index
    %c3_309 = arith.constant 3 : index
    %c0_310 = arith.constant 0 : index
    %c0_311 = arith.constant 0 : index
    %174 = vector.load %arg1[%c0_308, %c3_309, %c0_310, %c0_311] : memref<1x9x9x128xbf16, #tpu.memory_space<vmem>>, vector<1x1x1x128xbf16>
    %175 = vector.shape_cast %174 : vector<1x1x1x128xbf16> to vector<1x128xbf16>
    %c0_312 = arith.constant 0 : index
    %c3_313 = arith.constant 3 : index
    %c2_314 = arith.constant 2 : index
    %c0_315 = arith.constant 0 : index
    %176 = vector.load %arg1[%c0_312, %c3_313, %c2_314, %c0_315] : memref<1x9x9x128xbf16, #tpu.memory_space<vmem>>, vector<1x1x1x128xbf16>
    %177 = vector.shape_cast %176 : vector<1x1x1x128xbf16> to vector<1x128xbf16>
    %c0_316 = arith.constant 0 : index
    %c3_317 = arith.constant 3 : index
    %c4_318 = arith.constant 4 : index
    %c0_319 = arith.constant 0 : index
    %178 = vector.load %arg1[%c0_316, %c3_317, %c4_318, %c0_319] : memref<1x9x9x128xbf16, #tpu.memory_space<vmem>>, vector<1x1x1x128xbf16>
    %179 = vector.shape_cast %178 : vector<1x1x1x128xbf16> to vector<1x128xbf16>
    %c0_320 = arith.constant 0 : index
    %c5_321 = arith.constant 5 : index
    %c0_322 = arith.constant 0 : index
    %c0_323 = arith.constant 0 : index
    %180 = vector.load %arg1[%c0_320, %c5_321, %c0_322, %c0_323] : memref<1x9x9x128xbf16, #tpu.memory_space<vmem>>, vector<1x1x1x128xbf16>
    %181 = vector.shape_cast %180 : vector<1x1x1x128xbf16> to vector<1x128xbf16>
    %c0_324 = arith.constant 0 : index
    %c5_325 = arith.constant 5 : index
    %c2_326 = arith.constant 2 : index
    %c0_327 = arith.constant 0 : index
    %182 = vector.load %arg1[%c0_324, %c5_325, %c2_326, %c0_327] : memref<1x9x9x128xbf16, #tpu.memory_space<vmem>>, vector<1x1x1x128xbf16>
    %183 = vector.shape_cast %182 : vector<1x1x1x128xbf16> to vector<1x128xbf16>
    %c0_328 = arith.constant 0 : index
    %c5_329 = arith.constant 5 : index
    %c4_330 = arith.constant 4 : index
    %c0_331 = arith.constant 0 : index
    %184 = vector.load %arg1[%c0_328, %c5_329, %c4_330, %c0_331] : memref<1x9x9x128xbf16, #tpu.memory_space<vmem>>, vector<1x1x1x128xbf16>
    %185 = vector.shape_cast %184 : vector<1x1x1x128xbf16> to vector<1x128xbf16>
    %186 = tpu.concatenate %169, %171, %173, %175, %177, %179, %181, %183, %185 in 1 : vector<1x128xbf16>, vector<1x128xbf16>, vector<1x128xbf16>, vector<1x128xbf16>, vector<1x128xbf16>, vector<1x128xbf16>, vector<1x128xbf16>, vector<1x128xbf16>, vector<1x128xbf16> -> vector<1x1152xbf16>
    %187 = arith.extf %186 : vector<1x1152xbf16> to vector<1x1152xf32>
    %c8 = arith.constant 8 : index
    %c0_332 = arith.constant 0 : index
    %188 = vector.load %arg10[%c8, %c0_332] : memref<16x1152xf32, #tpu.memory_space<vmem>>, vector<1x1152xf32>
    tpu.vector_store %arg10[%c8, %c0_332], %187 {strides = array<i32>} : memref<16x1152xf32, #tpu.memory_space<vmem>>, vector<1x1152xf32>,
    %c0_333 = arith.constant 0 : index
    %c1_334 = arith.constant 1 : index
    %c2_335 = arith.constant 2 : index
    %c0_336 = arith.constant 0 : index
    %189 = vector.load %arg1[%c0_333, %c1_334, %c2_335, %c0_336] : memref<1x9x9x128xbf16, #tpu.memory_space<vmem>>, vector<1x1x1x128xbf16>
    %190 = vector.shape_cast %189 : vector<1x1x1x128xbf16> to vector<1x128xbf16>
    %c0_337 = arith.constant 0 : index
    %c1_338 = arith.constant 1 : index
    %c4_339 = arith.constant 4 : index
    %c0_340 = arith.constant 0 : index
    %191 = vector.load %arg1[%c0_337, %c1_338, %c4_339, %c0_340] : memref<1x9x9x128xbf16, #tpu.memory_space<vmem>>, vector<1x1x1x128xbf16>
    %192 = vector.shape_cast %191 : vector<1x1x1x128xbf16> to vector<1x128xbf16>
    %c0_341 = arith.constant 0 : index
    %c1_342 = arith.constant 1 : index
    %c6_343 = arith.constant 6 : index
    %c0_344 = arith.constant 0 : index
    %193 = vector.load %arg1[%c0_341, %c1_342, %c6_343, %c0_344] : memref<1x9x9x128xbf16, #tpu.memory_space<vmem>>, vector<1x1x1x128xbf16>
    %194 = vector.shape_cast %193 : vector<1x1x1x128xbf16> to vector<1x128xbf16>
    %c0_345 = arith.constant 0 : index
    %c3_346 = arith.constant 3 : index
    %c2_347 = arith.constant 2 : index
    %c0_348 = arith.constant 0 : index
    %195 = vector.load %arg1[%c0_345, %c3_346, %c2_347, %c0_348] : memref<1x9x9x128xbf16, #tpu.memory_space<vmem>>, vector<1x1x1x128xbf16>
    %196 = vector.shape_cast %195 : vector<1x1x1x128xbf16> to vector<1x128xbf16>
    %c0_349 = arith.constant 0 : index
    %c3_350 = arith.constant 3 : index
    %c4_351 = arith.constant 4 : index
    %c0_352 = arith.constant 0 : index
    %197 = vector.load %arg1[%c0_349, %c3_350, %c4_351, %c0_352] : memref<1x9x9x128xbf16, #tpu.memory_space<vmem>>, vector<1x1x1x128xbf16>
    %198 = vector.shape_cast %197 : vector<1x1x1x128xbf16> to vector<1x128xbf16>
    %c0_353 = arith.constant 0 : index
    %c3_354 = arith.constant 3 : index
    %c6_355 = arith.constant 6 : index
    %c0_356 = arith.constant 0 : index
    %199 = vector.load %arg1[%c0_353, %c3_354, %c6_355, %c0_356] : memref<1x9x9x128xbf16, #tpu.memory_space<vmem>>, vector<1x1x1x128xbf16>
    %200 = vector.shape_cast %199 : vector<1x1x1x128xbf16> to vector<1x128xbf16>
    %c0_357 = arith.constant 0 : index
    %c5_358 = arith.constant 5 : index
    %c2_359 = arith.constant 2 : index
    %c0_360 = arith.constant 0 : index
    %201 = vector.load %arg1[%c0_357, %c5_358, %c2_359, %c0_360] : memref<1x9x9x128xbf16, #tpu.memory_space<vmem>>, vector<1x1x1x128xbf16>
    %202 = vector.shape_cast %201 : vector<1x1x1x128xbf16> to vector<1x128xbf16>
    %c0_361 = arith.constant 0 : index
    %c5_362 = arith.constant 5 : index
    %c4_363 = arith.constant 4 : index
    %c0_364 = arith.constant 0 : index
    %203 = vector.load %arg1[%c0_361, %c5_362, %c4_363, %c0_364] : memref<1x9x9x128xbf16, #tpu.memory_space<vmem>>, vector<1x1x1x128xbf16>
    %204 = vector.shape_cast %203 : vector<1x1x1x128xbf16> to vector<1x128xbf16>
    %c0_365 = arith.constant 0 : index
    %c5_366 = arith.constant 5 : index
    %c6_367 = arith.constant 6 : index
    %c0_368 = arith.constant 0 : index
    %205 = vector.load %arg1[%c0_365, %c5_366, %c6_367, %c0_368] : memref<1x9x9x128xbf16, #tpu.memory_space<vmem>>, vector<1x1x1x128xbf16>
    %206 = vector.shape_cast %205 : vector<1x1x1x128xbf16> to vector<1x128xbf16>
    %207 = tpu.concatenate %190, %192, %194, %196, %198, %200, %202, %204, %206 in 1 : vector<1x128xbf16>, vector<1x128xbf16>, vector<1x128xbf16>, vector<1x128xbf16>, vector<1x128xbf16>, vector<1x128xbf16>, vector<1x128xbf16>, vector<1x128xbf16>, vector<1x128xbf16> -> vector<1x1152xbf16>
    %208 = arith.extf %207 : vector<1x1152xbf16> to vector<1x1152xf32>
    %c9 = arith.constant 9 : index
    %c0_369 = arith.constant 0 : index
    %209 = vector.load %arg10[%c9, %c0_369] : memref<16x1152xf32, #tpu.memory_space<vmem>>, vector<1x1152xf32>
    tpu.vector_store %arg10[%c9, %c0_369], %208 {strides = array<i32>} : memref<16x1152xf32, #tpu.memory_space<vmem>>, vector<1x1152xf32>,
    %c0_370 = arith.constant 0 : index
    %c3_371 = arith.constant 3 : index
    %c0_372 = arith.constant 0 : index
    %c0_373 = arith.constant 0 : index
    %210 = vector.load %arg1[%c0_370, %c3_371, %c0_372, %c0_373] : memref<1x9x9x128xbf16, #tpu.memory_space<vmem>>, vector<1x1x1x128xbf16>
    %211 = vector.shape_cast %210 : vector<1x1x1x128xbf16> to vector<1x128xbf16>
    %c0_374 = arith.constant 0 : index
    %c3_375 = arith.constant 3 : index
    %c2_376 = arith.constant 2 : index
    %c0_377 = arith.constant 0 : index
    %212 = vector.load %arg1[%c0_374, %c3_375, %c2_376, %c0_377] : memref<1x9x9x128xbf16, #tpu.memory_space<vmem>>, vector<1x1x1x128xbf16>
    %213 = vector.shape_cast %212 : vector<1x1x1x128xbf16> to vector<1x128xbf16>
    %c0_378 = arith.constant 0 : index
    %c3_379 = arith.constant 3 : index
    %c4_380 = arith.constant 4 : index
    %c0_381 = arith.constant 0 : index
    %214 = vector.load %arg1[%c0_378, %c3_379, %c4_380, %c0_381] : memref<1x9x9x128xbf16, #tpu.memory_space<vmem>>, vector<1x1x1x128xbf16>
    %215 = vector.shape_cast %214 : vector<1x1x1x128xbf16> to vector<1x128xbf16>
    %c0_382 = arith.constant 0 : index
    %c5_383 = arith.constant 5 : index
    %c0_384 = arith.constant 0 : index
    %c0_385 = arith.constant 0 : index
    %216 = vector.load %arg1[%c0_382, %c5_383, %c0_384, %c0_385] : memref<1x9x9x128xbf16, #tpu.memory_space<vmem>>, vector<1x1x1x128xbf16>
    %217 = vector.shape_cast %216 : vector<1x1x1x128xbf16> to vector<1x128xbf16>
    %c0_386 = arith.constant 0 : index
    %c5_387 = arith.constant 5 : index
    %c2_388 = arith.constant 2 : index
    %c0_389 = arith.constant 0 : index
    %218 = vector.load %arg1[%c0_386, %c5_387, %c2_388, %c0_389] : memref<1x9x9x128xbf16, #tpu.memory_space<vmem>>, vector<1x1x1x128xbf16>
    %219 = vector.shape_cast %218 : vector<1x1x1x128xbf16> to vector<1x128xbf16>
    %c0_390 = arith.constant 0 : index
    %c5_391 = arith.constant 5 : index
    %c4_392 = arith.constant 4 : index
    %c0_393 = arith.constant 0 : index
    %220 = vector.load %arg1[%c0_390, %c5_391, %c4_392, %c0_393] : memref<1x9x9x128xbf16, #tpu.memory_space<vmem>>, vector<1x1x1x128xbf16>
    %221 = vector.shape_cast %220 : vector<1x1x1x128xbf16> to vector<1x128xbf16>
    %c0_394 = arith.constant 0 : index
    %c7_395 = arith.constant 7 : index
    %c0_396 = arith.constant 0 : index
    %c0_397 = arith.constant 0 : index
    %222 = vector.load %arg1[%c0_394, %c7_395, %c0_396, %c0_397] : memref<1x9x9x128xbf16, #tpu.memory_space<vmem>>, vector<1x1x1x128xbf16>
    %223 = vector.shape_cast %222 : vector<1x1x1x128xbf16> to vector<1x128xbf16>
    %c0_398 = arith.constant 0 : index
    %c7_399 = arith.constant 7 : index
    %c2_400 = arith.constant 2 : index
    %c0_401 = arith.constant 0 : index
    %224 = vector.load %arg1[%c0_398, %c7_399, %c2_400, %c0_401] : memref<1x9x9x128xbf16, #tpu.memory_space<vmem>>, vector<1x1x1x128xbf16>
    %225 = vector.shape_cast %224 : vector<1x1x1x128xbf16> to vector<1x128xbf16>
    %c0_402 = arith.constant 0 : index
    %c7_403 = arith.constant 7 : index
    %c4_404 = arith.constant 4 : index
    %c0_405 = arith.constant 0 : index
    %226 = vector.load %arg1[%c0_402, %c7_403, %c4_404, %c0_405] : memref<1x9x9x128xbf16, #tpu.memory_space<vmem>>, vector<1x1x1x128xbf16>
    %227 = vector.shape_cast %226 : vector<1x1x1x128xbf16> to vector<1x128xbf16>
    %228 = tpu.concatenate %211, %213, %215, %217, %219, %221, %223, %225, %227 in 1 : vector<1x128xbf16>, vector<1x128xbf16>, vector<1x128xbf16>, vector<1x128xbf16>, vector<1x128xbf16>, vector<1x128xbf16>, vector<1x128xbf16>, vector<1x128xbf16>, vector<1x128xbf16> -> vector<1x1152xbf16>
    %229 = arith.extf %228 : vector<1x1152xbf16> to vector<1x1152xf32>
    %c10 = arith.constant 10 : index
    %c0_406 = arith.constant 0 : index
    %230 = vector.load %arg10[%c10, %c0_406] : memref<16x1152xf32, #tpu.memory_space<vmem>>, vector<1x1152xf32>
    tpu.vector_store %arg10[%c10, %c0_406], %229 {strides = array<i32>} : memref<16x1152xf32, #tpu.memory_space<vmem>>, vector<1x1152xf32>,
    %c0_407 = arith.constant 0 : index
    %c3_408 = arith.constant 3 : index
    %c2_409 = arith.constant 2 : index
    %c0_410 = arith.constant 0 : index
    %231 = vector.load %arg1[%c0_407, %c3_408, %c2_409, %c0_410] : memref<1x9x9x128xbf16, #tpu.memory_space<vmem>>, vector<1x1x1x128xbf16>
    %232 = vector.shape_cast %231 : vector<1x1x1x128xbf16> to vector<1x128xbf16>
    %c0_411 = arith.constant 0 : index
    %c3_412 = arith.constant 3 : index
    %c4_413 = arith.constant 4 : index
    %c0_414 = arith.constant 0 : index
    %233 = vector.load %arg1[%c0_411, %c3_412, %c4_413, %c0_414] : memref<1x9x9x128xbf16, #tpu.memory_space<vmem>>, vector<1x1x1x128xbf16>
    %234 = vector.shape_cast %233 : vector<1x1x1x128xbf16> to vector<1x128xbf16>
    %c0_415 = arith.constant 0 : index
    %c3_416 = arith.constant 3 : index
    %c6_417 = arith.constant 6 : index
    %c0_418 = arith.constant 0 : index
    %235 = vector.load %arg1[%c0_415, %c3_416, %c6_417, %c0_418] : memref<1x9x9x128xbf16, #tpu.memory_space<vmem>>, vector<1x1x1x128xbf16>
    %236 = vector.shape_cast %235 : vector<1x1x1x128xbf16> to vector<1x128xbf16>
    %c0_419 = arith.constant 0 : index
    %c5_420 = arith.constant 5 : index
    %c2_421 = arith.constant 2 : index
    %c0_422 = arith.constant 0 : index
    %237 = vector.load %arg1[%c0_419, %c5_420, %c2_421, %c0_422] : memref<1x9x9x128xbf16, #tpu.memory_space<vmem>>, vector<1x1x1x128xbf16>
    %238 = vector.shape_cast %237 : vector<1x1x1x128xbf16> to vector<1x128xbf16>
    %c0_423 = arith.constant 0 : index
    %c5_424 = arith.constant 5 : index
    %c4_425 = arith.constant 4 : index
    %c0_426 = arith.constant 0 : index
    %239 = vector.load %arg1[%c0_423, %c5_424, %c4_425, %c0_426] : memref<1x9x9x128xbf16, #tpu.memory_space<vmem>>, vector<1x1x1x128xbf16>
    %240 = vector.shape_cast %239 : vector<1x1x1x128xbf16> to vector<1x128xbf16>
    %c0_427 = arith.constant 0 : index
    %c5_428 = arith.constant 5 : index
    %c6_429 = arith.constant 6 : index
    %c0_430 = arith.constant 0 : index
    %241 = vector.load %arg1[%c0_427, %c5_428, %c6_429, %c0_430] : memref<1x9x9x128xbf16, #tpu.memory_space<vmem>>, vector<1x1x1x128xbf16>
    %242 = vector.shape_cast %241 : vector<1x1x1x128xbf16> to vector<1x128xbf16>
    %c0_431 = arith.constant 0 : index
    %c7_432 = arith.constant 7 : index
    %c2_433 = arith.constant 2 : index
    %c0_434 = arith.constant 0 : index
    %243 = vector.load %arg1[%c0_431, %c7_432, %c2_433, %c0_434] : memref<1x9x9x128xbf16, #tpu.memory_space<vmem>>, vector<1x1x1x128xbf16>
    %244 = vector.shape_cast %243 : vector<1x1x1x128xbf16> to vector<1x128xbf16>
    %c0_435 = arith.constant 0 : index
    %c7_436 = arith.constant 7 : index
    %c4_437 = arith.constant 4 : index
    %c0_438 = arith.constant 0 : index
    %245 = vector.load %arg1[%c0_435, %c7_436, %c4_437, %c0_438] : memref<1x9x9x128xbf16, #tpu.memory_space<vmem>>, vector<1x1x1x128xbf16>
    %246 = vector.shape_cast %245 : vector<1x1x1x128xbf16> to vector<1x128xbf16>
    %c0_439 = arith.constant 0 : index
    %c7_440 = arith.constant 7 : index
    %c6_441 = arith.constant 6 : index
    %c0_442 = arith.constant 0 : index
    %247 = vector.load %arg1[%c0_439, %c7_440, %c6_441, %c0_442] : memref<1x9x9x128xbf16, #tpu.memory_space<vmem>>, vector<1x1x1x128xbf16>
    %248 = vector.shape_cast %247 : vector<1x1x1x128xbf16> to vector<1x128xbf16>
    %249 = tpu.concatenate %232, %234, %236, %238, %240, %242, %244, %246, %248 in 1 : vector<1x128xbf16>, vector<1x128xbf16>, vector<1x128xbf16>, vector<1x128xbf16>, vector<1x128xbf16>, vector<1x128xbf16>, vector<1x128xbf16>, vector<1x128xbf16>, vector<1x128xbf16> -> vector<1x1152xbf16>
    %250 = arith.extf %249 : vector<1x1152xbf16> to vector<1x1152xf32>
    %c11 = arith.constant 11 : index
    %c0_443 = arith.constant 0 : index
    %251 = vector.load %arg10[%c11, %c0_443] : memref<16x1152xf32, #tpu.memory_space<vmem>>, vector<1x1152xf32>
    tpu.vector_store %arg10[%c11, %c0_443], %250 {strides = array<i32>} : memref<16x1152xf32, #tpu.memory_space<vmem>>, vector<1x1152xf32>,
    %c0_444 = arith.constant 0 : index
    %c1_445 = arith.constant 1 : index
    %c1_446 = arith.constant 1 : index
    %c0_447 = arith.constant 0 : index
    %252 = vector.load %arg1[%c0_444, %c1_445, %c1_446, %c0_447] : memref<1x9x9x128xbf16, #tpu.memory_space<vmem>>, vector<1x1x1x128xbf16>
    %253 = vector.shape_cast %252 : vector<1x1x1x128xbf16> to vector<1x128xbf16>
    %c0_448 = arith.constant 0 : index
    %c1_449 = arith.constant 1 : index
    %c3_450 = arith.constant 3 : index
    %c0_451 = arith.constant 0 : index
    %254 = vector.load %arg1[%c0_448, %c1_449, %c3_450, %c0_451] : memref<1x9x9x128xbf16, #tpu.memory_space<vmem>>, vector<1x1x1x128xbf16>
    %255 = vector.shape_cast %254 : vector<1x1x1x128xbf16> to vector<1x128xbf16>
    %c0_452 = arith.constant 0 : index
    %c1_453 = arith.constant 1 : index
    %c5_454 = arith.constant 5 : index
    %c0_455 = arith.constant 0 : index
    %256 = vector.load %arg1[%c0_452, %c1_453, %c5_454, %c0_455] : memref<1x9x9x128xbf16, #tpu.memory_space<vmem>>, vector<1x1x1x128xbf16>
    %257 = vector.shape_cast %256 : vector<1x1x1x128xbf16> to vector<1x128xbf16>
    %c0_456 = arith.constant 0 : index
    %c3_457 = arith.constant 3 : index
    %c1_458 = arith.constant 1 : index
    %c0_459 = arith.constant 0 : index
    %258 = vector.load %arg1[%c0_456, %c3_457, %c1_458, %c0_459] : memref<1x9x9x128xbf16, #tpu.memory_space<vmem>>, vector<1x1x1x128xbf16>
    %259 = vector.shape_cast %258 : vector<1x1x1x128xbf16> to vector<1x128xbf16>
    %c0_460 = arith.constant 0 : index
    %c3_461 = arith.constant 3 : index
    %c3_462 = arith.constant 3 : index
    %c0_463 = arith.constant 0 : index
    %260 = vector.load %arg1[%c0_460, %c3_461, %c3_462, %c0_463] : memref<1x9x9x128xbf16, #tpu.memory_space<vmem>>, vector<1x1x1x128xbf16>
    %261 = vector.shape_cast %260 : vector<1x1x1x128xbf16> to vector<1x128xbf16>
    %c0_464 = arith.constant 0 : index
    %c3_465 = arith.constant 3 : index
    %c5_466 = arith.constant 5 : index
    %c0_467 = arith.constant 0 : index
    %262 = vector.load %arg1[%c0_464, %c3_465, %c5_466, %c0_467] : memref<1x9x9x128xbf16, #tpu.memory_space<vmem>>, vector<1x1x1x128xbf16>
    %263 = vector.shape_cast %262 : vector<1x1x1x128xbf16> to vector<1x128xbf16>
    %c0_468 = arith.constant 0 : index
    %c5_469 = arith.constant 5 : index
    %c1_470 = arith.constant 1 : index
    %c0_471 = arith.constant 0 : index
    %264 = vector.load %arg1[%c0_468, %c5_469, %c1_470, %c0_471] : memref<1x9x9x128xbf16, #tpu.memory_space<vmem>>, vector<1x1x1x128xbf16>
    %265 = vector.shape_cast %264 : vector<1x1x1x128xbf16> to vector<1x128xbf16>
    %c0_472 = arith.constant 0 : index
    %c5_473 = arith.constant 5 : index
    %c3_474 = arith.constant 3 : index
    %c0_475 = arith.constant 0 : index
    %266 = vector.load %arg1[%c0_472, %c5_473, %c3_474, %c0_475] : memref<1x9x9x128xbf16, #tpu.memory_space<vmem>>, vector<1x1x1x128xbf16>
    %267 = vector.shape_cast %266 : vector<1x1x1x128xbf16> to vector<1x128xbf16>
    %c0_476 = arith.constant 0 : index
    %c5_477 = arith.constant 5 : index
    %c5_478 = arith.constant 5 : index
    %c0_479 = arith.constant 0 : index
    %268 = vector.load %arg1[%c0_476, %c5_477, %c5_478, %c0_479] : memref<1x9x9x128xbf16, #tpu.memory_space<vmem>>, vector<1x1x1x128xbf16>
    %269 = vector.shape_cast %268 : vector<1x1x1x128xbf16> to vector<1x128xbf16>
    %270 = tpu.concatenate %253, %255, %257, %259, %261, %263, %265, %267, %269 in 1 : vector<1x128xbf16>, vector<1x128xbf16>, vector<1x128xbf16>, vector<1x128xbf16>, vector<1x128xbf16>, vector<1x128xbf16>, vector<1x128xbf16>, vector<1x128xbf16>, vector<1x128xbf16> -> vector<1x1152xbf16>
    %271 = arith.extf %270 : vector<1x1152xbf16> to vector<1x1152xf32>
    %c12 = arith.constant 12 : index
    %c0_480 = arith.constant 0 : index
    %272 = vector.load %arg10[%c12, %c0_480] : memref<16x1152xf32, #tpu.memory_space<vmem>>, vector<1x1152xf32>
    tpu.vector_store %arg10[%c12, %c0_480], %271 {strides = array<i32>} : memref<16x1152xf32, #tpu.memory_space<vmem>>, vector<1x1152xf32>,
    %c0_481 = arith.constant 0 : index
    %c1_482 = arith.constant 1 : index
    %c3_483 = arith.constant 3 : index
    %c0_484 = arith.constant 0 : index
    %273 = vector.load %arg1[%c0_481, %c1_482, %c3_483, %c0_484] : memref<1x9x9x128xbf16, #tpu.memory_space<vmem>>, vector<1x1x1x128xbf16>
    %274 = vector.shape_cast %273 : vector<1x1x1x128xbf16> to vector<1x128xbf16>
    %c0_485 = arith.constant 0 : index
    %c1_486 = arith.constant 1 : index
    %c5_487 = arith.constant 5 : index
    %c0_488 = arith.constant 0 : index
    %275 = vector.load %arg1[%c0_485, %c1_486, %c5_487, %c0_488] : memref<1x9x9x128xbf16, #tpu.memory_space<vmem>>, vector<1x1x1x128xbf16>
    %276 = vector.shape_cast %275 : vector<1x1x1x128xbf16> to vector<1x128xbf16>
    %c0_489 = arith.constant 0 : index
    %c1_490 = arith.constant 1 : index
    %c7_491 = arith.constant 7 : index
    %c0_492 = arith.constant 0 : index
    %277 = vector.load %arg1[%c0_489, %c1_490, %c7_491, %c0_492] : memref<1x9x9x128xbf16, #tpu.memory_space<vmem>>, vector<1x1x1x128xbf16>
    %278 = vector.shape_cast %277 : vector<1x1x1x128xbf16> to vector<1x128xbf16>
    %c0_493 = arith.constant 0 : index
    %c3_494 = arith.constant 3 : index
    %c3_495 = arith.constant 3 : index
    %c0_496 = arith.constant 0 : index
    %279 = vector.load %arg1[%c0_493, %c3_494, %c3_495, %c0_496] : memref<1x9x9x128xbf16, #tpu.memory_space<vmem>>, vector<1x1x1x128xbf16>
    %280 = vector.shape_cast %279 : vector<1x1x1x128xbf16> to vector<1x128xbf16>
    %c0_497 = arith.constant 0 : index
    %c3_498 = arith.constant 3 : index
    %c5_499 = arith.constant 5 : index
    %c0_500 = arith.constant 0 : index
    %281 = vector.load %arg1[%c0_497, %c3_498, %c5_499, %c0_500] : memref<1x9x9x128xbf16, #tpu.memory_space<vmem>>, vector<1x1x1x128xbf16>
    %282 = vector.shape_cast %281 : vector<1x1x1x128xbf16> to vector<1x128xbf16>
    %c0_501 = arith.constant 0 : index
    %c3_502 = arith.constant 3 : index
    %c7_503 = arith.constant 7 : index
    %c0_504 = arith.constant 0 : index
    %283 = vector.load %arg1[%c0_501, %c3_502, %c7_503, %c0_504] : memref<1x9x9x128xbf16, #tpu.memory_space<vmem>>, vector<1x1x1x128xbf16>
    %284 = vector.shape_cast %283 : vector<1x1x1x128xbf16> to vector<1x128xbf16>
    %c0_505 = arith.constant 0 : index
    %c5_506 = arith.constant 5 : index
    %c3_507 = arith.constant 3 : index
    %c0_508 = arith.constant 0 : index
    %285 = vector.load %arg1[%c0_505, %c5_506, %c3_507, %c0_508] : memref<1x9x9x128xbf16, #tpu.memory_space<vmem>>, vector<1x1x1x128xbf16>
    %286 = vector.shape_cast %285 : vector<1x1x1x128xbf16> to vector<1x128xbf16>
    %c0_509 = arith.constant 0 : index
    %c5_510 = arith.constant 5 : index
    %c5_511 = arith.constant 5 : index
    %c0_512 = arith.constant 0 : index
    %287 = vector.load %arg1[%c0_509, %c5_510, %c5_511, %c0_512] : memref<1x9x9x128xbf16, #tpu.memory_space<vmem>>, vector<1x1x1x128xbf16>
    %288 = vector.shape_cast %287 : vector<1x1x1x128xbf16> to vector<1x128xbf16>
    %c0_513 = arith.constant 0 : index
    %c5_514 = arith.constant 5 : index
    %c7_515 = arith.constant 7 : index
    %c0_516 = arith.constant 0 : index
    %289 = vector.load %arg1[%c0_513, %c5_514, %c7_515, %c0_516] : memref<1x9x9x128xbf16, #tpu.memory_space<vmem>>, vector<1x1x1x128xbf16>
    %290 = vector.shape_cast %289 : vector<1x1x1x128xbf16> to vector<1x128xbf16>
    %291 = tpu.concatenate %274, %276, %278, %280, %282, %284, %286, %288, %290 in 1 : vector<1x128xbf16>, vector<1x128xbf16>, vector<1x128xbf16>, vector<1x128xbf16>, vector<1x128xbf16>, vector<1x128xbf16>, vector<1x128xbf16>, vector<1x128xbf16>, vector<1x128xbf16> -> vector<1x1152xbf16>
    %292 = arith.extf %291 : vector<1x1152xbf16> to vector<1x1152xf32>
    %c13 = arith.constant 13 : index
    %c0_517 = arith.constant 0 : index
    %293 = vector.load %arg10[%c13, %c0_517] : memref<16x1152xf32, #tpu.memory_space<vmem>>, vector<1x1152xf32>
    tpu.vector_store %arg10[%c13, %c0_517], %292 {strides = array<i32>} : memref<16x1152xf32, #tpu.memory_space<vmem>>, vector<1x1152xf32>,
    %c0_518 = arith.constant 0 : index
    %c3_519 = arith.constant 3 : index
    %c1_520 = arith.constant 1 : index
    %c0_521 = arith.constant 0 : index
    %294 = vector.load %arg1[%c0_518, %c3_519, %c1_520, %c0_521] : memref<1x9x9x128xbf16, #tpu.memory_space<vmem>>, vector<1x1x1x128xbf16>
    %295 = vector.shape_cast %294 : vector<1x1x1x128xbf16> to vector<1x128xbf16>
    %c0_522 = arith.constant 0 : index
    %c3_523 = arith.constant 3 : index
    %c3_524 = arith.constant 3 : index
    %c0_525 = arith.constant 0 : index
    %296 = vector.load %arg1[%c0_522, %c3_523, %c3_524, %c0_525] : memref<1x9x9x128xbf16, #tpu.memory_space<vmem>>, vector<1x1x1x128xbf16>
    %297 = vector.shape_cast %296 : vector<1x1x1x128xbf16> to vector<1x128xbf16>
    %c0_526 = arith.constant 0 : index
    %c3_527 = arith.constant 3 : index
    %c5_528 = arith.constant 5 : index
    %c0_529 = arith.constant 0 : index
    %298 = vector.load %arg1[%c0_526, %c3_527, %c5_528, %c0_529] : memref<1x9x9x128xbf16, #tpu.memory_space<vmem>>, vector<1x1x1x128xbf16>
    %299 = vector.shape_cast %298 : vector<1x1x1x128xbf16> to vector<1x128xbf16>
    %c0_530 = arith.constant 0 : index
    %c5_531 = arith.constant 5 : index
    %c1_532 = arith.constant 1 : index
    %c0_533 = arith.constant 0 : index
    %300 = vector.load %arg1[%c0_530, %c5_531, %c1_532, %c0_533] : memref<1x9x9x128xbf16, #tpu.memory_space<vmem>>, vector<1x1x1x128xbf16>
    %301 = vector.shape_cast %300 : vector<1x1x1x128xbf16> to vector<1x128xbf16>
    %c0_534 = arith.constant 0 : index
    %c5_535 = arith.constant 5 : index
    %c3_536 = arith.constant 3 : index
    %c0_537 = arith.constant 0 : index
    %302 = vector.load %arg1[%c0_534, %c5_535, %c3_536, %c0_537] : memref<1x9x9x128xbf16, #tpu.memory_space<vmem>>, vector<1x1x1x128xbf16>
    %303 = vector.shape_cast %302 : vector<1x1x1x128xbf16> to vector<1x128xbf16>
    %c0_538 = arith.constant 0 : index
    %c5_539 = arith.constant 5 : index
    %c5_540 = arith.constant 5 : index
    %c0_541 = arith.constant 0 : index
    %304 = vector.load %arg1[%c0_538, %c5_539, %c5_540, %c0_541] : memref<1x9x9x128xbf16, #tpu.memory_space<vmem>>, vector<1x1x1x128xbf16>
    %305 = vector.shape_cast %304 : vector<1x1x1x128xbf16> to vector<1x128xbf16>
    %c0_542 = arith.constant 0 : index
    %c7_543 = arith.constant 7 : index
    %c1_544 = arith.constant 1 : index
    %c0_545 = arith.constant 0 : index
    %306 = vector.load %arg1[%c0_542, %c7_543, %c1_544, %c0_545] : memref<1x9x9x128xbf16, #tpu.memory_space<vmem>>, vector<1x1x1x128xbf16>
    %307 = vector.shape_cast %306 : vector<1x1x1x128xbf16> to vector<1x128xbf16>
    %c0_546 = arith.constant 0 : index
    %c7_547 = arith.constant 7 : index
    %c3_548 = arith.constant 3 : index
    %c0_549 = arith.constant 0 : index
    %308 = vector.load %arg1[%c0_546, %c7_547, %c3_548, %c0_549] : memref<1x9x9x128xbf16, #tpu.memory_space<vmem>>, vector<1x1x1x128xbf16>
    %309 = vector.shape_cast %308 : vector<1x1x1x128xbf16> to vector<1x128xbf16>
    %c0_550 = arith.constant 0 : index
    %c7_551 = arith.constant 7 : index
    %c5_552 = arith.constant 5 : index
    %c0_553 = arith.constant 0 : index
    %310 = vector.load %arg1[%c0_550, %c7_551, %c5_552, %c0_553] : memref<1x9x9x128xbf16, #tpu.memory_space<vmem>>, vector<1x1x1x128xbf16>
    %311 = vector.shape_cast %310 : vector<1x1x1x128xbf16> to vector<1x128xbf16>
    %312 = tpu.concatenate %295, %297, %299, %301, %303, %305, %307, %309, %311 in 1 : vector<1x128xbf16>, vector<1x128xbf16>, vector<1x128xbf16>, vector<1x128xbf16>, vector<1x128xbf16>, vector<1x128xbf16>, vector<1x128xbf16>, vector<1x128xbf16>, vector<1x128xbf16> -> vector<1x1152xbf16>
    %313 = arith.extf %312 : vector<1x1152xbf16> to vector<1x1152xf32>
    %c14 = arith.constant 14 : index
    %c0_554 = arith.constant 0 : index
    %314 = vector.load %arg10[%c14, %c0_554] : memref<16x1152xf32, #tpu.memory_space<vmem>>, vector<1x1152xf32>
    tpu.vector_store %arg10[%c14, %c0_554], %313 {strides = array<i32>} : memref<16x1152xf32, #tpu.memory_space<vmem>>, vector<1x1152xf32>,
    %c0_555 = arith.constant 0 : index
    %c3_556 = arith.constant 3 : index
    %c3_557 = arith.constant 3 : index
    %c0_558 = arith.constant 0 : index
    %315 = vector.load %arg1[%c0_555, %c3_556, %c3_557, %c0_558] : memref<1x9x9x128xbf16, #tpu.memory_space<vmem>>, vector<1x1x1x128xbf16>
    %316 = vector.shape_cast %315 : vector<1x1x1x128xbf16> to vector<1x128xbf16>
    %c0_559 = arith.constant 0 : index
    %c3_560 = arith.constant 3 : index
    %c5_561 = arith.constant 5 : index
    %c0_562 = arith.constant 0 : index
    %317 = vector.load %arg1[%c0_559, %c3_560, %c5_561, %c0_562] : memref<1x9x9x128xbf16, #tpu.memory_space<vmem>>, vector<1x1x1x128xbf16>
    %318 = vector.shape_cast %317 : vector<1x1x1x128xbf16> to vector<1x128xbf16>
    %c0_563 = arith.constant 0 : index
    %c3_564 = arith.constant 3 : index
    %c7_565 = arith.constant 7 : index
    %c0_566 = arith.constant 0 : index
    %319 = vector.load %arg1[%c0_563, %c3_564, %c7_565, %c0_566] : memref<1x9x9x128xbf16, #tpu.memory_space<vmem>>, vector<1x1x1x128xbf16>
    %320 = vector.shape_cast %319 : vector<1x1x1x128xbf16> to vector<1x128xbf16>
    %c0_567 = arith.constant 0 : index
    %c5_568 = arith.constant 5 : index
    %c3_569 = arith.constant 3 : index
    %c0_570 = arith.constant 0 : index
    %321 = vector.load %arg1[%c0_567, %c5_568, %c3_569, %c0_570] : memref<1x9x9x128xbf16, #tpu.memory_space<vmem>>, vector<1x1x1x128xbf16>
    %322 = vector.shape_cast %321 : vector<1x1x1x128xbf16> to vector<1x128xbf16>
    %c0_571 = arith.constant 0 : index
    %c5_572 = arith.constant 5 : index
    %c5_573 = arith.constant 5 : index
    %c0_574 = arith.constant 0 : index
    %323 = vector.load %arg1[%c0_571, %c5_572, %c5_573, %c0_574] : memref<1x9x9x128xbf16, #tpu.memory_space<vmem>>, vector<1x1x1x128xbf16>
    %324 = vector.shape_cast %323 : vector<1x1x1x128xbf16> to vector<1x128xbf16>
    %c0_575 = arith.constant 0 : index
    %c5_576 = arith.constant 5 : index
    %c7_577 = arith.constant 7 : index
    %c0_578 = arith.constant 0 : index
    %325 = vector.load %arg1[%c0_575, %c5_576, %c7_577, %c0_578] : memref<1x9x9x128xbf16, #tpu.memory_space<vmem>>, vector<1x1x1x128xbf16>
    %326 = vector.shape_cast %325 : vector<1x1x1x128xbf16> to vector<1x128xbf16>
    %c0_579 = arith.constant 0 : index
    %c7_580 = arith.constant 7 : index
    %c3_581 = arith.constant 3 : index
    %c0_582 = arith.constant 0 : index
    %327 = vector.load %arg1[%c0_579, %c7_580, %c3_581, %c0_582] : memref<1x9x9x128xbf16, #tpu.memory_space<vmem>>, vector<1x1x1x128xbf16>
    %328 = vector.shape_cast %327 : vector<1x1x1x128xbf16> to vector<1x128xbf16>
    %c0_583 = arith.constant 0 : index
    %c7_584 = arith.constant 7 : index
    %c5_585 = arith.constant 5 : index
    %c0_586 = arith.constant 0 : index
    %329 = vector.load %arg1[%c0_583, %c7_584, %c5_585, %c0_586] : memref<1x9x9x128xbf16, #tpu.memory_space<vmem>>, vector<1x1x1x128xbf16>
    %330 = vector.shape_cast %329 : vector<1x1x1x128xbf16> to vector<1x128xbf16>
    %c0_587 = arith.constant 0 : index
    %c7_588 = arith.constant 7 : index
    %c7_589 = arith.constant 7 : index
    %c0_590 = arith.constant 0 : index
    %331 = vector.load %arg1[%c0_587, %c7_588, %c7_589, %c0_590] : memref<1x9x9x128xbf16, #tpu.memory_space<vmem>>, vector<1x1x1x128xbf16>
    %332 = vector.shape_cast %331 : vector<1x1x1x128xbf16> to vector<1x128xbf16>
    %333 = tpu.concatenate %316, %318, %320, %322, %324, %326, %328, %330, %332 in 1 : vector<1x128xbf16>, vector<1x128xbf16>, vector<1x128xbf16>, vector<1x128xbf16>, vector<1x128xbf16>, vector<1x128xbf16>, vector<1x128xbf16>, vector<1x128xbf16>, vector<1x128xbf16> -> vector<1x1152xbf16>
    %334 = arith.extf %333 : vector<1x1152xbf16> to vector<1x1152xf32>
    %c15 = arith.constant 15 : index
    %c0_591 = arith.constant 0 : index
    %335 = vector.load %arg10[%c15, %c0_591] : memref<16x1152xf32, #tpu.memory_space<vmem>>, vector<1x1152xf32>
    tpu.vector_store %arg10[%c15, %c0_591], %334 {strides = array<i32>} : memref<16x1152xf32, #tpu.memory_space<vmem>>, vector<1x1152xf32>,
    %c0_592 = arith.constant 0 : index
    %c0_593 = arith.constant 0 : index
    %336 = vector.load %arg10[%c0_592, %c0_593] : memref<16x1152xf32, #tpu.memory_space<vmem>>, vector<16x1152xf32>
    %337 = arith.truncf %336 : vector<16x1152xf32> to vector<16x1152xbf16>
    %c0_594 = arith.constant 0 : index
    %c0_595 = arith.constant 0 : index
    %338 = vector.load %arg2[%c0_594, %c0_595] : memref<1152x256xbf16, #tpu.memory_space<vmem>>, vector<1152x256xbf16>
    %cst = arith.constant dense<0.000000e+00> : vector<16x256xf32>
    %339 = tpu.matmul %337, %338, %cst {dimension_numbers = #tpu.dot_dimension_numbers<[1], [0], [0], [1], [0, 0, 1, 1], [], []>} : vector<16x1152xbf16>, vector<1152x256xbf16>, vector<16x256xf32> -> vector<16x256xf32>
    %cst_596 = arith.constant 0.000000e+00 : f32
    %340 = vector.broadcast %cst_596 : f32 to vector<16x256xf32>
    %341 = arith.maximumf %339, %340 : vector<16x256xf32>
    %c0_597 = arith.constant 0 : index
    %c0_598 = arith.constant 0 : index
    %342 = vector.load %arg3[%c0_597, %c0_598] : memref<2x256xf32, #tpu.memory_space<vmem>>, vector<1x256xf32>
    %343 = vector.broadcast %342 : vector<1x256xf32> to vector<16x256xf32>
    %344 = arith.mulf %341, %343 : vector<16x256xf32>
    %c1_599 = arith.constant 1 : index
    %c0_600 = arith.constant 0 : index
    %345 = vector.load %arg3[%c1_599, %c0_600] : memref<2x256xf32, #tpu.memory_space<vmem>>, vector<1x256xf32>
    %346 = vector.broadcast %345 : vector<1x256xf32> to vector<16x256xf32>
    %347 = arith.addf %344, %346 : vector<16x256xf32>
    %348 = vector.extract_strided_slice %347 {offsets = [0, 0], sizes = [4, 256], strides = [1, 1]} : vector<16x256xf32> to vector<4x256xf32>
    %349 = vector.extract_strided_slice %347 {offsets = [4, 0], sizes = [4, 256], strides = [1, 1]} : vector<16x256xf32> to vector<4x256xf32>
    %350 = arith.maximumf %348, %349 : vector<4x256xf32>
    %351 = vector.extract_strided_slice %347 {offsets = [8, 0], sizes = [4, 256], strides = [1, 1]} : vector<16x256xf32> to vector<4x256xf32>
    %352 = arith.maximumf %350, %351 : vector<4x256xf32>
    %353 = vector.extract_strided_slice %347 {offsets = [12, 0], sizes = [4, 256], strides = [1, 1]} : vector<16x256xf32> to vector<4x256xf32>
    %354 = arith.maximumf %352, %353 : vector<4x256xf32>
    %355 = arith.truncf %354 : vector<4x256xf32> to vector<4x256xbf16>
    %c0_601 = arith.constant 0 : index
    %c0_602 = arith.constant 0 : index
    %356 = vector.load %arg4[%c0_601, %c0_602] : memref<256x128xbf16, #tpu.memory_space<vmem>>, vector<256x128xbf16>
    %cst_603 = arith.constant dense<0.000000e+00> : vector<4x128xf32>
    %357 = tpu.matmul %355, %356, %cst_603 {dimension_numbers = #tpu.dot_dimension_numbers<[1], [0], [0], [1], [0, 0, 1, 1], [], []>} : vector<4x256xbf16>, vector<256x128xbf16>, vector<4x128xf32> -> vector<4x128xf32>
    %cst_604 = arith.constant 0.000000e+00 : f32
    %358 = vector.broadcast %cst_604 : f32 to vector<4x128xf32>
    %359 = arith.maximumf %357, %358 : vector<4x128xf32>
    %c0_605 = arith.constant 0 : index
    %c0_606 = arith.constant 0 : index
    %360 = vector.load %arg5[%c0_605, %c0_606] : memref<2x128xf32, #tpu.memory_space<vmem>>, vector<1x128xf32>
    %361 = vector.broadcast %360 : vector<1x128xf32> to vector<4x128xf32>
    %362 = arith.mulf %359, %361 : vector<4x128xf32>
    %c1_607 = arith.constant 1 : index
    %c0_608 = arith.constant 0 : index
    %363 = vector.load %arg5[%c1_607, %c0_608] : memref<2x128xf32, #tpu.memory_space<vmem>>, vector<1x128xf32>
    %364 = vector.broadcast %363 : vector<1x128xf32> to vector<4x128xf32>
    %365 = arith.addf %362, %364 : vector<4x128xf32>
    %366 = vector.extract_strided_slice %365 {offsets = [0, 0], sizes = [1, 128], strides = [1, 1]} : vector<4x128xf32> to vector<1x128xf32>
    %367 = vector.extract_strided_slice %365 {offsets = [1, 0], sizes = [1, 128], strides = [1, 1]} : vector<4x128xf32> to vector<1x128xf32>
    %368 = arith.addf %366, %367 : vector<1x128xf32>
    %369 = vector.extract_strided_slice %365 {offsets = [2, 0], sizes = [1, 128], strides = [1, 1]} : vector<4x128xf32> to vector<1x128xf32>
    %370 = arith.addf %368, %369 : vector<1x128xf32>
    %371 = vector.extract_strided_slice %365 {offsets = [3, 0], sizes = [1, 128], strides = [1, 1]} : vector<4x128xf32> to vector<1x128xf32>
    %372 = arith.addf %370, %371 : vector<1x128xf32>
    %cst_609 = arith.constant 2.500000e-01 : f32
    %373 = vector.broadcast %cst_609 : f32 to vector<1x128xf32>
    %374 = arith.mulf %373, %372 : vector<1x128xf32>
    %375 = arith.truncf %374 : vector<1x128xf32> to vector<1x128xbf16>
    %c0_610 = arith.constant 0 : index
    %c0_611 = arith.constant 0 : index
    %376 = vector.load %arg6[%c0_610, %c0_611] : memref<128x64xbf16, #tpu.memory_space<vmem>>, vector<128x64xbf16>
    %cst_612 = arith.constant dense<0.000000e+00> : vector<1x64xf32>
    %377 = tpu.matmul %375, %376, %cst_612 {dimension_numbers = #tpu.dot_dimension_numbers<[1], [0], [0], [1], [0, 0, 1, 1], [], []>} : vector<1x128xbf16>, vector<128x64xbf16>, vector<1x64xf32> -> vector<1x64xf32>
    %cst_613 = arith.constant 0.000000e+00 : f32
    %378 = vector.broadcast %cst_613 : f32 to vector<1x64xf32>
    %379 = arith.maximumf %377, %378 : vector<1x64xf32>
    %c0_614 = arith.constant 0 : index
    %c0_615 = arith.constant 0 : index
    %380 = vector.load %arg7[%c0_614, %c0_615] : memref<2x64xf32, #tpu.memory_space<vmem>>, vector<1x64xf32>
    %381 = arith.mulf %379, %380 : vector<1x64xf32>
    %c1_616 = arith.constant 1 : index
    %c0_617 = arith.constant 0 : index
    %382 = vector.load %arg7[%c1_616, %c0_617] : memref<2x64xf32, #tpu.memory_space<vmem>>, vector<1x64xf32>
    %383 = arith.addf %381, %382 : vector<1x64xf32>
    %384 = arith.truncf %383 : vector<1x64xf32> to vector<1x64xbf16>
    %c0_618 = arith.constant 0 : index
    %c0_619 = arith.constant 0 : index
    %385 = vector.load %arg8[%c0_618, %c0_619] : memref<64x10xbf16, #tpu.memory_space<vmem>>, vector<64x10xbf16>
    %cst_620 = arith.constant dense<0.000000e+00> : vector<1x10xf32>
    %386 = tpu.matmul %384, %385, %cst_620 {dimension_numbers = #tpu.dot_dimension_numbers<[1], [0], [0], [1], [0, 0, 1, 1], [], []>} : vector<1x64xbf16>, vector<64x10xbf16>, vector<1x10xf32> -> vector<1x10xf32>
    %c0_621 = arith.constant 0 : index
    %c0_622 = arith.constant 0 : index
    %c0_623 = arith.constant 0 : index
    %387 = vector.load %arg9[%c0_621, %c0_622, %c0_623] : memref<1x1x10xf32, #tpu.memory_space<vmem>>, vector<1x1x10xf32>
    %388 = vector.shape_cast %387 : vector<1x1x10xf32> to vector<1x10xf32>
    %389 = vector.shape_cast %386 : vector<1x10xf32> to vector<1x1x10xf32>
    tpu.vector_store %arg9[%c0_621, %c0_622, %c0_623], %389 {strides = array<i32>} : memref<1x1x10xf32, #tpu.memory_space<vmem>>, vector<1x1x10xf32>,
    return
  }
  func.func @transform_0(%arg0: i32) -> (i32, i32, i32, i32) {
    %c0_i32 = arith.constant 0 : i32
    %c0_i32_0 = arith.constant 0 : i32
    %c0_i32_1 = arith.constant 0 : i32
    %c0_i32_2 = arith.constant 0 : i32
    return %arg0, %c0_i32, %c0_i32_0, %c0_i32_1 : i32, i32, i32, i32
  }
  func.func @transform_1(%arg0: i32) -> (i32, i32) {
    %c0_i32 = arith.constant 0 : i32
    %c0_i32_0 = arith.constant 0 : i32
    %c0_i32_1 = arith.constant 0 : i32
    return %c0_i32, %c0_i32_0 : i32, i32
  }
  func.func @transform_2(%arg0: i32) -> (i32, i32) {
    %c0_i32 = arith.constant 0 : i32
    %c0_i32_0 = arith.constant 0 : i32
    %c0_i32_1 = arith.constant 0 : i32
    return %c0_i32, %c0_i32_0 : i32, i32
  }
  func.func @transform_3(%arg0: i32) -> (i32, i32) {
    %c0_i32 = arith.constant 0 : i32
    %c0_i32_0 = arith.constant 0 : i32
    %c0_i32_1 = arith.constant 0 : i32
    return %c0_i32, %c0_i32_0 : i32, i32
  }
  func.func @transform_4(%arg0: i32) -> (i32, i32) {
    %c0_i32 = arith.constant 0 : i32
    %c0_i32_0 = arith.constant 0 : i32
    %c0_i32_1 = arith.constant 0 : i32
    return %c0_i32, %c0_i32_0 : i32, i32
  }
  func.func @transform_5(%arg0: i32) -> (i32, i32) {
    %c0_i32 = arith.constant 0 : i32
    %c0_i32_0 = arith.constant 0 : i32
    %c0_i32_1 = arith.constant 0 : i32
    return %c0_i32, %c0_i32_0 : i32, i32
  }
  func.func @transform_6(%arg0: i32) -> (i32, i32) {
    %c0_i32 = arith.constant 0 : i32
    %c0_i32_0 = arith.constant 0 : i32
    %c0_i32_1 = arith.constant 0 : i32
    return %c0_i32, %c0_i32_0 : i32, i32
  }
  func.func @transform_7(%arg0: i32) -> (i32, i32) {
    %c0_i32 = arith.constant 0 : i32
    %c0_i32_0 = arith.constant 0 : i32
    %c0_i32_1 = arith.constant 0 : i32
    return %c0_i32, %c0_i32_0 : i32, i32
  }
  func.func @transform_8(%arg0: i32) -> (i32, i32, i32) {
    %c0_i32 = arith.constant 0 : i32
    %c0_i32_0 = arith.constant 0 : i32
    %c0_i32_1 = arith.constant 0 : i32
    return %arg0, %c0_i32, %c0_i32_0 : i32, i32, i32
  }
}

</mosaic_0001>

<llo_original>
// kernel: _lambda_.2
$region0: #{_lambda_.2}
  #allocation0 [shape = 'u32[]', space=smem, size = 0x4, offset = 0x4, fixed_abs, tag = 'smem constant byte address 0x4 - core index']
  #allocation1 [shape = 'u32[72,128]{1,0:T(1,128)}', space=vmem, size = 0x9000, scoped, tag = 'internal scratch']
  %s0 = inlined_call_operand.vmem [shape: bf16[4,176,27], index: 0, kind: input, shape index: {}]
  %s1 = inlined_call_operand.vmem [shape: bf16[27,128], index: 1, kind: input, shape index: {}]
  %s2 = inlined_call_operand.vmem [shape: f32[2,128], index: 2, kind: input, shape index: {}]
  %s3 = inlined_call_operand.vmem [shape: bf16[176,128], index: 3, kind: output, shape index: {}]
  %s4 = sld [smem:[#allocation0]]
  $region86: #{_lambda_.2} parent=0
    _
  %s6 = ssub.s32 1, %s4
  %s7 = scalar_select 0, %s6, %s4
  $region1: #{_lambda_.2} parent=0
    #allocation2 [shape = 'u8[180224]{0}', space=vmem, size = 0x2c000, scoped, tag = 'input window, operand 0']
    loop: start=0, step=1, limit=4
    $region2: #{_lambda_.2} parent=1 // loop_pre_header
      _
    $region3: #{_lambda_.2} parent=1 // loop_header
      %s9 = sphi 0, %s13
      %p10 = scmp.ge.s32.totalorder %s9, 4
      %s19 = sphi 0, %s21
      %s22 = sphi 0, %s19
      %s23 = sphi 0, %s22
      %s39 = sphi 0, %s23
      %s43 = sphi 0, %s43
      %s45 = sphi 0, %s43
      %s46 = sphi 0, %s45
      %s60 = sphi 0, %s46
      %s64 = sphi 0, %s64
      %s66 = sphi 0, %s64
      %s67 = sphi 0, %s66
      %s81 = sphi 0, %s67
      %s87 = sphi 0, %s89
      %s90 = sphi 0, %s87
      %s91 = sphi 0, %s90
      %s107 = sphi 0, %s91
    $region4: #{_lambda_.2} parent=1 // loop_header_branch
      %12 = sbr.rel (%p10) target = $region8
    $region5: #{_lambda_.2} parent=1 // loop_body
      %s14 = ssub.s32 %s9, 1
      %s15 = ssub.s32 %s9, 2
      %s16 = sadd.s32 %s9, 1
      %s17 = ssub.s32 %s9, %s16
      %p18 = scmp.eq.s32.totalorder %s17, 0
      %s20 = sadd.s32 %s19, 1
      %s21 = scalar_select %p18, %s19, %s20
      %p24 = pneg %p18
      %p25 = scmp.eq.s32.totalorder %s9, 1
      %p26 = por %p24, %p25
      %p27 = scmp.ne.s32.totalorder %s19, %s22
      %p28 = scmp.eq.s32.totalorder %s9, 0
      %p29 = por %p27, %p28
      %p30 = scmp.ne.s32.totalorder %s19, %s22
      %p31 = scmp.eq.s32.totalorder %s14, 1
      %p32 = por %p30, %p31
      %p33 = scmp.ne.s32.totalorder %s22, %s23
      %p34 = scmp.eq.s32.totalorder %s14, 0
      %p35 = por %p33, %p34
      %p36 = scmp.ne.s32.totalorder %s22, %s23
      %p37 = scmp.eq.s32.totalorder %s15, 1
      %p38 = por %p36, %p37
      %p40 = scmp.ne.s32.totalorder %s23, %s39
      %p41 = scmp.eq.s32.totalorder %s15, 0
      %p42 = por %p40, %p41
      %s44 = sadd.s32 %s43, 1
      %p47 = scmp.eq.s32.totalorder %s9, 1
      %p48 = scmp.ne.s32.totalorder %s43, %s45
      %p49 = scmp.eq.s32.totalorder %s9, 0
      %p50 = por %p48, %p49
      %p51 = scmp.ne.s32.totalorder %s43, %s45
      %p52 = scmp.eq.s32.totalorder %s14, 1
      %p53 = por %p51, %p52
      %p54 = scmp.ne.s32.totalorder %s45, %s46
      %p55 = scmp.eq.s32.totalorder %s14, 0
      %p56 = por %p54, %p55
      %p57 = scmp.ne.s32.totalorder %s45, %s46
      %p58 = scmp.eq.s32.totalorder %s15, 1
      %p59 = por %p57, %p58
      %p61 = scmp.ne.s32.totalorder %s46, %s60
      %p62 = scmp.eq.s32.totalorder %s15, 0
      %p63 = por %p61, %p62
      %s65 = sadd.s32 %s64, 1
      %p68 = scmp.eq.s32.totalorder %s9, 1
      %p69 = scmp.ne.s32.totalorder %s64, %s66
      %p70 = scmp.eq.s32.totalorder %s9, 0
      %p71 = por %p69, %p70
      %p72 = scmp.ne.s32.totalorder %s64, %s66
      %p73 = scmp.eq.s32.totalorder %s14, 1
      %p74 = por %p72, %p73
      %p75 = scmp.ne.s32.totalorder %s66, %s67
      %p76 = scmp.eq.s32.totalorder %s14, 0
      %p77 = por %p75, %p76
      %p78 = scmp.ne.s32.totalorder %s66, %s67
      %p79 = scmp.eq.s32.totalorder %s15, 1
      %p80 = por %p78, %p79
      %p82 = scmp.ne.s32.totalorder %s67, %s81
      %p83 = scmp.eq.s32.totalorder %s15, 0
      %p84 = por %p82, %p83
      %s85 = ssub.s32 %s9, %s16
      %p86 = scmp.eq.s32.totalorder %s85, 0
      %s88 = sadd.s32 %s87, 1
      %s89 = scalar_select %p86, %s87, %s88
      %p92 = pneg %p86
      %p93 = scmp.eq.s32.totalorder %s9, 1
      %p94 = por %p92, %p93
      %p95 = scmp.ne.s32.totalorder %s87, %s90
      %p96 = scmp.eq.s32.totalorder %s9, 0
      %p97 = por %p95, %p96
      %p98 = scmp.ne.s32.totalorder %s87, %s90
      %p99 = scmp.eq.s32.totalorder %s14, 1
      %p100 = por %p98, %p99
      %p101 = scmp.ne.s32.totalorder %s90, %s91
      %p102 = scmp.eq.s32.totalorder %s14, 0
      %p103 = por %p101, %p102
      %p104 = scmp.ne.s32.totalorder %s90, %s91
      %p105 = scmp.eq.s32.totalorder %s15, 1
      %p106 = por %p104, %p105
      %p108 = scmp.ne.s32.totalorder %s91, %s107
      %p109 = scmp.eq.s32.totalorder %s15, 0
      %p110 = por %p108, %p109
      %p111 = scmp.le.s32.totalorder 1, %s9
      %p112 = scmp.lt.s32.totalorder %s9, 3
      %p113 = pnand %p111, %p112
      %p114 = pneg %p113
      // Predicated region
      $region9: #{_lambda_.2} parent=5 // pred_check
        _
      $region10: #{_lambda_.2} parent=5 // pred_check_branch
        %116 = sbr.rel (%p113) target = $region12
      $region11: #{_lambda_.2} parent=5 // pred_region
        %s117 = ssub.s32 %s9, 1
        // Predicated region
        $region13: #{_lambda_.2} parent=11 // pred_check
          %p118 = pneg %p56
        $region14: #{_lambda_.2} parent=11 // pred_check_branch
          %120 = sbr.rel (%p118) target = $region16
        $region15: #{_lambda_.2} parent=11 // pred_region
          _
        $region16: #{_lambda_.2} parent=11 // pred_fallthru
          _
        // Predicated region
        $region17: #{_lambda_.2} parent=11 // pred_check
          %p121 = pneg %p77
        $region18: #{_lambda_.2} parent=11 // pred_check_branch
          %123 = sbr.rel (%p121) target = $region20
        $region19: #{_lambda_.2} parent=11 // pred_region
          _
        $region20: #{_lambda_.2} parent=11 // pred_fallthru
          _
      $region12: #{_lambda_.2} parent=5 // pred_fallthru
        _
      %p124 = scmp.lt.s32.totalorder %s9, 2
      // Predicated region
      $region21: #{_lambda_.2} parent=5 // pred_check
        %p125 = pneg %p124
      $region22: #{_lambda_.2} parent=5 // pred_check_branch
        %127 = sbr.rel (%p125) target = $region24
      $region23: #{_lambda_.2} parent=5 // pred_region
        // Predicated region
        $region25: #{_lambda_.2} parent=23 // pred_check
          %p128 = pneg %p29
        $region26: #{_lambda_.2} parent=23 // pred_check_branch
          %130 = sbr.rel (%p128) target = $region28
        $region27: #{_lambda_.2} parent=23 // pred_region
          %s131 = sand.u32 %s19, 1
          %s132 = sand.u32 %s19, 1
          %s133 = smul.addr %s132, 176
          %s134 = scalar_lea.vmem [#allocation2], %s133
          %s135 = smul.u32 11, %s9
          %s136 = smul.addr %s135, 4
          %s137 = scalar_lea.vmem %s0, %s136
          // Predicated region
          $region29: #{_lambda_.2} parent=27 // pred_check
            _
          $region30: #{_lambda_.2} parent=27 // pred_check_branch
            %139 = sbr.rel (0) target = $region32
          $region31: #{_lambda_.2} parent=27 // pred_region
            // Predicated region
            $region33: #{_lambda_.2} parent=31 // pred_check
              _
            $region34: #{_lambda_.2} parent=31 // pred_check_branch
              %141 = sbr.rel target = $region36
            $region35: #{_lambda_.2} parent=31 // pred_region
              // Predicated region
              $region48: #{_lambda_.2} parent=35 // pred_check
                _
              $region49: #{_lambda_.2} parent=35 // pred_check_branch
                %243 = sbr.rel (0) target = $region51
              $region50: #{_lambda_.2} parent=35 // pred_region
                loop: start=0, step=1, limit=1
                $region52: #{_lambda_.2} parent=50 // loop_pre_header
                  _
                $region53: #{_lambda_.2} parent=50 // loop_header
                  %s245 = sphi 0, %s249
                  %p246 = scmp.ge.s32.totalorder %s245, 1
                  %s250 = sphi %s137, %s137
                  %s251 = sphi %s134, %s134
                $region54: #{_lambda_.2} parent=50 // loop_header_branch
                  %248 = sbr.rel (%p246) target = $region58
                $region55: #{_lambda_.2} parent=50 // loop_body
                  _
                $region56: #{_lambda_.2} parent=50 // loop_footer
                  %s249 = sadd.s32 1, %s245
                $region57: #{_lambda_.2} parent=50 // loop_footer_branch
                  %244 = sbr.rel target = $region53
                $region58: #{_lambda_.2} parent=50 // loop_exit
                  _
                %s253 = ssub.s32 16, 1
                loop: start=0, step=1, limit=1
                $region59: #{_lambda_.2} parent=50 // loop_pre_header
                  _
                $region60: #{_lambda_.2} parent=50 // loop_header
                  %s255 = sphi 0, %s259
                  %p256 = scmp.ge.s32.totalorder %s255, 1
                  %s260 = sphi %s137, %s137
                  %s261 = sphi %s134, %s134
                $region61: #{_lambda_.2} parent=50 // loop_header_branch
                  %258 = sbr.rel (%p256) target = $region65
                $region62: #{_lambda_.2} parent=50 // loop_body
                  %v262 = vld [vmem:[%s260] sm:%s253]
                  %263 = vst [vmem:[%s261] sm:%s253] %v262
                  %v264 = vld [vmem:[%s260 + $0x4] sm:%s253]
                  %265 = vst [vmem:[%s261 + $0x4] sm:%s253] %v264
                  %v266 = vld [vmem:[%s260 + $0x8] sm:%s253]
                  %267 = vst [vmem:[%s261 + $0x8] sm:%s253] %v266
                  %v268 = vld [vmem:[%s260 + $0xc] sm:%s253]
                  %269 = vst [vmem:[%s261 + $0xc] sm:%s253] %v268
                  %v270 = vld [vmem:[%s260 + $0x10] sm:%s253]
                  %271 = vst [vmem:[%s261 + $0x10] sm:%s253] %v270
                  %v272 = vld [vmem:[%s260 + $0x14] sm:%s253]
                  %273 = vst [vmem:[%s261 + $0x14] sm:%s253] %v272
                  %v274 = vld [vmem:[%s260 + $0x18] sm:%s253]
                  %275 = vst [vmem:[%s261 + $0x18] sm:%s253] %v274
                  %v276 = vld [vmem:[%s260 + $0x1c] sm:%s253]
                  %277 = vst [vmem:[%s261 + $0x1c] sm:%s253] %v276
                  %v278 = vld [vmem:[%s260 + $0x20] sm:%s253]
                  %279 = vst [vmem:[%s261 + $0x20] sm:%s253] %v278
                  %v280 = vld [vmem:[%s260 + $0x24] sm:%s253]
                  %281 = vst [vmem:[%s261 + $0x24] sm:%s253] %v280
                  %v282 = vld [vmem:[%s260 + $0x28] sm:%s253]
                  %283 = vst [vmem:[%s261 + $0x28] sm:%s253] %v282
                  %v284 = vld [vmem:[%s260 + $0x58] sm:%s253]
                  %285 = vst [vmem:[%s261 + $0x2c] sm:%s253] %v284
                  %v286 = vld [vmem:[%s260 + $0x5c] sm:%s253]
                  %287 = vst [vmem:[%s261 + $0x30] sm:%s253] %v286
                  %v288 = vld [vmem:[%s260 + $0x60] sm:%s253]
                  %289 = vst [vmem:[%s261 + $0x34] sm:%s253] %v288
                  %v290 = vld [vmem:[%s260 + $0x64] sm:%s253]
                  %291 = vst [vmem:[%s261 + $0x38] sm:%s253] %v290
                  %v292 = vld [vmem:[%s260 + $0x68] sm:%s253]
                  %293 = vst [vmem:[%s261 + $0x3c] sm:%s253] %v292
                  %v294 = vld [vmem:[%s260 + $0x6c] sm:%s253]
                  %295 = vst [vmem:[%s261 + $0x40] sm:%s253] %v294
                  %v296 = vld [vmem:[%s260 + $0x70] sm:%s253]
                  %297 = vst [vmem:[%s261 + $0x44] sm:%s253] %v296
                  %v298 = vld [vmem:[%s260 + $0x74] sm:%s253]
                  %299 = vst [vmem:[%s261 + $0x48] sm:%s253] %v298
                  %v300 = vld [vmem:[%s260 + $0x78] sm:%s253]
                  %301 = vst [vmem:[%s261 + $0x4c] sm:%s253] %v300
                  %v302 = vld [vmem:[%s260 + $0x7c] sm:%s253]
                  %303 = vst [vmem:[%s261 + $0x50] sm:%s253] %v302
                  %v304 = vld [vmem:[%s260 + $0x80] sm:%s253]
                  %305 = vst [vmem:[%s261 + $0x54] sm:%s253] %v304
                  %v306 = vld [vmem:[%s260 + $0xb0] sm:%s253]
                  %307 = vst [vmem:[%s261 + $0x58] sm:%s253] %v306
                  %v308 = vld [vmem:[%s260 + $0xb4] sm:%s253]
                  %309 = vst [vmem:[%s261 + $0x5c] sm:%s253] %v308
                  %v310 = vld [vmem:[%s260 + $0xb8] sm:%s253]
                  %311 = vst [vmem:[%s261 + $0x60] sm:%s253] %v310
                  %v312 = vld [vmem:[%s260 + $0xbc] sm:%s253]
                  %313 = vst [vmem:[%s261 + $0x64] sm:%s253] %v312
                  %v314 = vld [vmem:[%s260 + $0xc0] sm:%s253]
                  %315 = vst [vmem:[%s261 + $0x68] sm:%s253] %v314
                  %v316 = vld [vmem:[%s260 + $0xc4] sm:%s253]
                  %317 = vst [vmem:[%s261 + $0x6c] sm:%s253] %v316
                  %v318 = vld [vmem:[%s260 + $0xc8] sm:%s253]
                  %319 = vst [vmem:[%s261 + $0x70] sm:%s253] %v318
                  %v320 = vld [vmem:[%s260 + $0xcc] sm:%s253]
                  %321 = vst [vmem:[%s261 + $0x74] sm:%s253] %v320
                  %v322 = vld [vmem:[%s260 + $0xd0] sm:%s253]
                  %323 = vst [vmem:[%s261 + $0x78] sm:%s253] %v322
                  %v324 = vld [vmem:[%s260 + $0xd4] sm:%s253]
                  %325 = vst [vmem:[%s261 + $0x7c] sm:%s253] %v324
                  %v326 = vld [vmem:[%s260 + $0xd8] sm:%s253]
                  %327 = vst [vmem:[%s261 + $0x80] sm:%s253] %v326
                  %v328 = vld [vmem:[%s260 + $0x108] sm:%s253]
                  %329 = vst [vmem:[%s261 + $0x84] sm:%s253] %v328
                  %v330 = vld [vmem:[%s260 + $0x10c] sm:%s253]
                  %331 = vst [vmem:[%s261 + $0x88] sm:%s253] %v330
                  %v332 = vld [vmem:[%s260 + $0x110] sm:%s253]
                  %333 = vst [vmem:[%s261 + $0x8c] sm:%s253] %v332
                  %v334 = vld [vmem:[%s260 + $0x114] sm:%s253]
                  %335 = vst [vmem:[%s261 + $0x90] sm:%s253] %v334
                  %v336 = vld [vmem:[%s260 + $0x118] sm:%s253]
                  %337 = vst [vmem:[%s261 + $0x94] sm:%s253] %v336
                  %v338 = vld [vmem:[%s260 + $0x11c] sm:%s253]
                  %339 = vst [vmem:[%s261 + $0x98] sm:%s253] %v338
                  %v340 = vld [vmem:[%s260 + $0x120] sm:%s253]
                  %341 = vst [vmem:[%s261 + $0x9c] sm:%s253] %v340
                  %v342 = vld [vmem:[%s260 + $0x124] sm:%s253]
                  %343 = vst [vmem:[%s261 + $0xa0] sm:%s253] %v342
                  %v344 = vld [vmem:[%s260 + $0x128] sm:%s253]
                  %345 = vst [vmem:[%s261 + $0xa4] sm:%s253] %v344
                  %v346 = vld [vmem:[%s260 + $0x12c] sm:%s253]
                  %347 = vst [vmem:[%s261 + $0xa8] sm:%s253] %v346
                  %v348 = vld [vmem:[%s260 + $0x130] sm:%s253]
                  %349 = vst [vmem:[%s261 + $0xac] sm:%s253] %v348
                $region63: #{_lambda_.2} parent=50 // loop_footer
                  %s259 = sadd.s32 1, %s255
                $region64: #{_lambda_.2} parent=50 // loop_footer_branch
                  %254 = sbr.rel target = $region60
                $region65: #{_lambda_.2} parent=50 // loop_exit
                  _
              $region51: #{_lambda_.2} parent=35 // pred_fallthru
                _
            $region36: #{_lambda_.2} parent=31 // pred_fallthru
              _
            // Predicated region
            $region37: #{_lambda_.2} parent=31 // pred_check
              _
            $region38: #{_lambda_.2} parent=31 // pred_check_branch
              %143 = sbr.rel (0) target = $region40
            $region39: #{_lambda_.2} parent=31 // pred_region
              %s145 = ssub.s32 16, 1
              loop: start=0, step=1, limit=1
              $region41: #{_lambda_.2} parent=39 // loop_pre_header
                _
              $region42: #{_lambda_.2} parent=39 // loop_header
                %s147 = sphi 0, %s151
                %p148 = scmp.ge.s32.totalorder %s147, 1
                %s152 = sphi %s137, %s137
                %s153 = sphi %s134, %s134
              $region43: #{_lambda_.2} parent=39 // loop_header_branch
                %150 = sbr.rel (%p148) target = $region47
              $region44: #{_lambda_.2} parent=39 // loop_body
                %v154 = vld [vmem:[%s152] sm:%s145]
                %155 = vst [vmem:[%s153] sm:%s145] %v154
                %v156 = vld [vmem:[%s152 + $0x4] sm:%s145]
                %157 = vst [vmem:[%s153 + $0x4] sm:%s145] %v156
                %v158 = vld [vmem:[%s152 + $0x8] sm:%s145]
                %159 = vst [vmem:[%s153 + $0x8] sm:%s145] %v158
                %v160 = vld [vmem:[%s152 + $0xc] sm:%s145]
                %161 = vst [vmem:[%s153 + $0xc] sm:%s145] %v160
                %v162 = vld [vmem:[%s152 + $0x10] sm:%s145]
                %163 = vst [vmem:[%s153 + $0x10] sm:%s145] %v162
                %v164 = vld [vmem:[%s152 + $0x14] sm:%s145]
                %165 = vst [vmem:[%s153 + $0x14] sm:%s145] %v164
                %v166 = vld [vmem:[%s152 + $0x18] sm:%s145]
                %167 = vst [vmem:[%s153 + $0x18] sm:%s145] %v166
                %v168 = vld [vmem:[%s152 + $0x1c] sm:%s145]
                %169 = vst [vmem:[%s153 + $0x1c] sm:%s145] %v168
                %v170 = vld [vmem:[%s152 + $0x20] sm:%s145]
                %171 = vst [vmem:[%s153 + $0x20] sm:%s145] %v170
                %v172 = vld [vmem:[%s152 + $0x24] sm:%s145]
                %173 = vst [vmem:[%s153 + $0x24] sm:%s145] %v172
                %v174 = vld [vmem:[%s152 + $0x28] sm:%s145]
                %175 = vst [vmem:[%s153 + $0x28] sm:%s145] %v174
                %v176 = vld [vmem:[%s152 + $0x58] sm:%s145]
                %177 = vst [vmem:[%s153 + $0x2c] sm:%s145] %v176
                %v178 = vld [vmem:[%s152 + $0x5c] sm:%s145]
                %179 = vst [vmem:[%s153 + $0x30] sm:%s145] %v178
                %v180 = vld [vmem:[%s152 + $0x60] sm:%s145]
                %181 = vst [vmem:[%s153 + $0x34] sm:%s145] %v180
                %v182 = vld [vmem:[%s152 + $0x64] sm:%s145]
                %183 = vst [vmem:[%s153 + $0x38] sm:%s145] %v182
                %v184 = vld [vmem:[%s152 + $0x68] sm:%s145]
                %185 = vst [vmem:[%s153 + $0x3c] sm:%s145] %v184
                %v186 = vld [vmem:[%s152 + $0x6c] sm:%s145]
                %187 = vst [vmem:[%s153 + $0x40] sm:%s145] %v186
                %v188 = vld [vmem:[%s152 + $0x70] sm:%s145]
                %189 = vst [vmem:[%s153 + $0x44] sm:%s145] %v188
                %v190 = vld [vmem:[%s152 + $0x74] sm:%s145]
                %191 = vst [vmem:[%s153 + $0x48] sm:%s145] %v190
                %v192 = vld [vmem:[%s152 + $0x78] sm:%s145]
                %193 = vst [vmem:[%s153 + $0x4c] sm:%s145] %v192
                %v194 = vld [vmem:[%s152 + $0x7c] sm:%s145]
                %195 = vst [vmem:[%s153 + $0x50] sm:%s145] %v194
                %v196 = vld [vmem:[%s152 + $0x80] sm:%s145]
                %197 = vst [vmem:[%s153 + $0x54] sm:%s145] %v196
                %v198 = vld [vmem:[%s152 + $0xb0] sm:%s145]
                %199 = vst [vmem:[%s153 + $0x58] sm:%s145] %v198
                %v200 = vld [vmem:[%s152 + $0xb4] sm:%s145]
                %201 = vst [vmem:[%s153 + $0x5c] sm:%s145] %v200
                %v202 = vld [vmem:[%s152 + $0xb8] sm:%s145]
                %203 = vst [vmem:[%s153 + $0x60] sm:%s145] %v202
                %v204 = vld [vmem:[%s152 + $0xbc] sm:%s145]
                %205 = vst [vmem:[%s153 + $0x64] sm:%s145] %v204
                %v206 = vld [vmem:[%s152 + $0xc0] sm:%s145]
                %207 = vst [vmem:[%s153 + $0x68] sm:%s145] %v206
                %v208 = vld [vmem:[%s152 + $0xc4] sm:%s145]
                %209 = vst [vmem:[%s153 + $0x6c] sm:%s145] %v208
                %v210 = vld [vmem:[%s152 + $0xc8] sm:%s145]
                %211 = vst [vmem:[%s153 + $0x70] sm:%s145] %v210
                %v212 = vld [vmem:[%s152 + $0xcc] sm:%s145]
                %213 = vst [vmem:[%s153 + $0x74] sm:%s145] %v212
                %v214 = vld [vmem:[%s152 + $0xd0] sm:%s145]
                %215 = vst [vmem:[%s153 + $0x78] sm:%s145] %v214
                %v216 = vld [vmem:[%s152 + $0xd4] sm:%s145]
                %217 = vst [vmem:[%s153 + $0x7c] sm:%s145] %v216
                %v218 = vld [vmem:[%s152 + $0xd8] sm:%s145]
                %219 = vst [vmem:[%s153 + $0x80] sm:%s145] %v218
                %v220 = vld [vmem:[%s152 + $0x108] sm:%s145]
                %221 = vst [vmem:[%s153 + $0x84] sm:%s145] %v220
                %v222 = vld [vmem:[%s152 + $0x10c] sm:%s145]
                %223 = vst [vmem:[%s153 + $0x88] sm:%s145] %v222
                %v224 = vld [vmem:[%s152 + $0x110] sm:%s145]
                %225 = vst [vmem:[%s153 + $0x8c] sm:%s145] %v224
                %v226 = vld [vmem:[%s152 + $0x114] sm:%s145]
                %227 = vst [vmem:[%s153 + $0x90] sm:%s145] %v226
                %v228 = vld [vmem:[%s152 + $0x118] sm:%s145]
                %229 = vst [vmem:[%s153 + $0x94] sm:%s145] %v228
                %v230 = vld [vmem:[%s152 + $0x11c] sm:%s145]
                %231 = vst [vmem:[%s153 + $0x98] sm:%s145] %v230
                %v232 = vld [vmem:[%s152 + $0x120] sm:%s145]
                %233 = vst [vmem:[%s153 + $0x9c] sm:%s145] %v232
                %v234 = vld [vmem:[%s152 + $0x124] sm:%s145]
                %235 = vst [vmem:[%s153 + $0xa0] sm:%s145] %v234
                %v236 = vld [vmem:[%s152 + $0x128] sm:%s145]
                %237 = vst [vmem:[%s153 + $0xa4] sm:%s145] %v236
                %v238 = vld [vmem:[%s152 + $0x12c] sm:%s145]
                %239 = vst [vmem:[%s153 + $0xa8] sm:%s145] %v238
                %v240 = vld [vmem:[%s152 + $0x130] sm:%s145]
                %241 = vst [vmem:[%s153 + $0xac] sm:%s145] %v240
              $region45: #{_lambda_.2} parent=39 // loop_footer
                %s151 = sadd.s32 1, %s147
              $region46: #{_lambda_.2} parent=39 // loop_footer_branch
                %146 = sbr.rel target = $region42
              $region47: #{_lambda_.2} parent=39 // loop_exit
                _
            $region40: #{_lambda_.2} parent=31 // pred_fallthru
              _
          $region32: #{_lambda_.2} parent=27 // pred_fallthru
            _
          %350 = vnop
        $region28: #{_lambda_.2} parent=23 // pred_fallthru
          _
      $region24: #{_lambda_.2} parent=5 // pred_fallthru
        _
      %p351 = scmp.le.s32.totalorder 1, %s9
      %p352 = scmp.lt.s32.totalorder %s9, 3
      %p353 = pnand %p351, %p352
      %p354 = pneg %p353
      // Predicated region
      $region66: #{_lambda_.2} parent=5 // pred_check
        _
      $region67: #{_lambda_.2} parent=5 // pred_check_branch
        %356 = sbr.rel (%p353) target = $region69
      $region68: #{_lambda_.2} parent=5 // pred_region
        %s357 = ssub.s32 %s9, 1
        %s358 = sand.u32 %s22, 1
        %s359 = sand.u32 %s22, 1
        %s360 = smul.addr %s359, 176
        %s361 = scalar_lea.vmem [#allocation2], %s360
        // Predicated region
        $region70: #{_lambda_.2} parent=68 // pred_check
          %p362 = pneg %p35
        $region71: #{_lambda_.2} parent=68 // pred_check_branch
          %364 = sbr.rel (%p362) target = $region73
        $region72: #{_lambda_.2} parent=68 // pred_region
          _
        $region73: #{_lambda_.2} parent=68 // pred_fallthru
          _
        %s365 = sand.u32 %s22, 1
        %s366 = sand.u32 %s22, 1
        %s367 = smul.addr %s366, 176
        %s368 = scalar_lea.vmem [#allocation2], %s367
        %p369 = pneg %p35
        %p370 = pneg %p32
        %p371 = pneg %p56
        %p372 = pneg %p53
        %p373 = pneg %p77
        %p374 = pneg %p74
        %p375 = pneg %p103
        %p376 = pneg %p100
        %s377 = smul.u32 11, %s14
        %p378 = scmp.lt.s32.totalorder %s377, 21
        %s379 = scalar_select %p378, %s377, 21
        %s380 = smul.addr %s379, 4
        %s381 = scalar_lea.vmem %s3, %s380
        %s382 = smul.u32 11, %s14
        %s383 = smul.u32 11, %s14
        %p384 = scmp.lt.s32.totalorder %s383, 21
        %s385 = scalar_select %p384, %s383, 21
        %s386 = smul.addr %s385, 4
        %s387 = scalar_lea.vmem %s3, %s386
        %s388 = smul.u32 11, %s14
        %v390 = vld [vmem:[%s2] sm:$0x1]
        %v391 = vld [vmem:[%s2 + $0x1] sm:$0x1]
        %v392 = vld [vmem:[%s361] sm:$0xf]
        %v393 = vld [vmem:[%s361 + $0x4] sm:$0xf]
        %v394 = vld [vmem:[%s361 + $0x8] sm:$0xf]
        %v395 = vld [vmem:[%s361 + $0xc] sm:$0xf]
        %v396 = vld [vmem:[%s361 + $0x10] sm:$0xf]
        %v397 = vld [vmem:[%s361 + $0x14] sm:$0xf]
        %v398 = vld [vmem:[%s361 + $0x18] sm:$0xf]
        %v399 = vld [vmem:[%s361 + $0x1c] sm:$0xf]
        %v400 = vld [vmem:[%s361 + $0x20] sm:$0xf]
        %v401 = vld [vmem:[%s361 + $0x24] sm:$0xf]
        %v402 = vld [vmem:[%s361 + $0x28] sm:$0xf]
        %v403 = vld [vmem:[%s1] sm:$0xf]
        %v404 = vld [vmem:[%s1 + $0x4] sm:$0xf]
        %v405 = vld [vmem:[%s1 + $0x8] sm:$0xf]
        %v406 = vld [vmem:[%s1 + $0xc] sm:$0x3]
        %v418 = vunpack.c.l.b16 %v392
        %v419 = vunpack.c.l.b16 %v393
        %v420 = vunpack.c.l.b16 %v394
        %v421 = vunpack.c.l.b16 %v395
        %v422 = vunpack.c.l.b16 %v396
        %v423 = vunpack.c.l.b16 %v397
        %v424 = vunpack.c.l.b16 %v398
        %v425 = vunpack.c.l.b16 %v399
        %v426 = vunpack.c.l.b16 %v400
        %v427 = vunpack.c.l.b16 %v401
        %v428 = vunpack.c.l.b16 %v402
        %v429 = vpack.c.b16 %v419, %v418
        %v430 = vpack.c.b16 %v421, %v420
        %v431 = vpack.c.b16 %v423, %v422
        %v432 = vpack.c.b16 %v425, %v424
        %v433 = vpack.c.b16 %v427, %v426
        %v434 = vpack.c.b16 %v428, %v428
        %v439 = vunpack.c.l.b16 %v403
        %v440 = vunpack.c.l.b16 %v404
        %v441 = vunpack.c.l.b16 %v405
        %v442 = vunpack.c.l.b16 %v406
        %v443 = vpack.c.b16 %v440, %v439
        %v444 = vpack.c.b16 %v442, %v441
        %vm446 = vcmask 220160
        %v448 = vsel %vm446, %v429, 0
        %v451 = vsel %vm446, %v430, 0
        %v454 = vsel %vm446, %v431, 0
        %v457 = vsel %vm446, %v432, 0
        %v460 = vsel %vm446, %v433, 0
        %v463 = vsel %vm446, %v434, 0
        %vm465 = vcmask 1044480
        %vm466 = vcmask 1045504
        %v467 = vsel %vm465, 4294967295, 65535
        %v468 = vsel %vm466, %v467, 0
        %v470 = vand.u32 %v444, %v468
        %472 = vmatpush.bf16.msra.mxu0 0
        %473 = vmatpush.bf16.msra.mxu0 0
        %474 = vmatpush.bf16.msra.mxu0 0
        %475 = vmatpush.bf16.msra.mxu0 0
        %476 = vmatpush.bf16.msra.mxu0 0
        %477 = vmatpush.bf16.msra.mxu0 0
        %478 = vmatpush.bf16.msra.mxu0 %v470
        %479 = vmatpush.bf16.msra.mxu0 %v443
        %480 = vmatmul.bf16.gmra.mxu0 %v448
        %v481 = vpop.f32.mrf.mxu0
        %v482 = vadd.f32 0.0, %v481
        %v483 = vpop.f32.mrf.mxu0
        %v484 = vadd.f32 0.0, %v483
        %485 = vmatmul.bf16.gmra.mxu0 %v451
        %v486 = vpop.f32.mrf.mxu0
        %v487 = vadd.f32 0.0, %v486
        %v488 = vpop.f32.mrf.mxu0
        %v489 = vadd.f32 0.0, %v488
        %490 = vmatmul.bf16.gmra.mxu0 %v454
        %v491 = vpop.f32.mrf.mxu0
        %v492 = vadd.f32 0.0, %v491
        %v493 = vpop.f32.mrf.mxu0
        %v494 = vadd.f32 0.0, %v493
        %495 = vmatmul.bf16.gmra.mxu0 %v457
        %v496 = vpop.f32.mrf.mxu0
        %v497 = vadd.f32 0.0, %v496
        %v498 = vpop.f32.mrf.mxu0
        %v499 = vadd.f32 0.0, %v498
        %500 = vmatmul.bf16.gmra.mxu0 %v460
        %v501 = vpop.f32.mrf.mxu0
        %v502 = vadd.f32 0.0, %v501
        %v503 = vpop.f32.mrf.mxu0
        %v504 = vadd.f32 0.0, %v503
        %505 = vmatmul.bf16.gmra.mxu0 %v463
        %v506 = vpop.f32.mrf.mxu0
        %v507 = vadd.f32 0.0, %v506
        %v508 = vpop.f32.mrf.mxu0
        %509 = vdwg.mxu0
        %v510 = vmax.f32 %v482, 0.0
        %v511 = vmax.f32 %v484, 0.0
        %v512 = vmax.f32 %v487, 0.0
        %v513 = vmax.f32 %v489, 0.0
        %v514 = vmax.f32 %v492, 0.0
        %v515 = vmax.f32 %v494, 0.0
        %v516 = vmax.f32 %v497, 0.0
        %v517 = vmax.f32 %v499, 0.0
        %v518 = vmax.f32 %v502, 0.0
        %v519 = vmax.f32 %v504, 0.0
        %v520 = vmax.f32 %v507, 0.0
        %v521 = vperm.slane %v390, 0
        %v522 = vmul.f32 %v510, %v521
        %v523 = vmul.f32 %v511, %v521
        %v524 = vmul.f32 %v512, %v521
        %v525 = vmul.f32 %v513, %v521
        %v526 = vmul.f32 %v514, %v521
        %v527 = vmul.f32 %v515, %v521
        %v528 = vmul.f32 %v516, %v521
        %v529 = vmul.f32 %v517, %v521
        %v530 = vmul.f32 %v518, %v521
        %v531 = vmul.f32 %v519, %v521
        %v532 = vmul.f32 %v520, %v521
        %v533 = vperm.slane %v391, 0
        %v534 = vadd.f32 %v522, %v533
        %v535 = vadd.f32 %v523, %v533
        %v536 = vadd.f32 %v524, %v533
        %v537 = vadd.f32 %v525, %v533
        %v538 = vadd.f32 %v526, %v533
        %v539 = vadd.f32 %v527, %v533
        %v540 = vadd.f32 %v528, %v533
        %v541 = vadd.f32 %v529, %v533
        %v542 = vadd.f32 %v530, %v533
        %v543 = vadd.f32 %v531, %v533
        %v544 = vadd.f32 %v532, %v533
        %s545 = scalar_lea.vmem %s361, 44 [#allocation2]
        %v546 = vld [vmem:[%s545] sm:$0xf]
        %v547 = vld [vmem:[%s545 + $0x4] sm:$0xf]
        %v548 = vld [vmem:[%s545 + $0x8] sm:$0xf]
        %v549 = vld [vmem:[%s545 + $0xc] sm:$0xf]
        %v550 = vld [vmem:[%s545 + $0x10] sm:$0xf]
        %v551 = vld [vmem:[%s545 + $0x14] sm:$0xf]
        %v552 = vld [vmem:[%s545 + $0x18] sm:$0xf]
        %v553 = vld [vmem:[%s545 + $0x1c] sm:$0xf]
        %v554 = vld [vmem:[%s545 + $0x20] sm:$0xf]
        %v555 = vld [vmem:[%s545 + $0x24] sm:$0xf]
        %v556 = vld [vmem:[%s545 + $0x28] sm:$0xf]
        %v568 = vunpack.c.l.b16 %v546
        %v569 = vunpack.c.l.b16 %v547
        %v570 = vunpack.c.l.b16 %v548
        %v571 = vunpack.c.l.b16 %v549
        %v572 = vunpack.c.l.b16 %v550
        %v573 = vunpack.c.l.b16 %v551
        %v574 = vunpack.c.l.b16 %v552
        %v575 = vunpack.c.l.b16 %v553
        %v576 = vunpack.c.l.b16 %v554
        %v577 = vunpack.c.l.b16 %v555
        %v578 = vunpack.c.l.b16 %v556
        %v579 = vpack.c.b16 %v569, %v568
        %v580 = vpack.c.b16 %v571, %v570
        %v581 = vpack.c.b16 %v573, %v572
        %v582 = vpack.c.b16 %v575, %v574
        %v583 = vpack.c.b16 %v577, %v576
        %v584 = vpack.c.b16 %v578, %v578
        %v586 = vsel %vm446, %v579, 0
        %v589 = vsel %vm446, %v580, 0
        %v592 = vsel %vm446, %v581, 0
        %v595 = vsel %vm446, %v582, 0
        %v598 = vsel %vm446, %v583, 0
        %v601 = vsel %vm446, %v584, 0
        %603 = vmatpush.bf16.msra.mxu0 0
        %604 = vmatpush.bf16.msra.mxu0 0
        %605 = vmatpush.bf16.msra.mxu0 0
        %606 = vmatpush.bf16.msra.mxu0 0
        %607 = vmatpush.bf16.msra.mxu0 0
        %608 = vmatpush.bf16.msra.mxu0 0
        %609 = vmatpush.bf16.msra.mxu0 %v470
        %610 = vmatpush.bf16.msra.mxu0 %v443
        %611 = vmatmul.bf16.gmra.mxu0 %v586
        %v612 = vpop.f32.mrf.mxu0
        %v613 = vadd.f32 0.0, %v612
        %v614 = vpop.f32.mrf.mxu0
        %v615 = vadd.f32 0.0, %v614
        %616 = vmatmul.bf16.gmra.mxu0 %v589
        %v617 = vpop.f32.mrf.mxu0
        %v618 = vadd.f32 0.0, %v617
        %v619 = vpop.f32.mrf.mxu0
        %v620 = vadd.f32 0.0, %v619
        %621 = vmatmul.bf16.gmra.mxu0 %v592
        %v622 = vpop.f32.mrf.mxu0
        %v623 = vadd.f32 0.0, %v622
        %v624 = vpop.f32.mrf.mxu0
        %v625 = vadd.f32 0.0, %v624
        %626 = vmatmul.bf16.gmra.mxu0 %v595
        %v627 = vpop.f32.mrf.mxu0
        %v628 = vadd.f32 0.0, %v627
        %v629 = vpop.f32.mrf.mxu0
        %v630 = vadd.f32 0.0, %v629
        %631 = vmatmul.bf16.gmra.mxu0 %v598
        %v632 = vpop.f32.mrf.mxu0
        %v633 = vadd.f32 0.0, %v632
        %v634 = vpop.f32.mrf.mxu0
        %v635 = vadd.f32 0.0, %v634
        %636 = vmatmul.bf16.gmra.mxu0 %v601
        %v637 = vpop.f32.mrf.mxu0
        %v638 = vadd.f32 0.0, %v637
        %v639 = vpop.f32.mrf.mxu0
        %640 = vdwg.mxu0
        %v641 = vmax.f32 %v613, 0.0
        %v642 = vmax.f32 %v615, 0.0
        %v643 = vmax.f32 %v618, 0.0
        %v644 = vmax.f32 %v620, 0.0
        %v645 = vmax.f32 %v623, 0.0
        %v646 = vmax.f32 %v625, 0.0
        %v647 = vmax.f32 %v628, 0.0
        %v648 = vmax.f32 %v630, 0.0
        %v649 = vmax.f32 %v633, 0.0
        %v650 = vmax.f32 %v635, 0.0
        %v651 = vmax.f32 %v638, 0.0
        %v652 = vmul.f32 %v641, %v521
        %v653 = vmul.f32 %v642, %v521
        %v654 = vmul.f32 %v643, %v521
        %v655 = vmul.f32 %v644, %v521
        %v656 = vmul.f32 %v645, %v521
        %v657 = vmul.f32 %v646, %v521
        %v658 = vmul.f32 %v647, %v521
        %v659 = vmul.f32 %v648, %v521
        %v660 = vmul.f32 %v649, %v521
        %v661 = vmul.f32 %v650, %v521
        %v662 = vmul.f32 %v651, %v521
        %v663 = vadd.f32 %v652, %v533
        %v664 = vadd.f32 %v653, %v533
        %v665 = vadd.f32 %v654, %v533
        %v666 = vadd.f32 %v655, %v533
        %v667 = vadd.f32 %v656, %v533
        %v668 = vadd.f32 %v657, %v533
        %v669 = vadd.f32 %v658, %v533
        %v670 = vadd.f32 %v659, %v533
        %v671 = vadd.f32 %v660, %v533
        %v672 = vadd.f32 %v661, %v533
        %v673 = vadd.f32 %v662, %v533
        %v674 = vmax.f32 %v534, %v663
        %v675 = vmax.f32 %v535, %v664
        %v676 = vmax.f32 %v536, %v665
        %v677 = vmax.f32 %v537, %v666
        %v678 = vmax.f32 %v538, %v667
        %v679 = vmax.f32 %v539, %v668
        %v680 = vmax.f32 %v540, %v669
        %v681 = vmax.f32 %v541, %v670
        %v682 = vmax.f32 %v542, %v671
        %v683 = vmax.f32 %v543, %v672
        %v684 = vmax.f32 %v544, %v673
        %s685 = scalar_lea.vmem %s361, 88 [#allocation2]
        %v686 = vld [vmem:[%s685] sm:$0xf]
        %v687 = vld [vmem:[%s685 + $0x4] sm:$0xf]
        %v688 = vld [vmem:[%s685 + $0x8] sm:$0xf]
        %v689 = vld [vmem:[%s685 + $0xc] sm:$0xf]
        %v690 = vld [vmem:[%s685 + $0x10] sm:$0xf]
        %v691 = vld [vmem:[%s685 + $0x14] sm:$0xf]
        %v692 = vld [vmem:[%s685 + $0x18] sm:$0xf]
        %v693 = vld [vmem:[%s685 + $0x1c] sm:$0xf]
        %v694 = vld [vmem:[%s685 + $0x20] sm:$0xf]
        %v695 = vld [vmem:[%s685 + $0x24] sm:$0xf]
        %v696 = vld [vmem:[%s685 + $0x28] sm:$0xf]
        %v708 = vunpack.c.l.b16 %v686
        %v709 = vunpack.c.l.b16 %v687
        %v710 = vunpack.c.l.b16 %v688
        %v711 = vunpack.c.l.b16 %v689
        %v712 = vunpack.c.l.b16 %v690
        %v713 = vunpack.c.l.b16 %v691
        %v714 = vunpack.c.l.b16 %v692
        %v715 = vunpack.c.l.b16 %v693
        %v716 = vunpack.c.l.b16 %v694
        %v717 = vunpack.c.l.b16 %v695
        %v718 = vunpack.c.l.b16 %v696
        %v719 = vpack.c.b16 %v709, %v708
        %v720 = vpack.c.b16 %v711, %v710
        %v721 = vpack.c.b16 %v713, %v712
        %v722 = vpack.c.b16 %v715, %v714
        %v723 = vpack.c.b16 %v717, %v716
        %v724 = vpack.c.b16 %v718, %v718
        %v726 = vsel %vm446, %v719, 0
        %v729 = vsel %vm446, %v720, 0
        %v732 = vsel %vm446, %v721, 0
        %v735 = vsel %vm446, %v722, 0
        %v738 = vsel %vm446, %v723, 0
        %v741 = vsel %vm446, %v724, 0
        %743 = vmatpush.bf16.msra.mxu0 0
        %744 = vmatpush.bf16.msra.mxu0 0
        %745 = vmatpush.bf16.msra.mxu0 0
        %746 = vmatpush.bf16.msra.mxu0 0
        %747 = vmatpush.bf16.msra.mxu0 0
        %748 = vmatpush.bf16.msra.mxu0 0
        %749 = vmatpush.bf16.msra.mxu0 %v470
        %750 = vmatpush.bf16.msra.mxu0 %v443
        %751 = vmatmul.bf16.gmra.mxu0 %v726
        %v752 = vpop.f32.mrf.mxu0
        %v753 = vadd.f32 0.0, %v752
        %v754 = vpop.f32.mrf.mxu0
        %v755 = vadd.f32 0.0, %v754
        %756 = vmatmul.bf16.gmra.mxu0 %v729
        %v757 = vpop.f32.mrf.mxu0
        %v758 = vadd.f32 0.0, %v757
        %v759 = vpop.f32.mrf.mxu0
        %v760 = vadd.f32 0.0, %v759
        %761 = vmatmul.bf16.gmra.mxu0 %v732
        %v762 = vpop.f32.mrf.mxu0
        %v763 = vadd.f32 0.0, %v762
        %v764 = vpop.f32.mrf.mxu0
        %v765 = vadd.f32 0.0, %v764
        %766 = vmatmul.bf16.gmra.mxu0 %v735
        %v767 = vpop.f32.mrf.mxu0
        %v768 = vadd.f32 0.0, %v767
        %v769 = vpop.f32.mrf.mxu0
        %v770 = vadd.f32 0.0, %v769
        %771 = vmatmul.bf16.gmra.mxu0 %v738
        %v772 = vpop.f32.mrf.mxu0
        %v773 = vadd.f32 0.0, %v772
        %v774 = vpop.f32.mrf.mxu0
        %v775 = vadd.f32 0.0, %v774
        %776 = vmatmul.bf16.gmra.mxu0 %v741
        %v777 = vpop.f32.mrf.mxu0
        %v778 = vadd.f32 0.0, %v777
        %v779 = vpop.f32.mrf.mxu0
        %780 = vdwg.mxu0
        %v781 = vmax.f32 %v753, 0.0
        %v782 = vmax.f32 %v755, 0.0
        %v783 = vmax.f32 %v758, 0.0
        %v784 = vmax.f32 %v760, 0.0
        %v785 = vmax.f32 %v763, 0.0
        %v786 = vmax.f32 %v765, 0.0
        %v787 = vmax.f32 %v768, 0.0
        %v788 = vmax.f32 %v770, 0.0
        %v789 = vmax.f32 %v773, 0.0
        %v790 = vmax.f32 %v775, 0.0
        %v791 = vmax.f32 %v778, 0.0
        %v792 = vmul.f32 %v781, %v521
        %v793 = vmul.f32 %v782, %v521
        %v794 = vmul.f32 %v783, %v521
        %v795 = vmul.f32 %v784, %v521
        %v796 = vmul.f32 %v785, %v521
        %v797 = vmul.f32 %v786, %v521
        %v798 = vmul.f32 %v787, %v521
        %v799 = vmul.f32 %v788, %v521
        %v800 = vmul.f32 %v789, %v521
        %v801 = vmul.f32 %v790, %v521
        %v802 = vmul.f32 %v791, %v521
        %v803 = vadd.f32 %v792, %v533
        %v804 = vadd.f32 %v793, %v533
        %v805 = vadd.f32 %v794, %v533
        %v806 = vadd.f32 %v795, %v533
        %v807 = vadd.f32 %v796, %v533
        %v808 = vadd.f32 %v797, %v533
        %v809 = vadd.f32 %v798, %v533
        %v810 = vadd.f32 %v799, %v533
        %v811 = vadd.f32 %v800, %v533
        %v812 = vadd.f32 %v801, %v533
        %v813 = vadd.f32 %v802, %v533
        %v814 = vmax.f32 %v674, %v803
        %v815 = vmax.f32 %v675, %v804
        %v816 = vmax.f32 %v676, %v805
        %v817 = vmax.f32 %v677, %v806
        %v818 = vmax.f32 %v678, %v807
        %v819 = vmax.f32 %v679, %v808
        %v820 = vmax.f32 %v680, %v809
        %v821 = vmax.f32 %v681, %v810
        %v822 = vmax.f32 %v682, %v811
        %v823 = vmax.f32 %v683, %v812
        %v824 = vmax.f32 %v684, %v813
        %s825 = scalar_lea.vmem %s361, 132 [#allocation2]
        %v826 = vld [vmem:[%s825] sm:$0xf]
        %v827 = vld [vmem:[%s825 + $0x4] sm:$0xf]
        %v828 = vld [vmem:[%s825 + $0x8] sm:$0xf]
        %v829 = vld [vmem:[%s825 + $0xc] sm:$0xf]
        %v830 = vld [vmem:[%s825 + $0x10] sm:$0xf]
        %v831 = vld [vmem:[%s825 + $0x14] sm:$0xf]
        %v832 = vld [vmem:[%s825 + $0x18] sm:$0xf]
        %v833 = vld [vmem:[%s825 + $0x1c] sm:$0xf]
        %v834 = vld [vmem:[%s825 + $0x20] sm:$0xf]
        %v835 = vld [vmem:[%s825 + $0x24] sm:$0xf]
        %v836 = vld [vmem:[%s825 + $0x28] sm:$0xf]
        %v848 = vunpack.c.l.b16 %v826
        %v849 = vunpack.c.l.b16 %v827
        %v850 = vunpack.c.l.b16 %v828
        %v851 = vunpack.c.l.b16 %v829
        %v852 = vunpack.c.l.b16 %v830
        %v853 = vunpack.c.l.b16 %v831
        %v854 = vunpack.c.l.b16 %v832
        %v855 = vunpack.c.l.b16 %v833
        %v856 = vunpack.c.l.b16 %v834
        %v857 = vunpack.c.l.b16 %v835
        %v858 = vunpack.c.l.b16 %v836
        %v859 = vpack.c.b16 %v849, %v848
        %v860 = vpack.c.b16 %v851, %v850
        %v861 = vpack.c.b16 %v853, %v852
        %v862 = vpack.c.b16 %v855, %v854
        %v863 = vpack.c.b16 %v857, %v856
        %v864 = vpack.c.b16 %v858, %v858
        %v866 = vsel %vm446, %v859, 0
        %v869 = vsel %vm446, %v860, 0
        %v872 = vsel %vm446, %v861, 0
        %v875 = vsel %vm446, %v862, 0
        %v878 = vsel %vm446, %v863, 0
        %v881 = vsel %vm446, %v864, 0
        %883 = vmatpush.bf16.msra.mxu0 0
        %884 = vmatpush.bf16.msra.mxu0 0
        %885 = vmatpush.bf16.msra.mxu0 0
        %886 = vmatpush.bf16.msra.mxu0 0
        %887 = vmatpush.bf16.msra.mxu0 0
        %888 = vmatpush.bf16.msra.mxu0 0
        %889 = vmatpush.bf16.msra.mxu0 %v470
        %890 = vmatpush.bf16.msra.mxu0 %v443
        %891 = vmatmul.bf16.gmra.mxu0 %v866
        %v892 = vpop.f32.mrf.mxu0
        %v893 = vadd.f32 0.0, %v892
        %v894 = vpop.f32.mrf.mxu0
        %v895 = vadd.f32 0.0, %v894
        %896 = vmatmul.bf16.gmra.mxu0 %v869
        %v897 = vpop.f32.mrf.mxu0
        %v898 = vadd.f32 0.0, %v897
        %v899 = vpop.f32.mrf.mxu0
        %v900 = vadd.f32 0.0, %v899
        %901 = vmatmul.bf16.gmra.mxu0 %v872
        %v902 = vpop.f32.mrf.mxu0
        %v903 = vadd.f32 0.0, %v902
        %v904 = vpop.f32.mrf.mxu0
        %v905 = vadd.f32 0.0, %v904
        %906 = vmatmul.bf16.gmra.mxu0 %v875
        %v907 = vpop.f32.mrf.mxu0
        %v908 = vadd.f32 0.0, %v907
        %v909 = vpop.f32.mrf.mxu0
        %v910 = vadd.f32 0.0, %v909
        %911 = vmatmul.bf16.gmra.mxu0 %v878
        %v912 = vpop.f32.mrf.mxu0
        %v913 = vadd.f32 0.0, %v912
        %v914 = vpop.f32.mrf.mxu0
        %v915 = vadd.f32 0.0, %v914
        %916 = vmatmul.bf16.gmra.mxu0 %v881
        %v917 = vpop.f32.mrf.mxu0
        %v918 = vadd.f32 0.0, %v917
        %v919 = vpop.f32.mrf.mxu0
        %920 = vdwg.mxu0
        %v921 = vmax.f32 %v893, 0.0
        %v922 = vmax.f32 %v895, 0.0
        %v923 = vmax.f32 %v898, 0.0
        %v924 = vmax.f32 %v900, 0.0
        %v925 = vmax.f32 %v903, 0.0
        %v926 = vmax.f32 %v905, 0.0
        %v927 = vmax.f32 %v908, 0.0
        %v928 = vmax.f32 %v910, 0.0
        %v929 = vmax.f32 %v913, 0.0
        %v930 = vmax.f32 %v915, 0.0
        %v931 = vmax.f32 %v918, 0.0
        %v932 = vmul.f32 %v921, %v521
        %v933 = vmul.f32 %v922, %v521
        %v934 = vmul.f32 %v923, %v521
        %v935 = vmul.f32 %v924, %v521
        %v936 = vmul.f32 %v925, %v521
        %v937 = vmul.f32 %v926, %v521
        %v938 = vmul.f32 %v927, %v521
        %v939 = vmul.f32 %v928, %v521
        %v940 = vmul.f32 %v929, %v521
        %v941 = vmul.f32 %v930, %v521
        %v942 = vmul.f32 %v931, %v521
        %v943 = vadd.f32 %v932, %v533
        %v944 = vadd.f32 %v933, %v533
        %v945 = vadd.f32 %v934, %v533
        %v946 = vadd.f32 %v935, %v533
        %v947 = vadd.f32 %v936, %v533
        %v948 = vadd.f32 %v937, %v533
        %v949 = vadd.f32 %v938, %v533
        %v950 = vadd.f32 %v939, %v533
        %v951 = vadd.f32 %v940, %v533
        %v952 = vadd.f32 %v941, %v533
        %v953 = vadd.f32 %v942, %v533
        %v954 = vmax.f32 %v814, %v943
        %v955 = vmax.f32 %v815, %v944
        %v956 = vmax.f32 %v816, %v945
        %v957 = vmax.f32 %v817, %v946
        %v958 = vmax.f32 %v818, %v947
        %v959 = vmax.f32 %v819, %v948
        %v960 = vmax.f32 %v820, %v949
        %v961 = vmax.f32 %v821, %v950
        %v962 = vmax.f32 %v822, %v951
        %v963 = vmax.f32 %v823, %v952
        %v964 = vmax.f32 %v824, %v953
        %v965 = vpack.c.bf16 %v954, %v954
        %v966 = vpack.c.bf16 %v955, %v955
        %v967 = vpack.c.bf16 %v956, %v956
        %v968 = vpack.c.bf16 %v957, %v957
        %v969 = vpack.c.bf16 %v958, %v958
        %v970 = vpack.c.bf16 %v959, %v959
        %v971 = vpack.c.bf16 %v960, %v960
        %v972 = vpack.c.bf16 %v961, %v961
        %v973 = vpack.c.bf16 %v962, %v962
        %v974 = vpack.c.bf16 %v963, %v963
        %v975 = vpack.c.bf16 %v964, %v964
        %976 = vst [vmem:[%s387] sm:$0xf] %v965
        %977 = vst [vmem:[%s387 + $0x4] sm:$0xf] %v966
        %978 = vst [vmem:[%s387 + $0x8] sm:$0xf] %v967
        %979 = vst [vmem:[%s387 + $0xc] sm:$0xf] %v968
        %980 = vst [vmem:[%s387 + $0x10] sm:$0xf] %v969
        %981 = vst [vmem:[%s387 + $0x14] sm:$0xf] %v970
        %982 = vst [vmem:[%s387 + $0x18] sm:$0xf] %v971
        %983 = vst [vmem:[%s387 + $0x1c] sm:$0xf] %v972
        %984 = vst [vmem:[%s387 + $0x20] sm:$0xf] %v973
        %985 = vst [vmem:[%s387 + $0x24] sm:$0xf] %v974
        %986 = vst [vmem:[%s387 + $0x28] sm:$0xf] %v975
        %s987 = smul.u32 11, %s14
        %p988 = scmp.lt.s32.totalorder %s987, 21
        %s989 = scalar_select %p988, %s987, 21
        %s990 = smul.addr %s989, 4
        %s991 = scalar_lea.vmem %s3, %s990
        // Predicated region
        $region74: #{_lambda_.2} parent=68 // pred_check
          %p992 = pneg %p100
        $region75: #{_lambda_.2} parent=68 // pred_check_branch
          %994 = sbr.rel (%p992) target = $region77
        $region76: #{_lambda_.2} parent=68 // pred_region
          %s995 = smul.u32 11, %s14
        $region77: #{_lambda_.2} parent=68 // pred_fallthru
          _
      $region69: #{_lambda_.2} parent=5 // pred_fallthru
        _
      %p996 = scmp.le.s32.totalorder 2, %s9
      // Predicated region
      $region78: #{_lambda_.2} parent=5 // pred_check
        %p997 = pneg %p996
      $region79: #{_lambda_.2} parent=5 // pred_check_branch
        %999 = sbr.rel (%p997) target = $region81
      $region80: #{_lambda_.2} parent=5 // pred_region
        %s1000 = ssub.s32 %s9, 2
        // Predicated region
        $region82: #{_lambda_.2} parent=80 // pred_check
          %p1001 = pneg %p106
        $region83: #{_lambda_.2} parent=80 // pred_check_branch
          %1003 = sbr.rel (%p1001) target = $region85
        $region84: #{_lambda_.2} parent=80 // pred_region
          %s1004 = smul.u32 11, %s15
          %p1005 = scmp.lt.s32.totalorder %s1004, 21
          %s1006 = scalar_select %p1005, %s1004, 21
          %s1007 = smul.addr %s1006, 4
          %s1008 = scalar_lea.vmem %s3, %s1007
        $region85: #{_lambda_.2} parent=80 // pred_fallthru
          _
      $region81: #{_lambda_.2} parent=5 // pred_fallthru
        _
    $region6: #{_lambda_.2} parent=1 // loop_footer
      %s13 = sadd.s32 1, %s9
    $region7: #{_lambda_.2} parent=1 // loop_footer_branch
      %8 = sbr.rel target = $region3
    $region8: #{_lambda_.2} parent=1 // loop_exit
      _

// kernel: _lambda_.3
$region0: #{_lambda_.3}
  #allocation0 [shape = 'u32[]', space=smem, size = 0x4, offset = 0x4, fixed_abs, tag = 'smem constant byte address 0x4 - core index']
  #allocation1 [shape = 'u32[72,128]{1,0:T(1,128)}', space=vmem, size = 0x9000, scoped, tag = 'internal scratch']
  #allocation2 [shape = 'f32[16,1152]{1,0:T(8,128)}', space=vmem, size = 0x12000, scoped, tag = 'scratch operand']
  %s0 = inlined_call_operand.vmem [shape: bf16[2,9,9,128], index: 0, kind: input, shape index: {}]
  %s1 = inlined_call_operand.vmem [shape: bf16[1152,256], index: 1, kind: input, shape index: {}]
  %s2 = inlined_call_operand.vmem [shape: f32[2,256], index: 2, kind: input, shape index: {}]
  %s3 = inlined_call_operand.vmem [shape: bf16[256,128], index: 3, kind: input, shape index: {}]
  %s4 = inlined_call_operand.vmem [shape: f32[2,128], index: 4, kind: input, shape index: {}]
  %s5 = inlined_call_operand.vmem [shape: bf16[128,64], index: 5, kind: input, shape index: {}]
  %s6 = inlined_call_operand.vmem [shape: f32[2,64], index: 6, kind: input, shape index: {}]
  %s7 = inlined_call_operand.vmem [shape: bf16[64,10], index: 7, kind: input, shape index: {}]
  %s8 = inlined_call_operand.hbm [shape: f32[2,1,10], index: 8, kind: output, shape index: {}]
  %s9 = sld [smem:[#allocation0]]
  $region65: #{_lambda_.3} parent=0
    _
  %s11 = ssub.s32 1, %s9
  %s12 = scalar_select 0, %s11, %s9
  $region1: #{_lambda_.3} parent=0
    #allocation3 [shape = 'u8[1024]{0}', space=vmem, size = 0x400, scoped, tag = 'output window, operand 0']
    #allocation4 [shape = 's32[2]{0}', space=sflag, size = 0x8, scoped, tag = 'scoped memory for _lambda_.3']
    %13 = vsyncpa [#allocation4], 0
    %s14 = scalar_lea.sflag [#allocation4], 1
    %15 = vsyncpa %s14, 0
    loop: start=0, step=1, limit=4
    $region2: #{_lambda_.3} parent=1 // loop_pre_header
      _
    $region3: #{_lambda_.3} parent=1 // loop_header
      %s17 = sphi 0, %s21
      %p18 = scmp.ge.s32.totalorder %s17, 4
      %s27 = sphi 0, %s29
      %s30 = sphi 0, %s27
      %s31 = sphi 0, %s30
      %s47 = sphi 0, %s31
      %s51 = sphi 0, %s51
      %s53 = sphi 0, %s51
      %s54 = sphi 0, %s53
      %s68 = sphi 0, %s54
      %s72 = sphi 0, %s72
      %s74 = sphi 0, %s72
      %s75 = sphi 0, %s74
      %s89 = sphi 0, %s75
      %s93 = sphi 0, %s93
      %s95 = sphi 0, %s93
      %s96 = sphi 0, %s95
      %s110 = sphi 0, %s96
      %s114 = sphi 0, %s114
      %s116 = sphi 0, %s114
      %s117 = sphi 0, %s116
      %s131 = sphi 0, %s117
      %s135 = sphi 0, %s135
      %s137 = sphi 0, %s135
      %s138 = sphi 0, %s137
      %s152 = sphi 0, %s138
      %s156 = sphi 0, %s156
      %s158 = sphi 0, %s156
      %s159 = sphi 0, %s158
      %s173 = sphi 0, %s159
      %s177 = sphi 0, %s177
      %s179 = sphi 0, %s177
      %s180 = sphi 0, %s179
      %s194 = sphi 0, %s180
      %s200 = sphi 0, %s202
      %s203 = sphi 0, %s200
      %s204 = sphi 0, %s203
      %s220 = sphi 0, %s204
    $region4: #{_lambda_.3} parent=1 // loop_header_branch
      %20 = sbr.rel (%p18) target = $region8
    $region5: #{_lambda_.3} parent=1 // loop_body
      %s22 = ssub.s32 %s17, 1
      %s23 = ssub.s32 %s17, 2
      %s24 = sadd.s32 %s17, 1
      %s25 = ssub.s32 %s17, %s24
      %p26 = scmp.eq.s32.totalorder %s25, 0
      %s28 = sadd.s32 %s27, 1
      %s29 = scalar_select %p26, %s27, %s28
      %p32 = pneg %p26
      %p33 = scmp.eq.s32.totalorder %s17, 1
      %p34 = por %p32, %p33
      %p35 = scmp.ne.s32.totalorder %s27, %s30
      %p36 = scmp.eq.s32.totalorder %s17, 0
      %p37 = por %p35, %p36
      %p38 = scmp.ne.s32.totalorder %s27, %s30
      %p39 = scmp.eq.s32.totalorder %s22, 1
      %p40 = por %p38, %p39
      %p41 = scmp.ne.s32.totalorder %s30, %s31
      %p42 = scmp.eq.s32.totalorder %s22, 0
      %p43 = por %p41, %p42
      %p44 = scmp.ne.s32.totalorder %s30, %s31
      %p45 = scmp.eq.s32.totalorder %s23, 1
      %p46 = por %p44, %p45
      %p48 = scmp.ne.s32.totalorder %s31, %s47
      %p49 = scmp.eq.s32.totalorder %s23, 0
      %p50 = por %p48, %p49
      %s52 = sadd.s32 %s51, 1
      %p55 = scmp.eq.s32.totalorder %s17, 1
      %p56 = scmp.ne.s32.totalorder %s51, %s53
      %p57 = scmp.eq.s32.totalorder %s17, 0
      %p58 = por %p56, %p57
      %p59 = scmp.ne.s32.totalorder %s51, %s53
      %p60 = scmp.eq.s32.totalorder %s22, 1
      %p61 = por %p59, %p60
      %p62 = scmp.ne.s32.totalorder %s53, %s54
      %p63 = scmp.eq.s32.totalorder %s22, 0
      %p64 = por %p62, %p63
      %p65 = scmp.ne.s32.totalorder %s53, %s54
      %p66 = scmp.eq.s32.totalorder %s23, 1
      %p67 = por %p65, %p66
      %p69 = scmp.ne.s32.totalorder %s54, %s68
      %p70 = scmp.eq.s32.totalorder %s23, 0
      %p71 = por %p69, %p70
      %s73 = sadd.s32 %s72, 1
      %p76 = scmp.eq.s32.totalorder %s17, 1
      %p77 = scmp.ne.s32.totalorder %s72, %s74
      %p78 = scmp.eq.s32.totalorder %s17, 0
      %p79 = por %p77, %p78
      %p80 = scmp.ne.s32.totalorder %s72, %s74
      %p81 = scmp.eq.s32.totalorder %s22, 1
      %p82 = por %p80, %p81
      %p83 = scmp.ne.s32.totalorder %s74, %s75
      %p84 = scmp.eq.s32.totalorder %s22, 0
      %p85 = por %p83, %p84
      %p86 = scmp.ne.s32.totalorder %s74, %s75
      %p87 = scmp.eq.s32.totalorder %s23, 1
      %p88 = por %p86, %p87
      %p90 = scmp.ne.s32.totalorder %s75, %s89
      %p91 = scmp.eq.s32.totalorder %s23, 0
      %p92 = por %p90, %p91
      %s94 = sadd.s32 %s93, 1
      %p97 = scmp.eq.s32.totalorder %s17, 1
      %p98 = scmp.ne.s32.totalorder %s93, %s95
      %p99 = scmp.eq.s32.totalorder %s17, 0
      %p100 = por %p98, %p99
      %p101 = scmp.ne.s32.totalorder %s93, %s95
      %p102 = scmp.eq.s32.totalorder %s22, 1
      %p103 = por %p101, %p102
      %p104 = scmp.ne.s32.totalorder %s95, %s96
      %p105 = scmp.eq.s32.totalorder %s22, 0
      %p106 = por %p104, %p105
      %p107 = scmp.ne.s32.totalorder %s95, %s96
      %p108 = scmp.eq.s32.totalorder %s23, 1
      %p109 = por %p107, %p108
      %p111 = scmp.ne.s32.totalorder %s96, %s110
      %p112 = scmp.eq.s32.totalorder %s23, 0
      %p113 = por %p111, %p112
      %s115 = sadd.s32 %s114, 1
      %p118 = scmp.eq.s32.totalorder %s17, 1
      %p119 = scmp.ne.s32.totalorder %s114, %s116
      %p120 = scmp.eq.s32.totalorder %s17, 0
      %p121 = por %p119, %p120
      %p122 = scmp.ne.s32.totalorder %s114, %s116
      %p123 = scmp.eq.s32.totalorder %s22, 1
      %p124 = por %p122, %p123
      %p125 = scmp.ne.s32.totalorder %s116, %s117
      %p126 = scmp.eq.s32.totalorder %s22, 0
      %p127 = por %p125, %p126
      %p128 = scmp.ne.s32.totalorder %s116, %s117
      %p129 = scmp.eq.s32.totalorder %s23, 1
      %p130 = por %p128, %p129
      %p132 = scmp.ne.s32.totalorder %s117, %s131
      %p133 = scmp.eq.s32.totalorder %s23, 0
      %p134 = por %p132, %p133
      %s136 = sadd.s32 %s135, 1
      %p139 = scmp.eq.s32.totalorder %s17, 1
      %p140 = scmp.ne.s32.totalorder %s135, %s137
      %p141 = scmp.eq.s32.totalorder %s17, 0
      %p142 = por %p140, %p141
      %p143 = scmp.ne.s32.totalorder %s135, %s137
      %p144 = scmp.eq.s32.totalorder %s22, 1
      %p145 = por %p143, %p144
      %p146 = scmp.ne.s32.totalorder %s137, %s138
      %p147 = scmp.eq.s32.totalorder %s22, 0
      %p148 = por %p146, %p147
      %p149 = scmp.ne.s32.totalorder %s137, %s138
      %p150 = scmp.eq.s32.totalorder %s23, 1
      %p151 = por %p149, %p150
      %p153 = scmp.ne.s32.totalorder %s138, %s152
      %p154 = scmp.eq.s32.totalorder %s23, 0
      %p155 = por %p153, %p154
      %s157 = sadd.s32 %s156, 1
      %p160 = scmp.eq.s32.totalorder %s17, 1
      %p161 = scmp.ne.s32.totalorder %s156, %s158
      %p162 = scmp.eq.s32.totalorder %s17, 0
      %p163 = por %p161, %p162
      %p164 = scmp.ne.s32.totalorder %s156, %s158
      %p165 = scmp.eq.s32.totalorder %s22, 1
      %p166 = por %p164, %p165
      %p167 = scmp.ne.s32.totalorder %s158, %s159
      %p168 = scmp.eq.s32.totalorder %s22, 0
      %p169 = por %p167, %p168
      %p170 = scmp.ne.s32.totalorder %s158, %s159
      %p171 = scmp.eq.s32.totalorder %s23, 1
      %p172 = por %p170, %p171
      %p174 = scmp.ne.s32.totalorder %s159, %s173
      %p175 = scmp.eq.s32.totalorder %s23, 0
      %p176 = por %p174, %p175
      %s178 = sadd.s32 %s177, 1
      %p181 = scmp.eq.s32.totalorder %s17, 1
      %p182 = scmp.ne.s32.totalorder %s177, %s179
      %p183 = scmp.eq.s32.totalorder %s17, 0
      %p184 = por %p182, %p183
      %p185 = scmp.ne.s32.totalorder %s177, %s179
      %p186 = scmp.eq.s32.totalorder %s22, 1
      %p187 = por %p185, %p186
      %p188 = scmp.ne.s32.totalorder %s179, %s180
      %p189 = scmp.eq.s32.totalorder %s22, 0
      %p190 = por %p188, %p189
      %p191 = scmp.ne.s32.totalorder %s179, %s180
      %p192 = scmp.eq.s32.totalorder %s23, 1
      %p193 = por %p191, %p192
      %p195 = scmp.ne.s32.totalorder %s180, %s194
      %p196 = scmp.eq.s32.totalorder %s23, 0
      %p197 = por %p195, %p196
      %s198 = ssub.s32 %s17, %s24
      %p199 = scmp.eq.s32.totalorder %s198, 0
      %s201 = sadd.s32 %s200, 1
      %s202 = scalar_select %p199, %s200, %s201
      %p205 = pneg %p199
      %p206 = scmp.eq.s32.totalorder %s17, 1
      %p207 = por %p205, %p206
      %p208 = scmp.ne.s32.totalorder %s200, %s203
      %p209 = scmp.eq.s32.totalorder %s17, 0
      %p210 = por %p208, %p209
      %p211 = scmp.ne.s32.totalorder %s200, %s203
      %p212 = scmp.eq.s32.totalorder %s22, 1
      %p213 = por %p211, %p212
      %p214 = scmp.ne.s32.totalorder %s203, %s204
      %p215 = scmp.eq.s32.totalorder %s22, 0
      %p216 = por %p214, %p215
      %p217 = scmp.ne.s32.totalorder %s203, %s204
      %p218 = scmp.eq.s32.totalorder %s23, 1
      %p219 = por %p217, %p218
      %p221 = scmp.ne.s32.totalorder %s204, %s220
      %p222 = scmp.eq.s32.totalorder %s23, 0
      %p223 = por %p221, %p222
      %p224 = scmp.le.s32.totalorder 1, %s17
      %p225 = scmp.lt.s32.totalorder %s17, 3
      %p226 = pnand %p224, %p225
      %p227 = pneg %p226
      // Predicated region
      $region9: #{_lambda_.3} parent=5 // pred_check
        _
      $region10: #{_lambda_.3} parent=5 // pred_check_branch
        %229 = sbr.rel (%p226) target = $region12
      $region11: #{_lambda_.3} parent=5 // pred_region
        %s230 = ssub.s32 %s17, 1
        // Predicated region
        $region13: #{_lambda_.3} parent=11 // pred_check
          %p231 = pneg %p64
        $region14: #{_lambda_.3} parent=11 // pred_check_branch
          %233 = sbr.rel (%p231) target = $region16
        $region15: #{_lambda_.3} parent=11 // pred_region
          _
        $region16: #{_lambda_.3} parent=11 // pred_fallthru
          _
        // Predicated region
        $region17: #{_lambda_.3} parent=11 // pred_check
          %p234 = pneg %p85
        $region18: #{_lambda_.3} parent=11 // pred_check_branch
          %236 = sbr.rel (%p234) target = $region20
        $region19: #{_lambda_.3} parent=11 // pred_region
          _
        $region20: #{_lambda_.3} parent=11 // pred_fallthru
          _
        // Predicated region
        $region21: #{_lambda_.3} parent=11 // pred_check
          %p237 = pneg %p106
        $region22: #{_lambda_.3} parent=11 // pred_check_branch
          %239 = sbr.rel (%p237) target = $region24
        $region23: #{_lambda_.3} parent=11 // pred_region
          _
        $region24: #{_lambda_.3} parent=11 // pred_fallthru
          _
        // Predicated region
        $region25: #{_lambda_.3} parent=11 // pred_check
          %p240 = pneg %p127
        $region26: #{_lambda_.3} parent=11 // pred_check_branch
          %242 = sbr.rel (%p240) target = $region28
        $region27: #{_lambda_.3} parent=11 // pred_region
          _
        $region28: #{_lambda_.3} parent=11 // pred_fallthru
          _
        // Predicated region
        $region29: #{_lambda_.3} parent=11 // pred_check
          %p243 = pneg %p148
        $region30: #{_lambda_.3} parent=11 // pred_check_branch
          %245 = sbr.rel (%p243) target = $region32
        $region31: #{_lambda_.3} parent=11 // pred_region
          _
        $region32: #{_lambda_.3} parent=11 // pred_fallthru
          _
        // Predicated region
        $region33: #{_lambda_.3} parent=11 // pred_check
          %p246 = pneg %p169
        $region34: #{_lambda_.3} parent=11 // pred_check_branch
          %248 = sbr.rel (%p246) target = $region36
        $region35: #{_lambda_.3} parent=11 // pred_region
          _
        $region36: #{_lambda_.3} parent=11 // pred_fallthru
          _
        // Predicated region
        $region37: #{_lambda_.3} parent=11 // pred_check
          %p249 = pneg %p190
        $region38: #{_lambda_.3} parent=11 // pred_check_branch
          %251 = sbr.rel (%p249) target = $region40
        $region39: #{_lambda_.3} parent=11 // pred_region
          _
        $region40: #{_lambda_.3} parent=11 // pred_fallthru
          _
      $region12: #{_lambda_.3} parent=5 // pred_fallthru
        _
      %p252 = scmp.lt.s32.totalorder %s17, 2
      // Predicated region
      $region41: #{_lambda_.3} parent=5 // pred_check
        %p253 = pneg %p252
      $region42: #{_lambda_.3} parent=5 // pred_check_branch
        %255 = sbr.rel (%p253) target = $region44
      $region43: #{_lambda_.3} parent=5 // pred_region
        // Predicated region
        $region45: #{_lambda_.3} parent=43 // pred_check
          %p256 = pneg %p37
        $region46: #{_lambda_.3} parent=43 // pred_check_branch
          %258 = sbr.rel (%p256) target = $region48
        $region47: #{_lambda_.3} parent=43 // pred_region
          %p259 = scmp.lt.s32.totalorder %s17, 1
          %s260 = scalar_select %p259, %s17, 1
          %s261 = smul.addr %s260, 18
          %s262 = smul.addr %s261, 4
          %s263 = scalar_lea.vmem %s0, %s262
        $region48: #{_lambda_.3} parent=43 // pred_fallthru
          _
      $region44: #{_lambda_.3} parent=5 // pred_fallthru
        _
      %p264 = scmp.le.s32.totalorder 1, %s17
      %p265 = scmp.lt.s32.totalorder %s17, 3
      %p266 = pnand %p264, %p265
      %p267 = pneg %p266
      // Predicated region
      $region49: #{_lambda_.3} parent=5 // pred_check
        _
      $region50: #{_lambda_.3} parent=5 // pred_check_branch
        %269 = sbr.rel (%p266) target = $region52
      $region51: #{_lambda_.3} parent=5 // pred_region
        %s270 = ssub.s32 %s17, 1
        %p271 = scmp.lt.s32.totalorder %s22, 1
        %s272 = scalar_select %p271, %s22, 1
        %s273 = smul.addr %s272, 18
        %s274 = smul.addr %s273, 4
        %s275 = scalar_lea.vmem %s0, %s274
        %p276 = pneg %p43
        %p277 = pneg %p40
        %p278 = pneg %p64
        %p279 = pneg %p61
        %p280 = pneg %p85
        %p281 = pneg %p82
        %p282 = pneg %p106
        %p283 = pneg %p103
        %p284 = pneg %p127
        %p285 = pneg %p124
        %p286 = pneg %p148
        %p287 = pneg %p145
        %p288 = pneg %p169
        %p289 = pneg %p166
        %p290 = pneg %p190
        %p291 = pneg %p187
        %p292 = pneg %p216
        %p293 = pneg %p213
        %s294 = sand.u32 %s203, 1
        %s295 = scalar_lea.sflag [#allocation4], %s294
        %s296 = sand.u32 %s203, 1
        %s297 = scalar_lea.vmem [#allocation3], %s296
        %p298 = scmp.lt.s32.totalorder %s22, 1
        %s299 = scalar_select %p298, %s22, 1
        %s300 = smul.addr %s299, 18
        %s301 = smul.addr %s300, 4
        %s302 = scalar_lea.vmem %s0, %s301
        %v304 = vld [vmem:[%s302] sm:$0x1]
        %v305 = vld [vmem:[%s302] sm:$0x2]
        %v306 = vld [vmem:[%s302] sm:$0x4]
        %s307 = scalar_lea.vmem %s302, 16
        %v308 = vld [vmem:[%s307] sm:$0x1]
        %v309 = vld [vmem:[%s307] sm:$0x2]
        %v310 = vld [vmem:[%s307] sm:$0x4]
        %s311 = scalar_lea.vmem %s302, 32
        %v312 = vld [vmem:[%s311] sm:$0x1]
        %v313 = vld [vmem:[%s311] sm:$0x2]
        %v314 = vld [vmem:[%s311] sm:$0x4]
        %v316 = vunpack.c.l.b16 %v305
        %v317 = vpack.c.b16 %v316, %v316
        %v318 = vrot.slane %v317, 1
        %v321 = vunpack.c.l.b16 %v306
        %v322 = vpack.c.b16 %v321, %v321
        %v323 = vrot.slane %v322, 2
        %v326 = vunpack.c.l.b16 %v309
        %v327 = vpack.c.b16 %v326, %v326
        %v328 = vrot.slane %v327, 1
        %v331 = vunpack.c.l.b16 %v310
        %v332 = vpack.c.b16 %v331, %v331
        %v333 = vrot.slane %v332, 2
        %v336 = vunpack.c.l.b16 %v313
        %v337 = vpack.c.b16 %v336, %v336
        %v338 = vrot.slane %v337, 1
        %v341 = vunpack.c.l.b16 %v314
        %v342 = vpack.c.b16 %v341, %v341
        %v343 = vrot.slane %v342, 2
        %v345 = vunpack.c.l.bf16 %v304
        %v346 = vunpack.c.l.bf16 %v318
        %v347 = vunpack.c.l.bf16 %v323
        %v348 = vunpack.c.l.bf16 %v308
        %v349 = vunpack.c.l.bf16 %v328
        %v350 = vunpack.c.l.bf16 %v333
        %v351 = vunpack.c.l.bf16 %v312
        %v352 = vunpack.c.l.bf16 %v338
        %v353 = vunpack.c.l.bf16 %v343
        %v362 = vrot.slane %v346, 7
        %v363 = vrot.slane %v347, 6
        %v364 = vrot.slane %v348, 5
        %v365 = vrot.slane %v349, 4
        %v366 = vrot.slane %v350, 3
        %v367 = vrot.slane %v351, 2
        %v368 = vrot.slane %v352, 1
        %vm369 = vcmask 1040384
        %v370 = vsel %vm369, %v345, %v362
        %vm371 = vcmask 1042434
        %v372 = vsel %vm371, %v363, %v364
        %vm373 = vcmask 1041408
        %v374 = vsel %vm373, %v370, %v372
        %vm375 = vcmask 1044484
        %v376 = vsel %vm375, %v365, %v366
        %vm377 = vcmask 1046534
        %v378 = vsel %vm377, %v367, %v368
        %vm379 = vcmask 1045508
        %v380 = vsel %vm379, %v376, %v378
        %vm381 = vcmask 1043456
        %v382 = vsel %vm381, %v374, %v380
        %384 = vst [vmem:[#allocation2] ss:$8 sm:$0xf] %v382
        %385 = vst [vmem:[#allocation2] ss:$8 sm:$0xf0] %v382
        %v386 = vlaneseq
        %vm387 = vcmp.ge.s32.totalorder %v386, 0
        %vm388 = vcmp.lt.s32.totalorder %v386, 128
        %vm389 = vmand %vm387, %vm388
        %s390 = scalar_lea.vmem [#allocation2], 64
        %391 = vst.msk [vmem:[%s390] ss:$8 sm:$0x1] %vm389, %v353
        %392 = vst.msk [vmem:[%s390] ss:$8 sm:$0x0] %vm389, %v353
        %v393 = vld [vmem:[%s302] sm:$0x2]
        %v394 = vld [vmem:[%s302] sm:$0x4]
        %v395 = vld [vmem:[%s302] sm:$0x8]
        %v396 = vld [vmem:[%s307] sm:$0x2]
        %v397 = vld [vmem:[%s307] sm:$0x4]
        %v398 = vld [vmem:[%s307] sm:$0x8]
        %v399 = vld [vmem:[%s311] sm:$0x2]
        %v400 = vld [vmem:[%s311] sm:$0x4]
        %v401 = vld [vmem:[%s311] sm:$0x8]
        %v403 = vunpack.c.l.b16 %v394
        %v404 = vpack.c.b16 %v403, %v403
        %v405 = vrot.slane %v404, 1
        %v408 = vunpack.c.l.b16 %v395
        %v409 = vpack.c.b16 %v408, %v408
        %v410 = vrot.slane %v409, 2
        %v413 = vunpack.c.l.b16 %v397
        %v414 = vpack.c.b16 %v413, %v413
        %v415 = vrot.slane %v414, 1
        %v418 = vunpack.c.l.b16 %v398
        %v419 = vpack.c.b16 %v418, %v418
        %v420 = vrot.slane %v419, 2
        %v423 = vunpack.c.l.b16 %v400
        %v424 = vpack.c.b16 %v423, %v423
        %v425 = vrot.slane %v424, 1
        %v428 = vunpack.c.l.b16 %v401
        %v429 = vpack.c.b16 %v428, %v428
        %v430 = vrot.slane %v429, 2
        %v432 = vunpack.c.l.bf16 %v393
        %v433 = vunpack.c.l.bf16 %v405
        %v434 = vunpack.c.l.bf16 %v410
        %v435 = vunpack.c.l.bf16 %v396
        %v436 = vunpack.c.l.bf16 %v415
        %v437 = vunpack.c.l.bf16 %v420
        %v438 = vunpack.c.l.bf16 %v399
        %v439 = vunpack.c.l.bf16 %v425
        %v440 = vunpack.c.l.bf16 %v430
        %450 = vst [vmem:[#allocation1] sm:$0xff] %v432
        %451 = vst [vmem:[#allocation1 + $0x9] sm:$0xff] %v433
        %452 = vst [vmem:[#allocation1 + $0x12] sm:$0xff] %v434
        %453 = vst [vmem:[#allocation1 + $0x1b] sm:$0xff] %v435
        %454 = vst [vmem:[#allocation1 + $0x24] sm:$0xff] %v436
        %455 = vst [vmem:[#allocation1 + $0x2d] sm:$0xff] %v437
        %456 = vst [vmem:[#allocation1 + $0x36] sm:$0xff] %v438
        %457 = vst [vmem:[#allocation1 + $0x3f] sm:$0xff] %v439
        %s458 = scalar_lea.vmem [#allocation1], 2
        %v459 = vld [vmem:[%s458] ss:$9 sm:$0xff]
        %460 = vst [vmem:[#allocation1] sm:$0xff] %v440
        %v461 = vld [vmem:[%s458] ss:$9 sm:$0xff]
        %s464 = scalar_lea.vmem [#allocation2], 1
        %465 = vst [vmem:[%s464] ss:$8 sm:$0xf] %v459
        %466 = vst [vmem:[%s464] ss:$8 sm:$0xf0] %v459
        %s467 = scalar_lea.vmem [#allocation2], 65
        %468 = vst.msk [vmem:[%s467] ss:$8 sm:$0x1] %vm389, %v461
        %469 = vst.msk [vmem:[%s467] ss:$8 sm:$0x0] %vm389, %v461
        %v470 = vld [vmem:[%s307] sm:$0x1]
        %v471 = vld [vmem:[%s307] sm:$0x2]
        %v472 = vld [vmem:[%s307] sm:$0x4]
        %v473 = vld [vmem:[%s311] sm:$0x1]
        %v474 = vld [vmem:[%s311] sm:$0x2]
        %v475 = vld [vmem:[%s311] sm:$0x4]
        %s476 = scalar_lea.vmem %s302, 48
        %v477 = vld [vmem:[%s476] sm:$0x1]
        %v478 = vld [vmem:[%s476] sm:$0x2]
        %v479 = vld [vmem:[%s476] sm:$0x4]
        %v481 = vunpack.c.l.b16 %v471
        %v482 = vpack.c.b16 %v481, %v481
        %v483 = vrot.slane %v482, 1
        %v486 = vunpack.c.l.b16 %v472
        %v487 = vpack.c.b16 %v486, %v486
        %v488 = vrot.slane %v487, 2
        %v491 = vunpack.c.l.b16 %v474
        %v492 = vpack.c.b16 %v491, %v491
        %v493 = vrot.slane %v492, 1
        %v496 = vunpack.c.l.b16 %v475
        %v497 = vpack.c.b16 %v496, %v496
        %v498 = vrot.slane %v497, 2
        %v501 = vunpack.c.l.b16 %v478
        %v502 = vpack.c.b16 %v501, %v501
        %v503 = vrot.slane %v502, 1
        %v506 = vunpack.c.l.b16 %v479
        %v507 = vpack.c.b16 %v506, %v506
        %v508 = vrot.slane %v507, 2
        %v510 = vunpack.c.l.bf16 %v470
        %v511 = vunpack.c.l.bf16 %v483
        %v512 = vunpack.c.l.bf16 %v488
        %v513 = vunpack.c.l.bf16 %v473
        %v514 = vunpack.c.l.bf16 %v493
        %v515 = vunpack.c.l.bf16 %v498
        %v516 = vunpack.c.l.bf16 %v477
        %v517 = vunpack.c.l.bf16 %v503
        %v518 = vunpack.c.l.bf16 %v508
        %v527 = vrot.slane %v511, 7
        %v528 = vrot.slane %v512, 6
        %v529 = vrot.slane %v513, 5
        %v530 = vrot.slane %v514, 4
        %v531 = vrot.slane %v515, 3
        %v532 = vrot.slane %v516, 2
        %v533 = vrot.slane %v517, 1
        %v534 = vsel %vm369, %v510, %v527
        %v535 = vsel %vm371, %v528, %v529
        %v536 = vsel %vm373, %v534, %v535
        %v537 = vsel %vm375, %v530, %v531
        %v538 = vsel %vm377, %v532, %v533
        %v539 = vsel %vm379, %v537, %v538
        %v540 = vsel %vm381, %v536, %v539
        %s542 = scalar_lea.vmem [#allocation2], 2
        %543 = vst [vmem:[%s542] ss:$8 sm:$0xf] %v540
        %544 = vst [vmem:[%s542] ss:$8 sm:$0xf0] %v540
        %s545 = scalar_lea.vmem [#allocation2], 66
        %546 = vst.msk [vmem:[%s545] ss:$8 sm:$0x1] %vm389, %v518
        %547 = vst.msk [vmem:[%s545] ss:$8 sm:$0x0] %vm389, %v518
        %v548 = vld [vmem:[%s307] sm:$0x2]
        %v549 = vld [vmem:[%s307] sm:$0x4]
        %v550 = vld [vmem:[%s307] sm:$0x8]
        %v551 = vld [vmem:[%s311] sm:$0x2]
        %v552 = vld [vmem:[%s311] sm:$0x4]
        %v553 = vld [vmem:[%s311] sm:$0x8]
        %v554 = vld [vmem:[%s476] sm:$0x2]
        %v555 = vld [vmem:[%s476] sm:$0x4]
        %v556 = vld [vmem:[%s476] sm:$0x8]
        %v558 = vunpack.c.l.b16 %v549
        %v559 = vpack.c.b16 %v558, %v558
        %v560 = vrot.slane %v559, 1
        %v563 = vunpack.c.l.b16 %v550
        %v564 = vpack.c.b16 %v563, %v563
        %v565 = vrot.slane %v564, 2
        %v568 = vunpack.c.l.b16 %v552
        %v569 = vpack.c.b16 %v568, %v568
        %v570 = vrot.slane %v569, 1
        %v573 = vunpack.c.l.b16 %v553
        %v574 = vpack.c.b16 %v573, %v573
        %v575 = vrot.slane %v574, 2
        %v578 = vunpack.c.l.b16 %v555
        %v579 = vpack.c.b16 %v578, %v578
        %v580 = vrot.slane %v579, 1
        %v583 = vunpack.c.l.b16 %v556
        %v584 = vpack.c.b16 %v583, %v583
        %v585 = vrot.slane %v584, 2
        %v587 = vunpack.c.l.bf16 %v548
        %v588 = vunpack.c.l.bf16 %v560
        %v589 = vunpack.c.l.bf16 %v565
        %v590 = vunpack.c.l.bf16 %v551
        %v591 = vunpack.c.l.bf16 %v570
        %v592 = vunpack.c.l.bf16 %v575
        %v593 = vunpack.c.l.bf16 %v554
        %v594 = vunpack.c.l.bf16 %v580
        %v595 = vunpack.c.l.bf16 %v585
        %605 = vst [vmem:[#allocation1] sm:$0xff] %v587
        %606 = vst [vmem:[#allocation1 + $0x9] sm:$0xff] %v588
        %607 = vst [vmem:[#allocation1 + $0x12] sm:$0xff] %v589
        %608 = vst [vmem:[#allocation1 + $0x1b] sm:$0xff] %v590
        %609 = vst [vmem:[#allocation1 + $0x24] sm:$0xff] %v591
        %610 = vst [vmem:[#allocation1 + $0x2d] sm:$0xff] %v592
        %611 = vst [vmem:[#allocation1 + $0x36] sm:$0xff] %v593
        %612 = vst [vmem:[#allocation1 + $0x3f] sm:$0xff] %v594
        %s613 = scalar_lea.vmem [#allocation1], 2
        %v614 = vld [vmem:[%s613] ss:$9 sm:$0xff]
        %615 = vst [vmem:[#allocation1] sm:$0xff] %v595
        %v616 = vld [vmem:[%s613] ss:$9 sm:$0xff]
        %s619 = scalar_lea.vmem [#allocation2], 3
        %620 = vst [vmem:[%s619] ss:$8 sm:$0xf] %v614
        %621 = vst [vmem:[%s619] ss:$8 sm:$0xf0] %v614
        %s622 = scalar_lea.vmem [#allocation2], 67
        %623 = vst.msk [vmem:[%s622] ss:$8 sm:$0x1] %vm389, %v616
        %624 = vst.msk [vmem:[%s622] ss:$8 sm:$0x0] %vm389, %v616
        %v625 = vld [vmem:[%s302] sm:$0x1]
        %v626 = vld [vmem:[%s302] sm:$0x2]
        %v627 = vld [vmem:[%s302] sm:$0x4]
        %v628 = vld [vmem:[%s307] sm:$0x1]
        %v629 = vld [vmem:[%s307] sm:$0x2]
        %v630 = vld [vmem:[%s307] sm:$0x4]
        %v631 = vld [vmem:[%s311] sm:$0x1]
        %v632 = vld [vmem:[%s311] sm:$0x2]
        %v633 = vld [vmem:[%s311] sm:$0x4]
        %v635 = vunpack.c.l.b16 %v626
        %v636 = vpack.c.b16 %v635, %v635
        %v637 = vrot.slane %v636, 1
        %v640 = vunpack.c.l.b16 %v627
        %v641 = vpack.c.b16 %v640, %v640
        %v642 = vrot.slane %v641, 2
        %v645 = vunpack.c.l.b16 %v629
        %v646 = vpack.c.b16 %v645, %v645
        %v647 = vrot.slane %v646, 1
        %v650 = vunpack.c.l.b16 %v630
        %v651 = vpack.c.b16 %v650, %v650
        %v652 = vrot.slane %v651, 2
        %v655 = vunpack.c.l.b16 %v632
        %v656 = vpack.c.b16 %v655, %v655
        %v657 = vrot.slane %v656, 1
        %v660 = vunpack.c.l.b16 %v633
        %v661 = vpack.c.b16 %v660, %v660
        %v662 = vrot.slane %v661, 2
        %v664 = vunpack.c.l.bf16 %v625
        %v665 = vunpack.c.l.bf16 %v637
        %v666 = vunpack.c.l.bf16 %v642
        %v667 = vunpack.c.l.bf16 %v628
        %v668 = vunpack.c.l.bf16 %v647
        %v669 = vunpack.c.l.bf16 %v652
        %v670 = vunpack.c.l.bf16 %v631
        %v671 = vunpack.c.l.bf16 %v657
        %v672 = vunpack.c.l.bf16 %v662
        %682 = vst [vmem:[#allocation1] sm:$0xff] %v664
        %683 = vst [vmem:[#allocation1 + $0x9] sm:$0xff] %v665
        %684 = vst [vmem:[#allocation1 + $0x12] sm:$0xff] %v666
        %685 = vst [vmem:[#allocation1 + $0x1b] sm:$0xff] %v667
        %686 = vst [vmem:[#allocation1 + $0x24] sm:$0xff] %v668
        %687 = vst [vmem:[#allocation1 + $0x2d] sm:$0xff] %v669
        %688 = vst [vmem:[#allocation1 + $0x36] sm:$0xff] %v670
        %689 = vst [vmem:[#allocation1 + $0x3f] sm:$0xff] %v671
        %s690 = scalar_lea.vmem [#allocation1], 1
        %v691 = vld [vmem:[%s690] ss:$9 sm:$0xff]
        %692 = vst [vmem:[#allocation1] sm:$0xff] %v672
        %v693 = vld [vmem:[%s690] ss:$9 sm:$0xff]
        %s696 = scalar_lea.vmem [#allocation2], 4
        %697 = vst [vmem:[%s696] ss:$8 sm:$0xf] %v691
        %698 = vst [vmem:[%s696] ss:$8 sm:$0xf0] %v691
        %s699 = scalar_lea.vmem [#allocation2], 68
        %700 = vst.msk [vmem:[%s699] ss:$8 sm:$0x1] %vm389, %v693
        %701 = vst.msk [vmem:[%s699] ss:$8 sm:$0x0] %vm389, %v693
        %v702 = vld [vmem:[%s302] sm:$0x2]
        %v703 = vld [vmem:[%s302] sm:$0x4]
        %v704 = vld [vmem:[%s302] sm:$0x8]
        %v705 = vld [vmem:[%s307] sm:$0x2]
        %v706 = vld [vmem:[%s307] sm:$0x4]
        %v707 = vld [vmem:[%s307] sm:$0x8]
        %v708 = vld [vmem:[%s311] sm:$0x2]
        %v709 = vld [vmem:[%s311] sm:$0x4]
        %v710 = vld [vmem:[%s311] sm:$0x8]
        %v712 = vunpack.c.l.b16 %v703
        %v713 = vpack.c.b16 %v712, %v712
        %v714 = vrot.slane %v713, 1
        %v717 = vunpack.c.l.b16 %v704
        %v718 = vpack.c.b16 %v717, %v717
        %v719 = vrot.slane %v718, 2
        %v722 = vunpack.c.l.b16 %v706
        %v723 = vpack.c.b16 %v722, %v722
        %v724 = vrot.slane %v723, 1
        %v727 = vunpack.c.l.b16 %v707
        %v728 = vpack.c.b16 %v727, %v727
        %v729 = vrot.slane %v728, 2
        %v732 = vunpack.c.l.b16 %v709
        %v733 = vpack.c.b16 %v732, %v732
        %v734 = vrot.slane %v733, 1
        %v737 = vunpack.c.l.b16 %v710
        %v738 = vpack.c.b16 %v737, %v737
        %v739 = vrot.slane %v738, 2
        %v741 = vunpack.c.l.bf16 %v702
        %v742 = vunpack.c.l.bf16 %v714
        %v743 = vunpack.c.l.bf16 %v719
        %v744 = vunpack.c.l.bf16 %v705
        %v745 = vunpack.c.l.bf16 %v724
        %v746 = vunpack.c.l.bf16 %v729
        %v747 = vunpack.c.l.bf16 %v708
        %v748 = vunpack.c.l.bf16 %v734
        %v749 = vunpack.c.l.bf16 %v739
        %759 = vst [vmem:[#allocation1] sm:$0xff] %v741
        %760 = vst [vmem:[#allocation1 + $0x9] sm:$0xff] %v742
        %761 = vst [vmem:[#allocation1 + $0x12] sm:$0xff] %v743
        %762 = vst [vmem:[#allocation1 + $0x1b] sm:$0xff] %v744
        %763 = vst [vmem:[#allocation1 + $0x24] sm:$0xff] %v745
        %764 = vst [vmem:[#allocation1 + $0x2d] sm:$0xff] %v746
        %765 = vst [vmem:[#allocation1 + $0x36] sm:$0xff] %v747
        %766 = vst [vmem:[#allocation1 + $0x3f] sm:$0xff] %v748
        %s767 = scalar_lea.vmem [#allocation1], 3
        %v768 = vld [vmem:[%s767] ss:$9 sm:$0xff]
        %769 = vst [vmem:[#allocation1] sm:$0xff] %v749
        %v770 = vld [vmem:[%s767] ss:$9 sm:$0xff]
        %s773 = scalar_lea.vmem [#allocation2], 5
        %774 = vst [vmem:[%s773] ss:$8 sm:$0xf] %v768
        %775 = vst [vmem:[%s773] ss:$8 sm:$0xf0] %v768
        %s776 = scalar_lea.vmem [#allocation2], 69
        %777 = vst.msk [vmem:[%s776] ss:$8 sm:$0x1] %vm389, %v770
        %778 = vst.msk [vmem:[%s776] ss:$8 sm:$0x0] %vm389, %v770
        %v779 = vld [vmem:[%s307] sm:$0x1]
        %v780 = vld [vmem:[%s307] sm:$0x2]
        %v781 = vld [vmem:[%s307] sm:$0x4]
        %v782 = vld [vmem:[%s311] sm:$0x1]
        %v783 = vld [vmem:[%s311] sm:$0x2]
        %v784 = vld [vmem:[%s311] sm:$0x4]
        %v785 = vld [vmem:[%s476] sm:$0x1]
        %v786 = vld [vmem:[%s476] sm:$0x2]
        %v787 = vld [vmem:[%s476] sm:$0x4]
        %v789 = vunpack.c.l.b16 %v780
        %v790 = vpack.c.b16 %v789, %v789
        %v791 = vrot.slane %v790, 1
        %v794 = vunpack.c.l.b16 %v781
        %v795 = vpack.c.b16 %v794, %v794
        %v796 = vrot.slane %v795, 2
        %v799 = vunpack.c.l.b16 %v783
        %v800 = vpack.c.b16 %v799, %v799
        %v801 = vrot.slane %v800, 1
        %v804 = vunpack.c.l.b16 %v784
        %v805 = vpack.c.b16 %v804, %v804
        %v806 = vrot.slane %v805, 2
        %v809 = vunpack.c.l.b16 %v786
        %v810 = vpack.c.b16 %v809, %v809
        %v811 = vrot.slane %v810, 1
        %v814 = vunpack.c.l.b16 %v787
        %v815 = vpack.c.b16 %v814, %v814
        %v816 = vrot.slane %v815, 2
        %v818 = vunpack.c.l.bf16 %v779
        %v819 = vunpack.c.l.bf16 %v791
        %v820 = vunpack.c.l.bf16 %v796
        %v821 = vunpack.c.l.bf16 %v782
        %v822 = vunpack.c.l.bf16 %v801
        %v823 = vunpack.c.l.bf16 %v806
        %v824 = vunpack.c.l.bf16 %v785
        %v825 = vunpack.c.l.bf16 %v811
        %v826 = vunpack.c.l.bf16 %v816
        %836 = vst [vmem:[#allocation1] sm:$0xff] %v818
        %837 = vst [vmem:[#allocation1 + $0x9] sm:$0xff] %v819
        %838 = vst [vmem:[#allocation1 + $0x12] sm:$0xff] %v820
        %839 = vst [vmem:[#allocation1 + $0x1b] sm:$0xff] %v821
        %840 = vst [vmem:[#allocation1 + $0x24] sm:$0xff] %v822
        %841 = vst [vmem:[#allocation1 + $0x2d] sm:$0xff] %v823
        %842 = vst [vmem:[#allocation1 + $0x36] sm:$0xff] %v824
        %843 = vst [vmem:[#allocation1 + $0x3f] sm:$0xff] %v825
        %s844 = scalar_lea.vmem [#allocation1], 1
        %v845 = vld [vmem:[%s844] ss:$9 sm:$0xff]
        %846 = vst [vmem:[#allocation1] sm:$0xff] %v826
        %v847 = vld [vmem:[%s844] ss:$9 sm:$0xff]
        %s850 = scalar_lea.vmem [#allocation2], 6
        %851 = vst [vmem:[%s850] ss:$8 sm:$0xf] %v845
        %852 = vst [vmem:[%s850] ss:$8 sm:$0xf0] %v845
        %s853 = scalar_lea.vmem [#allocation2], 70
        %854 = vst.msk [vmem:[%s853] ss:$8 sm:$0x1] %vm389, %v847
        %855 = vst.msk [vmem:[%s853] ss:$8 sm:$0x0] %vm389, %v847
        %v856 = vld [vmem:[%s307] sm:$0x2]
        %v857 = vld [vmem:[%s307] sm:$0x4]
        %v858 = vld [vmem:[%s307] sm:$0x8]
        %v859 = vld [vmem:[%s311] sm:$0x2]
        %v860 = vld [vmem:[%s311] sm:$0x4]
        %v861 = vld [vmem:[%s311] sm:$0x8]
        %v862 = vld [vmem:[%s476] sm:$0x2]
        %v863 = vld [vmem:[%s476] sm:$0x4]
        %v864 = vld [vmem:[%s476] sm:$0x8]
        %v866 = vunpack.c.l.b16 %v857
        %v867 = vpack.c.b16 %v866, %v866
        %v868 = vrot.slane %v867, 1
        %v871 = vunpack.c.l.b16 %v858
        %v872 = vpack.c.b16 %v871, %v871
        %v873 = vrot.slane %v872, 2
        %v876 = vunpack.c.l.b16 %v860
        %v877 = vpack.c.b16 %v876, %v876
        %v878 = vrot.slane %v877, 1
        %v881 = vunpack.c.l.b16 %v861
        %v882 = vpack.c.b16 %v881, %v881
        %v883 = vrot.slane %v882, 2
        %v886 = vunpack.c.l.b16 %v863
        %v887 = vpack.c.b16 %v886, %v886
        %v888 = vrot.slane %v887, 1
        %v891 = vunpack.c.l.b16 %v864
        %v892 = vpack.c.b16 %v891, %v891
        %v893 = vrot.slane %v892, 2
        %v895 = vunpack.c.l.bf16 %v856
        %v896 = vunpack.c.l.bf16 %v868
        %v897 = vunpack.c.l.bf16 %v873
        %v898 = vunpack.c.l.bf16 %v859
        %v899 = vunpack.c.l.bf16 %v878
        %v900 = vunpack.c.l.bf16 %v883
        %v901 = vunpack.c.l.bf16 %v862
        %v902 = vunpack.c.l.bf16 %v888
        %v903 = vunpack.c.l.bf16 %v893
        %913 = vst [vmem:[#allocation1] sm:$0xff] %v895
        %914 = vst [vmem:[#allocation1 + $0x9] sm:$0xff] %v896
        %915 = vst [vmem:[#allocation1 + $0x12] sm:$0xff] %v897
        %916 = vst [vmem:[#allocation1 + $0x1b] sm:$0xff] %v898
        %917 = vst [vmem:[#allocation1 + $0x24] sm:$0xff] %v899
        %918 = vst [vmem:[#allocation1 + $0x2d] sm:$0xff] %v900
        %919 = vst [vmem:[#allocation1 + $0x36] sm:$0xff] %v901
        %920 = vst [vmem:[#allocation1 + $0x3f] sm:$0xff] %v902
        %s921 = scalar_lea.vmem [#allocation1], 3
        %v922 = vld [vmem:[%s921] ss:$9 sm:$0xff]
        %923 = vst [vmem:[#allocation1] sm:$0xff] %v903
        %v924 = vld [vmem:[%s921] ss:$9 sm:$0xff]
        %s927 = scalar_lea.vmem [#allocation2], 7
        %928 = vst [vmem:[%s927] ss:$8 sm:$0xf] %v922
        %929 = vst [vmem:[%s927] ss:$8 sm:$0xf0] %v922
        %s930 = scalar_lea.vmem [#allocation2], 71
        %931 = vst.msk [vmem:[%s930] ss:$8 sm:$0x1] %vm389, %v924
        %932 = vst.msk [vmem:[%s930] ss:$8 sm:$0x0] %vm389, %v924
        %s933 = scalar_lea.vmem %s302, 8
        %v934 = vld [vmem:[%s933] sm:$0x1]
        %v935 = vld [vmem:[%s933] sm:$0x2]
        %v936 = vld [vmem:[%s933] sm:$0x4]
        %s937 = scalar_lea.vmem %s302, 24
        %v938 = vld [vmem:[%s937] sm:$0x1]
        %v939 = vld [vmem:[%s937] sm:$0x2]
        %v940 = vld [vmem:[%s937] sm:$0x4]
        %s941 = scalar_lea.vmem %s302, 40
        %v942 = vld [vmem:[%s941] sm:$0x1]
        %v943 = vld [vmem:[%s941] sm:$0x2]
        %v944 = vld [vmem:[%s941] sm:$0x4]
        %v946 = vunpack.c.l.b16 %v935
        %v947 = vpack.c.b16 %v946, %v946
        %v948 = vrot.slane %v947, 1
        %v951 = vunpack.c.l.b16 %v936
        %v952 = vpack.c.b16 %v951, %v951
        %v953 = vrot.slane %v952, 2
        %v956 = vunpack.c.l.b16 %v939
        %v957 = vpack.c.b16 %v956, %v956
        %v958 = vrot.slane %v957, 1
        %v961 = vunpack.c.l.b16 %v940
        %v962 = vpack.c.b16 %v961, %v961
        %v963 = vrot.slane %v962, 2
        %v966 = vunpack.c.l.b16 %v943
        %v967 = vpack.c.b16 %v966, %v966
        %v968 = vrot.slane %v967, 1
        %v971 = vunpack.c.l.b16 %v944
        %v972 = vpack.c.b16 %v971, %v971
        %v973 = vrot.slane %v972, 2
        %v975 = vunpack.c.l.bf16 %v934
        %v976 = vunpack.c.l.bf16 %v948
        %v977 = vunpack.c.l.bf16 %v953
        %v978 = vunpack.c.l.bf16 %v938
        %v979 = vunpack.c.l.bf16 %v958
        %v980 = vunpack.c.l.bf16 %v963
        %v981 = vunpack.c.l.bf16 %v942
        %v982 = vunpack.c.l.bf16 %v968
        %v983 = vunpack.c.l.bf16 %v973
        %v992 = vrot.slane %v976, 7
        %v993 = vrot.slane %v977, 6
        %v994 = vrot.slane %v978, 5
        %v995 = vrot.slane %v979, 4
        %v996 = vrot.slane %v980, 3
        %v997 = vrot.slane %v981, 2
        %v998 = vrot.slane %v982, 1
        %v999 = vsel %vm369, %v975, %v992
        %v1000 = vsel %vm371, %v993, %v994
        %v1001 = vsel %vm373, %v999, %v1000
        %v1002 = vsel %vm375, %v995, %v996
        %v1003 = vsel %vm377, %v997, %v998
        %v1004 = vsel %vm379, %v1002, %v1003
        %v1005 = vsel %vm381, %v1001, %v1004
        %s1007 = scalar_lea.vmem [#allocation2], 72
        %1008 = vst [vmem:[%s1007] ss:$8 sm:$0xf] %v1005
        %1009 = vst [vmem:[%s1007] ss:$8 sm:$0xf0] %v1005
        %s1010 = scalar_lea.vmem [#allocation2], 136
        %1011 = vst.msk [vmem:[%s1010] ss:$8 sm:$0x1] %vm389, %v983
        %1012 = vst.msk [vmem:[%s1010] ss:$8 sm:$0x0] %vm389, %v983
        %v1013 = vld [vmem:[%s933] sm:$0x2]
        %v1014 = vld [vmem:[%s933] sm:$0x4]
        %v1015 = vld [vmem:[%s933] sm:$0x8]
        %v1016 = vld [vmem:[%s937] sm:$0x2]
        %v1017 = vld [vmem:[%s937] sm:$0x4]
        %v1018 = vld [vmem:[%s937] sm:$0x8]
        %v1019 = vld [vmem:[%s941] sm:$0x2]
        %v1020 = vld [vmem:[%s941] sm:$0x4]
        %v1021 = vld [vmem:[%s941] sm:$0x8]
        %v1023 = vunpack.c.l.b16 %v1014
        %v1024 = vpack.c.b16 %v1023, %v1023
        %v1025 = vrot.slane %v1024, 1
        %v1028 = vunpack.c.l.b16 %v1015
        %v1029 = vpack.c.b16 %v1028, %v1028
        %v1030 = vrot.slane %v1029, 2
        %v1033 = vunpack.c.l.b16 %v1017
        %v1034 = vpack.c.b16 %v1033, %v1033
        %v1035 = vrot.slane %v1034, 1
        %v1038 = vunpack.c.l.b16 %v1018
        %v1039 = vpack.c.b16 %v1038, %v1038
        %v1040 = vrot.slane %v1039, 2
        %v1043 = vunpack.c.l.b16 %v1020
        %v1044 = vpack.c.b16 %v1043, %v1043
        %v1045 = vrot.slane %v1044, 1
        %v1048 = vunpack.c.l.b16 %v1021
        %v1049 = vpack.c.b16 %v1048, %v1048
        %v1050 = vrot.slane %v1049, 2
        %v1052 = vunpack.c.l.bf16 %v1013
        %v1053 = vunpack.c.l.bf16 %v1025
        %v1054 = vunpack.c.l.bf16 %v1030
        %v1055 = vunpack.c.l.bf16 %v1016
        %v1056 = vunpack.c.l.bf16 %v1035
        %v1057 = vunpack.c.l.bf16 %v1040
        %v1058 = vunpack.c.l.bf16 %v1019
        %v1059 = vunpack.c.l.bf16 %v1045
        %v1060 = vunpack.c.l.bf16 %v1050
        %1070 = vst [vmem:[#allocation1] sm:$0xff] %v1052
        %1071 = vst [vmem:[#allocation1 + $0x9] sm:$0xff] %v1053
        %1072 = vst [vmem:[#allocation1 + $0x12] sm:$0xff] %v1054
        %1073 = vst [vmem:[#allocation1 + $0x1b] sm:$0xff] %v1055
        %1074 = vst [vmem:[#allocation1 + $0x24] sm:$0xff] %v1056
        %1075 = vst [vmem:[#allocation1 + $0x2d] sm:$0xff] %v1057
        %1076 = vst [vmem:[#allocation1 + $0x36] sm:$0xff] %v1058
        %1077 = vst [vmem:[#allocation1 + $0x3f] sm:$0xff] %v1059
        %s1078 = scalar_lea.vmem [#allocation1], 2
        %v1079 = vld [vmem:[%s1078] ss:$9 sm:$0xff]
        %1080 = vst [vmem:[#allocation1] sm:$0xff] %v1060
        %v1081 = vld [vmem:[%s1078] ss:$9 sm:$0xff]
        %s1084 = scalar_lea.vmem [#allocation2], 73
        %1085 = vst [vmem:[%s1084] ss:$8 sm:$0xf] %v1079
        %1086 = vst [vmem:[%s1084] ss:$8 sm:$0xf0] %v1079
        %s1087 = scalar_lea.vmem [#allocation2], 137
        %1088 = vst.msk [vmem:[%s1087] ss:$8 sm:$0x1] %vm389, %v1081
        %1089 = vst.msk [vmem:[%s1087] ss:$8 sm:$0x0] %vm389, %v1081
        %v1090 = vld [vmem:[%s937] sm:$0x1]
        %v1091 = vld [vmem:[%s937] sm:$0x2]
        %v1092 = vld [vmem:[%s937] sm:$0x4]
        %v1093 = vld [vmem:[%s941] sm:$0x1]
        %v1094 = vld [vmem:[%s941] sm:$0x2]
        %v1095 = vld [vmem:[%s941] sm:$0x4]
        %s1096 = scalar_lea.vmem %s302, 56
        %v1097 = vld [vmem:[%s1096] sm:$0x1]
        %v1098 = vld [vmem:[%s1096] sm:$0x2]
        %v1099 = vld [vmem:[%s1096] sm:$0x4]
        %v1101 = vunpack.c.l.b16 %v1091
        %v1102 = vpack.c.b16 %v1101, %v1101
        %v1103 = vrot.slane %v1102, 1
        %v1106 = vunpack.c.l.b16 %v1092
        %v1107 = vpack.c.b16 %v1106, %v1106
        %v1108 = vrot.slane %v1107, 2
        %v1111 = vunpack.c.l.b16 %v1094
        %v1112 = vpack.c.b16 %v1111, %v1111
        %v1113 = vrot.slane %v1112, 1
        %v1116 = vunpack.c.l.b16 %v1095
        %v1117 = vpack.c.b16 %v1116, %v1116
        %v1118 = vrot.slane %v1117, 2
        %v1121 = vunpack.c.l.b16 %v1098
        %v1122 = vpack.c.b16 %v1121, %v1121
        %v1123 = vrot.slane %v1122, 1
        %v1126 = vunpack.c.l.b16 %v1099
        %v1127 = vpack.c.b16 %v1126, %v1126
        %v1128 = vrot.slane %v1127, 2
        %v1130 = vunpack.c.l.bf16 %v1090
        %v1131 = vunpack.c.l.bf16 %v1103
        %v1132 = vunpack.c.l.bf16 %v1108
        %v1133 = vunpack.c.l.bf16 %v1093
        %v1134 = vunpack.c.l.bf16 %v1113
        %v1135 = vunpack.c.l.bf16 %v1118
        %v1136 = vunpack.c.l.bf16 %v1097
        %v1137 = vunpack.c.l.bf16 %v1123
        %v1138 = vunpack.c.l.bf16 %v1128
        %v1147 = vrot.slane %v1131, 7
        %v1148 = vrot.slane %v1132, 6
        %v1149 = vrot.slane %v1133, 5
        %v1150 = vrot.slane %v1134, 4
        %v1151 = vrot.slane %v1135, 3
        %v1152 = vrot.slane %v1136, 2
        %v1153 = vrot.slane %v1137, 1
        %v1154 = vsel %vm369, %v1130, %v1147
        %v1155 = vsel %vm371, %v1148, %v1149
        %v1156 = vsel %vm373, %v1154, %v1155
        %v1157 = vsel %vm375, %v1150, %v1151
        %v1158 = vsel %vm377, %v1152, %v1153
        %v1159 = vsel %vm379, %v1157, %v1158
        %v1160 = vsel %vm381, %v1156, %v1159
        %s1162 = scalar_lea.vmem [#allocation2], 74
        %1163 = vst [vmem:[%s1162] ss:$8 sm:$0xf] %v1160
        %1164 = vst [vmem:[%s1162] ss:$8 sm:$0xf0] %v1160
        %s1165 = scalar_lea.vmem [#allocation2], 138
        %1166 = vst.msk [vmem:[%s1165] ss:$8 sm:$0x1] %vm389, %v1138
        %1167 = vst.msk [vmem:[%s1165] ss:$8 sm:$0x0] %vm389, %v1138
        %v1168 = vld [vmem:[%s937] sm:$0x2]
        %v1169 = vld [vmem:[%s937] sm:$0x4]
        %v1170 = vld [vmem:[%s937] sm:$0x8]
        %v1171 = vld [vmem:[%s941] sm:$0x2]
        %v1172 = vld [vmem:[%s941] sm:$0x4]
        %v1173 = vld [vmem:[%s941] sm:$0x8]
        %v1174 = vld [vmem:[%s1096] sm:$0x2]
        %v1175 = vld [vmem:[%s1096] sm:$0x4]
        %v1176 = vld [vmem:[%s1096] sm:$0x8]
        %v1178 = vunpack.c.l.b16 %v1169
        %v1179 = vpack.c.b16 %v1178, %v1178
        %v1180 = vrot.slane %v1179, 1
        %v1183 = vunpack.c.l.b16 %v1170
        %v1184 = vpack.c.b16 %v1183, %v1183
        %v1185 = vrot.slane %v1184, 2
        %v1188 = vunpack.c.l.b16 %v1172
        %v1189 = vpack.c.b16 %v1188, %v1188
        %v1190 = vrot.slane %v1189, 1
        %v1193 = vunpack.c.l.b16 %v1173
        %v1194 = vpack.c.b16 %v1193, %v1193
        %v1195 = vrot.slane %v1194, 2
        %v1198 = vunpack.c.l.b16 %v1175
        %v1199 = vpack.c.b16 %v1198, %v1198
        %v1200 = vrot.slane %v1199, 1
        %v1203 = vunpack.c.l.b16 %v1176
        %v1204 = vpack.c.b16 %v1203, %v1203
        %v1205 = vrot.slane %v1204, 2
        %v1207 = vunpack.c.l.bf16 %v1168
        %v1208 = vunpack.c.l.bf16 %v1180
        %v1209 = vunpack.c.l.bf16 %v1185
        %v1210 = vunpack.c.l.bf16 %v1171
        %v1211 = vunpack.c.l.bf16 %v1190
        %v1212 = vunpack.c.l.bf16 %v1195
        %v1213 = vunpack.c.l.bf16 %v1174
        %v1214 = vunpack.c.l.bf16 %v1200
        %v1215 = vunpack.c.l.bf16 %v1205
        %1225 = vst [vmem:[#allocation1] sm:$0xff] %v1207
        %1226 = vst [vmem:[#allocation1 + $0x9] sm:$0xff] %v1208
        %1227 = vst [vmem:[#allocation1 + $0x12] sm:$0xff] %v1209
        %1228 = vst [vmem:[#allocation1 + $0x1b] sm:$0xff] %v1210
        %1229 = vst [vmem:[#allocation1 + $0x24] sm:$0xff] %v1211
        %1230 = vst [vmem:[#allocation1 + $0x2d] sm:$0xff] %v1212
        %1231 = vst [vmem:[#allocation1 + $0x36] sm:$0xff] %v1213
        %1232 = vst [vmem:[#allocation1 + $0x3f] sm:$0xff] %v1214
        %s1233 = scalar_lea.vmem [#allocation1], 2
        %v1234 = vld [vmem:[%s1233] ss:$9 sm:$0xff]
        %1235 = vst [vmem:[#allocation1] sm:$0xff] %v1215
        %v1236 = vld [vmem:[%s1233] ss:$9 sm:$0xff]
        %s1239 = scalar_lea.vmem [#allocation2], 75
        %1240 = vst [vmem:[%s1239] ss:$8 sm:$0xf] %v1234
        %1241 = vst [vmem:[%s1239] ss:$8 sm:$0xf0] %v1234
        %s1242 = scalar_lea.vmem [#allocation2], 139
        %1243 = vst.msk [vmem:[%s1242] ss:$8 sm:$0x1] %vm389, %v1236
        %1244 = vst.msk [vmem:[%s1242] ss:$8 sm:$0x0] %vm389, %v1236
        %v1245 = vld [vmem:[%s933] sm:$0x1]
        %v1246 = vld [vmem:[%s933] sm:$0x2]
        %v1247 = vld [vmem:[%s933] sm:$0x4]
        %v1248 = vld [vmem:[%s937] sm:$0x1]
        %v1249 = vld [vmem:[%s937] sm:$0x2]
        %v1250 = vld [vmem:[%s937] sm:$0x4]
        %v1251 = vld [vmem:[%s941] sm:$0x1]
        %v1252 = vld [vmem:[%s941] sm:$0x2]
        %v1253 = vld [vmem:[%s941] sm:$0x4]
        %v1255 = vunpack.c.l.b16 %v1246
        %v1256 = vpack.c.b16 %v1255, %v1255
        %v1257 = vrot.slane %v1256, 1
        %v1260 = vunpack.c.l.b16 %v1247
        %v1261 = vpack.c.b16 %v1260, %v1260
        %v1262 = vrot.slane %v1261, 2
        %v1265 = vunpack.c.l.b16 %v1249
        %v1266 = vpack.c.b16 %v1265, %v1265
        %v1267 = vrot.slane %v1266, 1
        %v1270 = vunpack.c.l.b16 %v1250
        %v1271 = vpack.c.b16 %v1270, %v1270
        %v1272 = vrot.slane %v1271, 2
        %v1275 = vunpack.c.l.b16 %v1252
        %v1276 = vpack.c.b16 %v1275, %v1275
        %v1277 = vrot.slane %v1276, 1
        %v1280 = vunpack.c.l.b16 %v1253
        %v1281 = vpack.c.b16 %v1280, %v1280
        %v1282 = vrot.slane %v1281, 2
        %v1284 = vunpack.c.l.bf16 %v1245
        %v1285 = vunpack.c.l.bf16 %v1257
        %v1286 = vunpack.c.l.bf16 %v1262
        %v1287 = vunpack.c.l.bf16 %v1248
        %v1288 = vunpack.c.l.bf16 %v1267
        %v1289 = vunpack.c.l.bf16 %v1272
        %v1290 = vunpack.c.l.bf16 %v1251
        %v1291 = vunpack.c.l.bf16 %v1277
        %v1292 = vunpack.c.l.bf16 %v1282
        %1302 = vst [vmem:[#allocation1] sm:$0xff] %v1284
        %1303 = vst [vmem:[#allocation1 + $0x9] sm:$0xff] %v1285
        %1304 = vst [vmem:[#allocation1 + $0x12] sm:$0xff] %v1286
        %1305 = vst [vmem:[#allocation1 + $0x1b] sm:$0xff] %v1287
        %1306 = vst [vmem:[#allocation1 + $0x24] sm:$0xff] %v1288
        %1307 = vst [vmem:[#allocation1 + $0x2d] sm:$0xff] %v1289
        %1308 = vst [vmem:[#allocation1 + $0x36] sm:$0xff] %v1290
        %1309 = vst [vmem:[#allocation1 + $0x3f] sm:$0xff] %v1291
        %s1310 = scalar_lea.vmem [#allocation1], 1
        %v1311 = vld [vmem:[%s1310] ss:$9 sm:$0xff]
        %1312 = vst [vmem:[#allocation1] sm:$0xff] %v1292
        %v1313 = vld [vmem:[%s1310] ss:$9 sm:$0xff]
        %s1316 = scalar_lea.vmem [#allocation2], 76
        %1317 = vst [vmem:[%s1316] ss:$8 sm:$0xf] %v1311
        %1318 = vst [vmem:[%s1316] ss:$8 sm:$0xf0] %v1311
        %s1319 = scalar_lea.vmem [#allocation2], 140
        %1320 = vst.msk [vmem:[%s1319] ss:$8 sm:$0x1] %vm389, %v1313
        %1321 = vst.msk [vmem:[%s1319] ss:$8 sm:$0x0] %vm389, %v1313
        %v1322 = vld [vmem:[%s933] sm:$0x2]
        %v1323 = vld [vmem:[%s933] sm:$0x4]
        %v1324 = vld [vmem:[%s933] sm:$0x8]
        %v1325 = vld [vmem:[%s937] sm:$0x2]
        %v1326 = vld [vmem:[%s937] sm:$0x4]
        %v1327 = vld [vmem:[%s937] sm:$0x8]
        %v1328 = vld [vmem:[%s941] sm:$0x2]
        %v1329 = vld [vmem:[%s941] sm:$0x4]
        %v1330 = vld [vmem:[%s941] sm:$0x8]
        %v1332 = vunpack.c.l.b16 %v1323
        %v1333 = vpack.c.b16 %v1332, %v1332
        %v1334 = vrot.slane %v1333, 1
        %v1337 = vunpack.c.l.b16 %v1324
        %v1338 = vpack.c.b16 %v1337, %v1337
        %v1339 = vrot.slane %v1338, 2
        %v1342 = vunpack.c.l.b16 %v1326
        %v1343 = vpack.c.b16 %v1342, %v1342
        %v1344 = vrot.slane %v1343, 1
        %v1347 = vunpack.c.l.b16 %v1327
        %v1348 = vpack.c.b16 %v1347, %v1347
        %v1349 = vrot.slane %v1348, 2
        %v1352 = vunpack.c.l.b16 %v1329
        %v1353 = vpack.c.b16 %v1352, %v1352
        %v1354 = vrot.slane %v1353, 1
        %v1357 = vunpack.c.l.b16 %v1330
        %v1358 = vpack.c.b16 %v1357, %v1357
        %v1359 = vrot.slane %v1358, 2
        %v1361 = vunpack.c.l.bf16 %v1322
        %v1362 = vunpack.c.l.bf16 %v1334
        %v1363 = vunpack.c.l.bf16 %v1339
        %v1364 = vunpack.c.l.bf16 %v1325
        %v1365 = vunpack.c.l.bf16 %v1344
        %v1366 = vunpack.c.l.bf16 %v1349
        %v1367 = vunpack.c.l.bf16 %v1328
        %v1368 = vunpack.c.l.bf16 %v1354
        %v1369 = vunpack.c.l.bf16 %v1359
        %1379 = vst [vmem:[#allocation1] sm:$0xff] %v1361
        %1380 = vst [vmem:[#allocation1 + $0x9] sm:$0xff] %v1362
        %1381 = vst [vmem:[#allocation1 + $0x12] sm:$0xff] %v1363
        %1382 = vst [vmem:[#allocation1 + $0x1b] sm:$0xff] %v1364
        %1383 = vst [vmem:[#allocation1 + $0x24] sm:$0xff] %v1365
        %1384 = vst [vmem:[#allocation1 + $0x2d] sm:$0xff] %v1366
        %1385 = vst [vmem:[#allocation1 + $0x36] sm:$0xff] %v1367
        %1386 = vst [vmem:[#allocation1 + $0x3f] sm:$0xff] %v1368
        %s1387 = scalar_lea.vmem [#allocation1], 3
        %v1388 = vld [vmem:[%s1387] ss:$9 sm:$0xff]
        %1389 = vst [vmem:[#allocation1] sm:$0xff] %v1369
        %v1390 = vld [vmem:[%s1387] ss:$9 sm:$0xff]
        %s1393 = scalar_lea.vmem [#allocation2], 77
        %1394 = vst [vmem:[%s1393] ss:$8 sm:$0xf] %v1388
        %1395 = vst [vmem:[%s1393] ss:$8 sm:$0xf0] %v1388
        %s1396 = scalar_lea.vmem [#allocation2], 141
        %1397 = vst.msk [vmem:[%s1396] ss:$8 sm:$0x1] %vm389, %v1390
        %1398 = vst.msk [vmem:[%s1396] ss:$8 sm:$0x0] %vm389, %v1390
        %v1399 = vld [vmem:[%s937] sm:$0x1]
        %v1400 = vld [vmem:[%s937] sm:$0x2]
        %v1401 = vld [vmem:[%s937] sm:$0x4]
        %v1402 = vld [vmem:[%s941] sm:$0x1]
        %v1403 = vld [vmem:[%s941] sm:$0x2]
        %v1404 = vld [vmem:[%s941] sm:$0x4]
        %v1405 = vld [vmem:[%s1096] sm:$0x1]
        %v1406 = vld [vmem:[%s1096] sm:$0x2]
        %v1407 = vld [vmem:[%s1096] sm:$0x4]
        %v1409 = vunpack.c.l.b16 %v1400
        %v1410 = vpack.c.b16 %v1409, %v1409
        %v1411 = vrot.slane %v1410, 1
        %v1414 = vunpack.c.l.b16 %v1401
        %v1415 = vpack.c.b16 %v1414, %v1414
        %v1416 = vrot.slane %v1415, 2
        %v1419 = vunpack.c.l.b16 %v1403
        %v1420 = vpack.c.b16 %v1419, %v1419
        %v1421 = vrot.slane %v1420, 1
        %v1424 = vunpack.c.l.b16 %v1404
        %v1425 = vpack.c.b16 %v1424, %v1424
        %v1426 = vrot.slane %v1425, 2
        %v1429 = vunpack.c.l.b16 %v1406
        %v1430 = vpack.c.b16 %v1429, %v1429
        %v1431 = vrot.slane %v1430, 1
        %v1434 = vunpack.c.l.b16 %v1407
        %v1435 = vpack.c.b16 %v1434, %v1434
        %v1436 = vrot.slane %v1435, 2
        %v1438 = vunpack.c.l.bf16 %v1399
        %v1439 = vunpack.c.l.bf16 %v1411
        %v1440 = vunpack.c.l.bf16 %v1416
        %v1441 = vunpack.c.l.bf16 %v1402
        %v1442 = vunpack.c.l.bf16 %v1421
        %v1443 = vunpack.c.l.bf16 %v1426
        %v1444 = vunpack.c.l.bf16 %v1405
        %v1445 = vunpack.c.l.bf16 %v1431
        %v1446 = vunpack.c.l.bf16 %v1436
        %1456 = vst [vmem:[#allocation1] sm:$0xff] %v1438
        %1457 = vst [vmem:[#allocation1 + $0x9] sm:$0xff] %v1439
        %1458 = vst [vmem:[#allocation1 + $0x12] sm:$0xff] %v1440
        %1459 = vst [vmem:[#allocation1 + $0x1b] sm:$0xff] %v1441
        %1460 = vst [vmem:[#allocation1 + $0x24] sm:$0xff] %v1442
        %1461 = vst [vmem:[#allocation1 + $0x2d] sm:$0xff] %v1443
        %1462 = vst [vmem:[#allocation1 + $0x36] sm:$0xff] %v1444
        %1463 = vst [vmem:[#allocation1 + $0x3f] sm:$0xff] %v1445
        %s1464 = scalar_lea.vmem [#allocation1], 1
        %v1465 = vld [vmem:[%s1464] ss:$9 sm:$0xff]
        %1466 = vst [vmem:[#allocation1] sm:$0xff] %v1446
        %v1467 = vld [vmem:[%s1464] ss:$9 sm:$0xff]
        %s1470 = scalar_lea.vmem [#allocation2], 78
        %1471 = vst [vmem:[%s1470] ss:$8 sm:$0xf] %v1465
        %1472 = vst [vmem:[%s1470] ss:$8 sm:$0xf0] %v1465
        %s1473 = scalar_lea.vmem [#allocation2], 142
        %1474 = vst.msk [vmem:[%s1473] ss:$8 sm:$0x1] %vm389, %v1467
        %1475 = vst.msk [vmem:[%s1473] ss:$8 sm:$0x0] %vm389, %v1467
        %v1476 = vld [vmem:[%s937] sm:$0x2]
        %v1477 = vld [vmem:[%s937] sm:$0x4]
        %v1478 = vld [vmem:[%s937] sm:$0x8]
        %v1479 = vld [vmem:[%s941] sm:$0x2]
        %v1480 = vld [vmem:[%s941] sm:$0x4]
        %v1481 = vld [vmem:[%s941] sm:$0x8]
        %v1482 = vld [vmem:[%s1096] sm:$0x2]
        %v1483 = vld [vmem:[%s1096] sm:$0x4]
        %v1484 = vld [vmem:[%s1096] sm:$0x8]
        %v1486 = vunpack.c.l.b16 %v1477
        %v1487 = vpack.c.b16 %v1486, %v1486
        %v1488 = vrot.slane %v1487, 1
        %v1491 = vunpack.c.l.b16 %v1478
        %v1492 = vpack.c.b16 %v1491, %v1491
        %v1493 = vrot.slane %v1492, 2
        %v1496 = vunpack.c.l.b16 %v1480
        %v1497 = vpack.c.b16 %v1496, %v1496
        %v1498 = vrot.slane %v1497, 1
        %v1501 = vunpack.c.l.b16 %v1481
        %v1502 = vpack.c.b16 %v1501, %v1501
        %v1503 = vrot.slane %v1502, 2
        %v1506 = vunpack.c.l.b16 %v1483
        %v1507 = vpack.c.b16 %v1506, %v1506
        %v1508 = vrot.slane %v1507, 1
        %v1511 = vunpack.c.l.b16 %v1484
        %v1512 = vpack.c.b16 %v1511, %v1511
        %v1513 = vrot.slane %v1512, 2
        %v1515 = vunpack.c.l.bf16 %v1476
        %v1516 = vunpack.c.l.bf16 %v1488
        %v1517 = vunpack.c.l.bf16 %v1493
        %v1518 = vunpack.c.l.bf16 %v1479
        %v1519 = vunpack.c.l.bf16 %v1498
        %v1520 = vunpack.c.l.bf16 %v1503
        %v1521 = vunpack.c.l.bf16 %v1482
        %v1522 = vunpack.c.l.bf16 %v1508
        %v1523 = vunpack.c.l.bf16 %v1513
        %1533 = vst [vmem:[#allocation1] sm:$0xff] %v1515
        %1534 = vst [vmem:[#allocation1 + $0x9] sm:$0xff] %v1516
        %1535 = vst [vmem:[#allocation1 + $0x12] sm:$0xff] %v1517
        %1536 = vst [vmem:[#allocation1 + $0x1b] sm:$0xff] %v1518
        %1537 = vst [vmem:[#allocation1 + $0x24] sm:$0xff] %v1519
        %1538 = vst [vmem:[#allocation1 + $0x2d] sm:$0xff] %v1520
        %1539 = vst [vmem:[#allocation1 + $0x36] sm:$0xff] %v1521
        %1540 = vst [vmem:[#allocation1 + $0x3f] sm:$0xff] %v1522
        %s1541 = scalar_lea.vmem [#allocation1], 3
        %v1542 = vld [vmem:[%s1541] ss:$9 sm:$0xff]
        %1543 = vst [vmem:[#allocation1] sm:$0xff] %v1523
        %v1544 = vld [vmem:[%s1541] ss:$9 sm:$0xff]
        %s1547 = scalar_lea.vmem [#allocation2], 79
        %1548 = vst [vmem:[%s1547] ss:$8 sm:$0xf] %v1542
        %1549 = vst [vmem:[%s1547] ss:$8 sm:$0xf0] %v1542
        %s1550 = scalar_lea.vmem [#allocation2], 143
        %1551 = vst.msk [vmem:[%s1550] ss:$8 sm:$0x1] %vm389, %v1544
        %1552 = vst.msk [vmem:[%s1550] ss:$8 sm:$0x0] %vm389, %v1544
        %v1553 = vld [vmem:[#allocation2] sm:$0xff]
        %v1554 = vld [vmem:[#allocation2 + $0x8] sm:$0xff]
        %v1555 = vld [vmem:[#allocation2 + $0x10] sm:$0xff]
        %v1556 = vld [vmem:[#allocation2 + $0x18] sm:$0xff]
        %v1557 = vld [vmem:[#allocation2 + $0x20] sm:$0xff]
        %v1558 = vld [vmem:[#allocation2 + $0x28] sm:$0xff]
        %v1559 = vld [vmem:[#allocation2 + $0x30] sm:$0xff]
        %v1560 = vld [vmem:[#allocation2 + $0x38] sm:$0xff]
        %v1561 = vld [vmem:[#allocation2 + $0x40] sm:$0xff]
        %v1562 = vld [vmem:[#allocation2 + $0x48] sm:$0xff]
        %v1563 = vld [vmem:[#allocation2 + $0x50] sm:$0xff]
        %v1564 = vld [vmem:[#allocation2 + $0x58] sm:$0xff]
        %v1565 = vld [vmem:[#allocation2 + $0x60] sm:$0xff]
        %v1566 = vld [vmem:[#allocation2 + $0x68] sm:$0xff]
        %v1567 = vld [vmem:[#allocation2 + $0x70] sm:$0xff]
        %v1568 = vld [vmem:[#allocation2 + $0x78] sm:$0xff]
        %v1569 = vld [vmem:[#allocation2 + $0x80] sm:$0xff]
        %v1570 = vld [vmem:[#allocation2 + $0x88] sm:$0xff]
        %v1571 = vpack.c.bf16 %v1562, %v1553
        %v1572 = vpack.c.bf16 %v1563, %v1554
        %v1573 = vpack.c.bf16 %v1564, %v1555
        %v1574 = vpack.c.bf16 %v1565, %v1556
        %v1575 = vpack.c.bf16 %v1566, %v1557
        %v1576 = vpack.c.bf16 %v1567, %v1558
        %v1577 = vpack.c.bf16 %v1568, %v1559
        %v1578 = vpack.c.bf16 %v1569, %v1560
        %v1579 = vpack.c.bf16 %v1570, %v1561
        %v1580 = vld [vmem:[%s1] sm:$0xff]
        %v1581 = vld [vmem:[%s1 + $0x8] sm:$0xff]
        %v1582 = vld [vmem:[%s1 + $0x10] sm:$0xff]
        %v1583 = vld [vmem:[%s1 + $0x18] sm:$0xff]
        %v1584 = vld [vmem:[%s1 + $0x20] sm:$0xff]
        %v1585 = vld [vmem:[%s1 + $0x28] sm:$0xff]
        %v1586 = vld [vmem:[%s1 + $0x30] sm:$0xff]
        %v1587 = vld [vmem:[%s1 + $0x38] sm:$0xff]
        %v1588 = vld [vmem:[%s1 + $0x40] sm:$0xff]
        %v1589 = vld [vmem:[%s1 + $0x48] sm:$0xff]
        %v1590 = vld [vmem:[%s1 + $0x50] sm:$0xff]
        %v1591 = vld [vmem:[%s1 + $0x58] sm:$0xff]
        %v1592 = vld [vmem:[%s1 + $0x60] sm:$0xff]
        %v1593 = vld [vmem:[%s1 + $0x68] sm:$0xff]
        %v1594 = vld [vmem:[%s1 + $0x70] sm:$0xff]
        %v1595 = vld [vmem:[%s1 + $0x78] sm:$0xff]
        %v1596 = vld [vmem:[%s1 + $0x80] sm:$0xff]
        %v1597 = vld [vmem:[%s1 + $0x88] sm:$0xff]
        %v1598 = vld [vmem:[%s1 + $0x90] sm:$0xff]
        %v1599 = vld [vmem:[%s1 + $0x98] sm:$0xff]
        %v1600 = vld [vmem:[%s1 + $0xa0] sm:$0xff]
        %v1601 = vld [vmem:[%s1 + $0xa8] sm:$0xff]
        %v1602 = vld [vmem:[%s1 + $0xb0] sm:$0xff]
        %v1603 = vld [vmem:[%s1 + $0xb8] sm:$0xff]
        %v1604 = vld [vmem:[%s1 + $0xc0] sm:$0xff]
        %v1605 = vld [vmem:[%s1 + $0xc8] sm:$0xff]
        %v1606 = vld [vmem:[%s1 + $0xd0] sm:$0xff]
        %v1607 = vld [vmem:[%s1 + $0xd8] sm:$0xff]
        %v1608 = vld [vmem:[%s1 + $0xe0] sm:$0xff]
        %v1609 = vld [vmem:[%s1 + $0xe8] sm:$0xff]
        %v1610 = vld [vmem:[%s1 + $0xf0] sm:$0xff]
        %v1611 = vld [vmem:[%s1 + $0xf8] sm:$0xff]
        %v1612 = vld [vmem:[%s1 + $0x100] sm:$0xff]
        %v1613 = vld [vmem:[%s1 + $0x108] sm:$0xff]
        %v1614 = vld [vmem:[%s1 + $0x110] sm:$0xff]
        %v1615 = vld [vmem:[%s1 + $0x118] sm:$0xff]
        %v1616 = vld [vmem:[%s1 + $0x120] sm:$0xff]
        %v1617 = vld [vmem:[%s1 + $0x128] sm:$0xff]
        %v1618 = vld [vmem:[%s1 + $0x130] sm:$0xff]
        %v1619 = vld [vmem:[%s1 + $0x138] sm:$0xff]
        %v1620 = vld [vmem:[%s1 + $0x140] sm:$0xff]
        %v1621 = vld [vmem:[%s1 + $0x148] sm:$0xff]
        %v1622 = vld [vmem:[%s1 + $0x150] sm:$0xff]
        %v1623 = vld [vmem:[%s1 + $0x158] sm:$0xff]
        %v1624 = vld [vmem:[%s1 + $0x160] sm:$0xff]
        %v1625 = vld [vmem:[%s1 + $0x168] sm:$0xff]
        %v1626 = vld [vmem:[%s1 + $0x170] sm:$0xff]
        %v1627 = vld [vmem:[%s1 + $0x178] sm:$0xff]
        %v1628 = vld [vmem:[%s1 + $0x180] sm:$0xff]
        %v1629 = vld [vmem:[%s1 + $0x188] sm:$0xff]
        %v1630 = vld [vmem:[%s1 + $0x190] sm:$0xff]
        %v1631 = vld [vmem:[%s1 + $0x198] sm:$0xff]
        %v1632 = vld [vmem:[%s1 + $0x1a0] sm:$0xff]
        %v1633 = vld [vmem:[%s1 + $0x1a8] sm:$0xff]
        %v1634 = vld [vmem:[%s1 + $0x1b0] sm:$0xff]
        %v1635 = vld [vmem:[%s1 + $0x1b8] sm:$0xff]
        %v1636 = vld [vmem:[%s1 + $0x1c0] sm:$0xff]
        %v1637 = vld [vmem:[%s1 + $0x1c8] sm:$0xff]
        %v1638 = vld [vmem:[%s1 + $0x1d0] sm:$0xff]
        %v1639 = vld [vmem:[%s1 + $0x1d8] sm:$0xff]
        %v1640 = vld [vmem:[%s1 + $0x1e0] sm:$0xff]
        %v1641 = vld [vmem:[%s1 + $0x1e8] sm:$0xff]
        %v1642 = vld [vmem:[%s1 + $0x1f0] sm:$0xff]
        %v1643 = vld [vmem:[%s1 + $0x1f8] sm:$0xff]
        %v1644 = vld [vmem:[%s1 + $0x200] sm:$0xff]
        %v1645 = vld [vmem:[%s1 + $0x208] sm:$0xff]
        %v1646 = vld [vmem:[%s1 + $0x210] sm:$0xff]
        %v1647 = vld [vmem:[%s1 + $0x218] sm:$0xff]
        %v1648 = vld [vmem:[%s1 + $0x220] sm:$0xff]
        %v1649 = vld [vmem:[%s1 + $0x228] sm:$0xff]
        %v1650 = vld [vmem:[%s1 + $0x230] sm:$0xff]
        %v1651 = vld [vmem:[%s1 + $0x238] sm:$0xff]
        %v1652 = vld [vmem:[%s1 + $0x240] sm:$0xff]
        %v1653 = vld [vmem:[%s1 + $0x248] sm:$0xff]
        %v1654 = vld [vmem:[%s1 + $0x250] sm:$0xff]
        %v1655 = vld [vmem:[%s1 + $0x258] sm:$0xff]
        %v1656 = vld [vmem:[%s1 + $0x260] sm:$0xff]
        %v1657 = vld [vmem:[%s1 + $0x268] sm:$0xff]
        %v1658 = vld [vmem:[%s1 + $0x270] sm:$0xff]
        %v1659 = vld [vmem:[%s1 + $0x278] sm:$0xff]
        %v1660 = vld [vmem:[%s1 + $0x280] sm:$0xff]
        %v1661 = vld [vmem:[%s1 + $0x288] sm:$0xff]
        %v1662 = vld [vmem:[%s1 + $0x290] sm:$0xff]
        %v1663 = vld [vmem:[%s1 + $0x298] sm:$0xff]
        %v1664 = vld [vmem:[%s1 + $0x2a0] sm:$0xff]
        %v1665 = vld [vmem:[%s1 + $0x2a8] sm:$0xff]
        %v1666 = vld [vmem:[%s1 + $0x2b0] sm:$0xff]
        %v1667 = vld [vmem:[%s1 + $0x2b8] sm:$0xff]
        %v1668 = vld [vmem:[%s1 + $0x2c0] sm:$0xff]
        %v1669 = vld [vmem:[%s1 + $0x2c8] sm:$0xff]
        %v1670 = vld [vmem:[%s1 + $0x2d0] sm:$0xff]
        %v1671 = vld [vmem:[%s1 + $0x2d8] sm:$0xff]
        %v1672 = vld [vmem:[%s1 + $0x2e0] sm:$0xff]
        %v1673 = vld [vmem:[%s1 + $0x2e8] sm:$0xff]
        %v1674 = vld [vmem:[%s1 + $0x2f0] sm:$0xff]
        %v1675 = vld [vmem:[%s1 + $0x2f8] sm:$0xff]
        %v1676 = vld [vmem:[%s1 + $0x300] sm:$0xff]
        %v1677 = vld [vmem:[%s1 + $0x308] sm:$0xff]
        %v1678 = vld [vmem:[%s1 + $0x310] sm:$0xff]
        %v1679 = vld [vmem:[%s1 + $0x318] sm:$0xff]
        %v1680 = vld [vmem:[%s1 + $0x320] sm:$0xff]
        %v1681 = vld [vmem:[%s1 + $0x328] sm:$0xff]
        %v1682 = vld [vmem:[%s1 + $0x330] sm:$0xff]
        %v1683 = vld [vmem:[%s1 + $0x338] sm:$0xff]
        %v1684 = vld [vmem:[%s1 + $0x340] sm:$0xff]
        %v1685 = vld [vmem:[%s1 + $0x348] sm:$0xff]
        %v1686 = vld [vmem:[%s1 + $0x350] sm:$0xff]
        %v1687 = vld [vmem:[%s1 + $0x358] sm:$0xff]
        %v1688 = vld [vmem:[%s1 + $0x360] sm:$0xff]
        %v1689 = vld [vmem:[%s1 + $0x368] sm:$0xff]
        %v1690 = vld [vmem:[%s1 + $0x370] sm:$0xff]
        %v1691 = vld [vmem:[%s1 + $0x378] sm:$0xff]
        %v1692 = vld [vmem:[%s1 + $0x380] sm:$0xff]
        %v1693 = vld [vmem:[%s1 + $0x388] sm:$0xff]
        %v1694 = vld [vmem:[%s1 + $0x390] sm:$0xff]
        %v1695 = vld [vmem:[%s1 + $0x398] sm:$0xff]
        %v1696 = vld [vmem:[%s1 + $0x3a0] sm:$0xff]
        %v1697 = vld [vmem:[%s1 + $0x3a8] sm:$0xff]
        %v1698 = vld [vmem:[%s1 + $0x3b0] sm:$0xff]
        %v1699 = vld [vmem:[%s1 + $0x3b8] sm:$0xff]
        %v1700 = vld [vmem:[%s1 + $0x3c0] sm:$0xff]
        %v1701 = vld [vmem:[%s1 + $0x3c8] sm:$0xff]
        %v1702 = vld [vmem:[%s1 + $0x3d0] sm:$0xff]
        %v1703 = vld [vmem:[%s1 + $0x3d8] sm:$0xff]
        %v1704 = vld [vmem:[%s1 + $0x3e0] sm:$0xff]
        %v1705 = vld [vmem:[%s1 + $0x3e8] sm:$0xff]
        %v1706 = vld [vmem:[%s1 + $0x3f0] sm:$0xff]
        %v1707 = vld [vmem:[%s1 + $0x3f8] sm:$0xff]
        %v1708 = vld [vmem:[%s1 + $0x400] sm:$0xff]
        %v1709 = vld [vmem:[%s1 + $0x408] sm:$0xff]
        %v1710 = vld [vmem:[%s1 + $0x410] sm:$0xff]
        %v1711 = vld [vmem:[%s1 + $0x418] sm:$0xff]
        %v1712 = vld [vmem:[%s1 + $0x420] sm:$0xff]
        %v1713 = vld [vmem:[%s1 + $0x428] sm:$0xff]
        %v1714 = vld [vmem:[%s1 + $0x430] sm:$0xff]
        %v1715 = vld [vmem:[%s1 + $0x438] sm:$0xff]
        %v1716 = vld [vmem:[%s1 + $0x440] sm:$0xff]
        %v1717 = vld [vmem:[%s1 + $0x448] sm:$0xff]
        %v1718 = vld [vmem:[%s1 + $0x450] sm:$0xff]
        %v1719 = vld [vmem:[%s1 + $0x458] sm:$0xff]
        %v1720 = vld [vmem:[%s1 + $0x460] sm:$0xff]
        %v1721 = vld [vmem:[%s1 + $0x468] sm:$0xff]
        %v1722 = vld [vmem:[%s1 + $0x470] sm:$0xff]
        %v1723 = vld [vmem:[%s1 + $0x478] sm:$0xff]
        %v1868 = vunpack.c.l.b16 %v1580
        %v1869 = vunpack.c.h.b16 %v1580
        %v1870 = vunpack.c.l.b16 %v1581
        %v1871 = vunpack.c.h.b16 %v1581
        %v1872 = vunpack.c.l.b16 %v1582
        %v1873 = vunpack.c.h.b16 %v1582
        %v1874 = vunpack.c.l.b16 %v1583
        %v1875 = vunpack.c.h.b16 %v1583
        %v1876 = vunpack.c.l.b16 %v1584
        %v1877 = vunpack.c.h.b16 %v1584
        %v1878 = vunpack.c.l.b16 %v1585
        %v1879 = vunpack.c.h.b16 %v1585
        %v1880 = vunpack.c.l.b16 %v1586
        %v1881 = vunpack.c.h.b16 %v1586
        %v1882 = vunpack.c.l.b16 %v1587
        %v1883 = vunpack.c.h.b16 %v1587
        %v1884 = vunpack.c.l.b16 %v1588
        %v1885 = vunpack.c.h.b16 %v1588
        %v1886 = vunpack.c.l.b16 %v1589
        %v1887 = vunpack.c.h.b16 %v1589
        %v1888 = vunpack.c.l.b16 %v1590
        %v1889 = vunpack.c.h.b16 %v1590
        %v1890 = vunpack.c.l.b16 %v1591
        %v1891 = vunpack.c.h.b16 %v1591
        %v1892 = vunpack.c.l.b16 %v1592
        %v1893 = vunpack.c.h.b16 %v1592
        %v1894 = vunpack.c.l.b16 %v1593
        %v1895 = vunpack.c.h.b16 %v1593
        %v1896 = vunpack.c.l.b16 %v1594
        %v1897 = vunpack.c.h.b16 %v1594
        %v1898 = vunpack.c.l.b16 %v1595
        %v1899 = vunpack.c.h.b16 %v1595
        %v1900 = vunpack.c.l.b16 %v1596
        %v1901 = vunpack.c.h.b16 %v1596
        %v1902 = vunpack.c.l.b16 %v1597
        %v1903 = vunpack.c.h.b16 %v1597
        %v1904 = vunpack.c.l.b16 %v1598
        %v1905 = vunpack.c.h.b16 %v1598
        %v1906 = vunpack.c.l.b16 %v1599
        %v1907 = vunpack.c.h.b16 %v1599
        %v1908 = vunpack.c.l.b16 %v1600
        %v1909 = vunpack.c.h.b16 %v1600
        %v1910 = vunpack.c.l.b16 %v1601
        %v1911 = vunpack.c.h.b16 %v1601
        %v1912 = vunpack.c.l.b16 %v1602
        %v1913 = vunpack.c.h.b16 %v1602
        %v1914 = vunpack.c.l.b16 %v1603
        %v1915 = vunpack.c.h.b16 %v1603
        %v1916 = vunpack.c.l.b16 %v1604
        %v1917 = vunpack.c.h.b16 %v1604
        %v1918 = vunpack.c.l.b16 %v1605
        %v1919 = vunpack.c.h.b16 %v1605
        %v1920 = vunpack.c.l.b16 %v1606
        %v1921 = vunpack.c.h.b16 %v1606
        %v1922 = vunpack.c.l.b16 %v1607
        %v1923 = vunpack.c.h.b16 %v1607
        %v1924 = vunpack.c.l.b16 %v1608
        %v1925 = vunpack.c.h.b16 %v1608
        %v1926 = vunpack.c.l.b16 %v1609
        %v1927 = vunpack.c.h.b16 %v1609
        %v1928 = vunpack.c.l.b16 %v1610
        %v1929 = vunpack.c.h.b16 %v1610
        %v1930 = vunpack.c.l.b16 %v1611
        %v1931 = vunpack.c.h.b16 %v1611
        %v1932 = vunpack.c.l.b16 %v1612
        %v1933 = vunpack.c.h.b16 %v1612
        %v1934 = vunpack.c.l.b16 %v1613
        %v1935 = vunpack.c.h.b16 %v1613
        %v1936 = vunpack.c.l.b16 %v1614
        %v1937 = vunpack.c.h.b16 %v1614
        %v1938 = vunpack.c.l.b16 %v1615
        %v1939 = vunpack.c.h.b16 %v1615
        %v1940 = vunpack.c.l.b16 %v1616
        %v1941 = vunpack.c.h.b16 %v1616
        %v1942 = vunpack.c.l.b16 %v1617
        %v1943 = vunpack.c.h.b16 %v1617
        %v1944 = vunpack.c.l.b16 %v1618
        %v1945 = vunpack.c.h.b16 %v1618
        %v1946 = vunpack.c.l.b16 %v1619
        %v1947 = vunpack.c.h.b16 %v1619
        %v1948 = vunpack.c.l.b16 %v1620
        %v1949 = vunpack.c.h.b16 %v1620
        %v1950 = vunpack.c.l.b16 %v1621
        %v1951 = vunpack.c.h.b16 %v1621
        %v1952 = vunpack.c.l.b16 %v1622
        %v1953 = vunpack.c.h.b16 %v1622
        %v1954 = vunpack.c.l.b16 %v1623
        %v1955 = vunpack.c.h.b16 %v1623
        %v1956 = vunpack.c.l.b16 %v1624
        %v1957 = vunpack.c.h.b16 %v1624
        %v1958 = vunpack.c.l.b16 %v1625
        %v1959 = vunpack.c.h.b16 %v1625
        %v1960 = vunpack.c.l.b16 %v1626
        %v1961 = vunpack.c.h.b16 %v1626
        %v1962 = vunpack.c.l.b16 %v1627
        %v1963 = vunpack.c.h.b16 %v1627
        %v1964 = vunpack.c.l.b16 %v1628
        %v1965 = vunpack.c.h.b16 %v1628
        %v1966 = vunpack.c.l.b16 %v1629
        %v1967 = vunpack.c.h.b16 %v1629
        %v1968 = vunpack.c.l.b16 %v1630
        %v1969 = vunpack.c.h.b16 %v1630
        %v1970 = vunpack.c.l.b16 %v1631
        %v1971 = vunpack.c.h.b16 %v1631
        %v1972 = vunpack.c.l.b16 %v1632
        %v1973 = vunpack.c.h.b16 %v1632
        %v1974 = vunpack.c.l.b16 %v1633
        %v1975 = vunpack.c.h.b16 %v1633
        %v1976 = vunpack.c.l.b16 %v1634
        %v1977 = vunpack.c.h.b16 %v1634
        %v1978 = vunpack.c.l.b16 %v1635
        %v1979 = vunpack.c.h.b16 %v1635
        %v1980 = vunpack.c.l.b16 %v1636
        %v1981 = vunpack.c.h.b16 %v1636
        %v1982 = vunpack.c.l.b16 %v1637
        %v1983 = vunpack.c.h.b16 %v1637
        %v1984 = vunpack.c.l.b16 %v1638
        %v1985 = vunpack.c.h.b16 %v1638
        %v1986 = vunpack.c.l.b16 %v1639
        %v1987 = vunpack.c.h.b16 %v1639
        %v1988 = vunpack.c.l.b16 %v1640
        %v1989 = vunpack.c.h.b16 %v1640
        %v1990 = vunpack.c.l.b16 %v1641
        %v1991 = vunpack.c.h.b16 %v1641
        %v1992 = vunpack.c.l.b16 %v1642
        %v1993 = vunpack.c.h.b16 %v1642
        %v1994 = vunpack.c.l.b16 %v1643
        %v1995 = vunpack.c.h.b16 %v1643
        %v1996 = vunpack.c.l.b16 %v1644
        %v1997 = vunpack.c.h.b16 %v1644
        %v1998 = vunpack.c.l.b16 %v1645
        %v1999 = vunpack.c.h.b16 %v1645
        %v2000 = vunpack.c.l.b16 %v1646
        %v2001 = vunpack.c.h.b16 %v1646
        %v2002 = vunpack.c.l.b16 %v1647
        %v2003 = vunpack.c.h.b16 %v1647
        %v2004 = vunpack.c.l.b16 %v1648
        %v2005 = vunpack.c.h.b16 %v1648
        %v2006 = vunpack.c.l.b16 %v1649
        %v2007 = vunpack.c.h.b16 %v1649
        %v2008 = vunpack.c.l.b16 %v1650
        %v2009 = vunpack.c.h.b16 %v1650
        %v2010 = vunpack.c.l.b16 %v1651
        %v2011 = vunpack.c.h.b16 %v1651
        %v2012 = vunpack.c.l.b16 %v1652
        %v2013 = vunpack.c.h.b16 %v1652
        %v2014 = vunpack.c.l.b16 %v1653
        %v2015 = vunpack.c.h.b16 %v1653
        %v2016 = vunpack.c.l.b16 %v1654
        %v2017 = vunpack.c.h.b16 %v1654
        %v2018 = vunpack.c.l.b16 %v1655
        %v2019 = vunpack.c.h.b16 %v1655
        %v2020 = vunpack.c.l.b16 %v1656
        %v2021 = vunpack.c.h.b16 %v1656
        %v2022 = vunpack.c.l.b16 %v1657
        %v2023 = vunpack.c.h.b16 %v1657
        %v2024 = vunpack.c.l.b16 %v1658
        %v2025 = vunpack.c.h.b16 %v1658
        %v2026 = vunpack.c.l.b16 %v1659
        %v2027 = vunpack.c.h.b16 %v1659
        %v2028 = vunpack.c.l.b16 %v1660
        %v2029 = vunpack.c.h.b16 %v1660
        %v2030 = vunpack.c.l.b16 %v1661
        %v2031 = vunpack.c.h.b16 %v1661
        %v2032 = vunpack.c.l.b16 %v1662
        %v2033 = vunpack.c.h.b16 %v1662
        %v2034 = vunpack.c.l.b16 %v1663
        %v2035 = vunpack.c.h.b16 %v1663
        %v2036 = vunpack.c.l.b16 %v1664
        %v2037 = vunpack.c.h.b16 %v1664
        %v2038 = vunpack.c.l.b16 %v1665
        %v2039 = vunpack.c.h.b16 %v1665
        %v2040 = vunpack.c.l.b16 %v1666
        %v2041 = vunpack.c.h.b16 %v1666
        %v2042 = vunpack.c.l.b16 %v1667
        %v2043 = vunpack.c.h.b16 %v1667
        %v2044 = vunpack.c.l.b16 %v1668
        %v2045 = vunpack.c.h.b16 %v1668
        %v2046 = vunpack.c.l.b16 %v1669
        %v2047 = vunpack.c.h.b16 %v1669
        %v2048 = vunpack.c.l.b16 %v1670
        %v2049 = vunpack.c.h.b16 %v1670
        %v2050 = vunpack.c.l.b16 %v1671
        %v2051 = vunpack.c.h.b16 %v1671
        %v2052 = vunpack.c.l.b16 %v1672
        %v2053 = vunpack.c.h.b16 %v1672
        %v2054 = vunpack.c.l.b16 %v1673
        %v2055 = vunpack.c.h.b16 %v1673
        %v2056 = vunpack.c.l.b16 %v1674
        %v2057 = vunpack.c.h.b16 %v1674
        %v2058 = vunpack.c.l.b16 %v1675
        %v2059 = vunpack.c.h.b16 %v1675
        %v2060 = vunpack.c.l.b16 %v1676
        %v2061 = vunpack.c.h.b16 %v1676
        %v2062 = vunpack.c.l.b16 %v1677
        %v2063 = vunpack.c.h.b16 %v1677
        %v2064 = vunpack.c.l.b16 %v1678
        %v2065 = vunpack.c.h.b16 %v1678
        %v2066 = vunpack.c.l.b16 %v1679
        %v2067 = vunpack.c.h.b16 %v1679
        %v2068 = vunpack.c.l.b16 %v1680
        %v2069 = vunpack.c.h.b16 %v1680
        %v2070 = vunpack.c.l.b16 %v1681
        %v2071 = vunpack.c.h.b16 %v1681
        %v2072 = vunpack.c.l.b16 %v1682
        %v2073 = vunpack.c.h.b16 %v1682
        %v2074 = vunpack.c.l.b16 %v1683
        %v2075 = vunpack.c.h.b16 %v1683
        %v2076 = vunpack.c.l.b16 %v1684
        %v2077 = vunpack.c.h.b16 %v1684
        %v2078 = vunpack.c.l.b16 %v1685
        %v2079 = vunpack.c.h.b16 %v1685
        %v2080 = vunpack.c.l.b16 %v1686
        %v2081 = vunpack.c.h.b16 %v1686
        %v2082 = vunpack.c.l.b16 %v1687
        %v2083 = vunpack.c.h.b16 %v1687
        %v2084 = vunpack.c.l.b16 %v1688
        %v2085 = vunpack.c.h.b16 %v1688
        %v2086 = vunpack.c.l.b16 %v1689
        %v2087 = vunpack.c.h.b16 %v1689
        %v2088 = vunpack.c.l.b16 %v1690
        %v2089 = vunpack.c.h.b16 %v1690
        %v2090 = vunpack.c.l.b16 %v1691
        %v2091 = vunpack.c.h.b16 %v1691
        %v2092 = vunpack.c.l.b16 %v1692
        %v2093 = vunpack.c.h.b16 %v1692
        %v2094 = vunpack.c.l.b16 %v1693
        %v2095 = vunpack.c.h.b16 %v1693
        %v2096 = vunpack.c.l.b16 %v1694
        %v2097 = vunpack.c.h.b16 %v1694
        %v2098 = vunpack.c.l.b16 %v1695
        %v2099 = vunpack.c.h.b16 %v1695
        %v2100 = vunpack.c.l.b16 %v1696
        %v2101 = vunpack.c.h.b16 %v1696
        %v2102 = vunpack.c.l.b16 %v1697
        %v2103 = vunpack.c.h.b16 %v1697
        %v2104 = vunpack.c.l.b16 %v1698
        %v2105 = vunpack.c.h.b16 %v1698
        %v2106 = vunpack.c.l.b16 %v1699
        %v2107 = vunpack.c.h.b16 %v1699
        %v2108 = vunpack.c.l.b16 %v1700
        %v2109 = vunpack.c.h.b16 %v1700
        %v2110 = vunpack.c.l.b16 %v1701
        %v2111 = vunpack.c.h.b16 %v1701
        %v2112 = vunpack.c.l.b16 %v1702
        %v2113 = vunpack.c.h.b16 %v1702
        %v2114 = vunpack.c.l.b16 %v1703
        %v2115 = vunpack.c.h.b16 %v1703
        %v2116 = vunpack.c.l.b16 %v1704
        %v2117 = vunpack.c.h.b16 %v1704
        %v2118 = vunpack.c.l.b16 %v1705
        %v2119 = vunpack.c.h.b16 %v1705
        %v2120 = vunpack.c.l.b16 %v1706
        %v2121 = vunpack.c.h.b16 %v1706
        %v2122 = vunpack.c.l.b16 %v1707
        %v2123 = vunpack.c.h.b16 %v1707
        %v2124 = vunpack.c.l.b16 %v1708
        %v2125 = vunpack.c.h.b16 %v1708
        %v2126 = vunpack.c.l.b16 %v1709
        %v2127 = vunpack.c.h.b16 %v1709
        %v2128 = vunpack.c.l.b16 %v1710
        %v2129 = vunpack.c.h.b16 %v1710
        %v2130 = vunpack.c.l.b16 %v1711
        %v2131 = vunpack.c.h.b16 %v1711
        %v2132 = vunpack.c.l.b16 %v1712
        %v2133 = vunpack.c.h.b16 %v1712
        %v2134 = vunpack.c.l.b16 %v1713
        %v2135 = vunpack.c.h.b16 %v1713
        %v2136 = vunpack.c.l.b16 %v1714
        %v2137 = vunpack.c.h.b16 %v1714
        %v2138 = vunpack.c.l.b16 %v1715
        %v2139 = vunpack.c.h.b16 %v1715
        %v2140 = vunpack.c.l.b16 %v1716
        %v2141 = vunpack.c.h.b16 %v1716
        %v2142 = vunpack.c.l.b16 %v1717
        %v2143 = vunpack.c.h.b16 %v1717
        %v2144 = vunpack.c.l.b16 %v1718
        %v2145 = vunpack.c.h.b16 %v1718
        %v2146 = vunpack.c.l.b16 %v1719
        %v2147 = vunpack.c.h.b16 %v1719
        %v2148 = vunpack.c.l.b16 %v1720
        %v2149 = vunpack.c.h.b16 %v1720
        %v2150 = vunpack.c.l.b16 %v1721
        %v2151 = vunpack.c.h.b16 %v1721
        %v2152 = vunpack.c.l.b16 %v1722
        %v2153 = vunpack.c.h.b16 %v1722
        %v2154 = vunpack.c.l.b16 %v1723
        %v2155 = vunpack.c.h.b16 %v1723
        %v2156 = vpack.c.b16 %v1870, %v1868
        %v2157 = vpack.c.b16 %v1871, %v1869
        %v2158 = vpack.c.b16 %v1874, %v1872
        %v2159 = vpack.c.b16 %v1875, %v1873
        %v2160 = vpack.c.b16 %v1878, %v1876
        %v2161 = vpack.c.b16 %v1879, %v1877
        %v2162 = vpack.c.b16 %v1882, %v1880
        %v2163 = vpack.c.b16 %v1883, %v1881
        %v2164 = vpack.c.b16 %v1886, %v1884
        %v2165 = vpack.c.b16 %v1887, %v1885
        %v2166 = vpack.c.b16 %v1890, %v1888
        %v2167 = vpack.c.b16 %v1891, %v1889
        %v2168 = vpack.c.b16 %v1894, %v1892
        %v2169 = vpack.c.b16 %v1895, %v1893
        %v2170 = vpack.c.b16 %v1898, %v1896
        %v2171 = vpack.c.b16 %v1899, %v1897
        %v2172 = vpack.c.b16 %v1902, %v1900
        %v2173 = vpack.c.b16 %v1903, %v1901
        %v2174 = vpack.c.b16 %v1906, %v1904
        %v2175 = vpack.c.b16 %v1907, %v1905
        %v2176 = vpack.c.b16 %v1910, %v1908
        %v2177 = vpack.c.b16 %v1911, %v1909
        %v2178 = vpack.c.b16 %v1914, %v1912
        %v2179 = vpack.c.b16 %v1915, %v1913
        %v2180 = vpack.c.b16 %v1918, %v1916
        %v2181 = vpack.c.b16 %v1919, %v1917
        %v2182 = vpack.c.b16 %v1922, %v1920
        %v2183 = vpack.c.b16 %v1923, %v1921
        %v2184 = vpack.c.b16 %v1926, %v1924
        %v2185 = vpack.c.b16 %v1927, %v1925
        %v2186 = vpack.c.b16 %v1930, %v1928
        %v2187 = vpack.c.b16 %v1931, %v1929
        %v2188 = vpack.c.b16 %v1934, %v1932
        %v2189 = vpack.c.b16 %v1935, %v1933
        %v2190 = vpack.c.b16 %v1938, %v1936
        %v2191 = vpack.c.b16 %v1939, %v1937
        %v2192 = vpack.c.b16 %v1942, %v1940
        %v2193 = vpack.c.b16 %v1943, %v1941
        %v2194 = vpack.c.b16 %v1946, %v1944
        %v2195 = vpack.c.b16 %v1947, %v1945
        %v2196 = vpack.c.b16 %v1950, %v1948
        %v2197 = vpack.c.b16 %v1951, %v1949
        %v2198 = vpack.c.b16 %v1954, %v1952
        %v2199 = vpack.c.b16 %v1955, %v1953
        %v2200 = vpack.c.b16 %v1958, %v1956
        %v2201 = vpack.c.b16 %v1959, %v1957
        %v2202 = vpack.c.b16 %v1962, %v1960
        %v2203 = vpack.c.b16 %v1963, %v1961
        %v2204 = vpack.c.b16 %v1966, %v1964
        %v2205 = vpack.c.b16 %v1967, %v1965
        %v2206 = vpack.c.b16 %v1970, %v1968
        %v2207 = vpack.c.b16 %v1971, %v1969
        %v2208 = vpack.c.b16 %v1974, %v1972
        %v2209 = vpack.c.b16 %v1975, %v1973
        %v2210 = vpack.c.b16 %v1978, %v1976
        %v2211 = vpack.c.b16 %v1979, %v1977
        %v2212 = vpack.c.b16 %v1982, %v1980
        %v2213 = vpack.c.b16 %v1983, %v1981
        %v2214 = vpack.c.b16 %v1986, %v1984
        %v2215 = vpack.c.b16 %v1987, %v1985
        %v2216 = vpack.c.b16 %v1990, %v1988
        %v2217 = vpack.c.b16 %v1991, %v1989
        %v2218 = vpack.c.b16 %v1994, %v1992
        %v2219 = vpack.c.b16 %v1995, %v1993
        %v2220 = vpack.c.b16 %v1998, %v1996
        %v2221 = vpack.c.b16 %v1999, %v1997
        %v2222 = vpack.c.b16 %v2002, %v2000
        %v2223 = vpack.c.b16 %v2003, %v2001
        %v2224 = vpack.c.b16 %v2006, %v2004
        %v2225 = vpack.c.b16 %v2007, %v2005
        %v2226 = vpack.c.b16 %v2010, %v2008
        %v2227 = vpack.c.b16 %v2011, %v2009
        %v2228 = vpack.c.b16 %v2014, %v2012
        %v2229 = vpack.c.b16 %v2015, %v2013
        %v2230 = vpack.c.b16 %v2018, %v2016
        %v2231 = vpack.c.b16 %v2019, %v2017
        %v2232 = vpack.c.b16 %v2022, %v2020
        %v2233 = vpack.c.b16 %v2023, %v2021
        %v2234 = vpack.c.b16 %v2026, %v2024
        %v2235 = vpack.c.b16 %v2027, %v2025
        %v2236 = vpack.c.b16 %v2030, %v2028
        %v2237 = vpack.c.b16 %v2031, %v2029
        %v2238 = vpack.c.b16 %v2034, %v2032
        %v2239 = vpack.c.b16 %v2035, %v2033
        %v2240 = vpack.c.b16 %v2038, %v2036
        %v2241 = vpack.c.b16 %v2039, %v2037
        %v2242 = vpack.c.b16 %v2042, %v2040
        %v2243 = vpack.c.b16 %v2043, %v2041
        %v2244 = vpack.c.b16 %v2046, %v2044
        %v2245 = vpack.c.b16 %v2047, %v2045
        %v2246 = vpack.c.b16 %v2050, %v2048
        %v2247 = vpack.c.b16 %v2051, %v2049
        %v2248 = vpack.c.b16 %v2054, %v2052
        %v2249 = vpack.c.b16 %v2055, %v2053
        %v2250 = vpack.c.b16 %v2058, %v2056
        %v2251 = vpack.c.b16 %v2059, %v2057
        %v2252 = vpack.c.b16 %v2062, %v2060
        %v2253 = vpack.c.b16 %v2063, %v2061
        %v2254 = vpack.c.b16 %v2066, %v2064
        %v2255 = vpack.c.b16 %v2067, %v2065
        %v2256 = vpack.c.b16 %v2070, %v2068
        %v2257 = vpack.c.b16 %v2071, %v2069
        %v2258 = vpack.c.b16 %v2074, %v2072
        %v2259 = vpack.c.b16 %v2075, %v2073
        %v2260 = vpack.c.b16 %v2078, %v2076
        %v2261 = vpack.c.b16 %v2079, %v2077
        %v2262 = vpack.c.b16 %v2082, %v2080
        %v2263 = vpack.c.b16 %v2083, %v2081
        %v2264 = vpack.c.b16 %v2086, %v2084
        %v2265 = vpack.c.b16 %v2087, %v2085
        %v2266 = vpack.c.b16 %v2090, %v2088
        %v2267 = vpack.c.b16 %v2091, %v2089
        %v2268 = vpack.c.b16 %v2094, %v2092
        %v2269 = vpack.c.b16 %v2095, %v2093
        %v2270 = vpack.c.b16 %v2098, %v2096
        %v2271 = vpack.c.b16 %v2099, %v2097
        %v2272 = vpack.c.b16 %v2102, %v2100
        %v2273 = vpack.c.b16 %v2103, %v2101
        %v2274 = vpack.c.b16 %v2106, %v2104
        %v2275 = vpack.c.b16 %v2107, %v2105
        %v2276 = vpack.c.b16 %v2110, %v2108
        %v2277 = vpack.c.b16 %v2111, %v2109
        %v2278 = vpack.c.b16 %v2114, %v2112
        %v2279 = vpack.c.b16 %v2115, %v2113
        %v2280 = vpack.c.b16 %v2118, %v2116
        %v2281 = vpack.c.b16 %v2119, %v2117
        %v2282 = vpack.c.b16 %v2122, %v2120
        %v2283 = vpack.c.b16 %v2123, %v2121
        %v2284 = vpack.c.b16 %v2126, %v2124
        %v2285 = vpack.c.b16 %v2127, %v2125
        %v2286 = vpack.c.b16 %v2130, %v2128
        %v2287 = vpack.c.b16 %v2131, %v2129
        %v2288 = vpack.c.b16 %v2134, %v2132
        %v2289 = vpack.c.b16 %v2135, %v2133
        %v2290 = vpack.c.b16 %v2138, %v2136
        %v2291 = vpack.c.b16 %v2139, %v2137
        %v2292 = vpack.c.b16 %v2142, %v2140
        %v2293 = vpack.c.b16 %v2143, %v2141
        %v2294 = vpack.c.b16 %v2146, %v2144
        %v2295 = vpack.c.b16 %v2147, %v2145
        %v2296 = vpack.c.b16 %v2150, %v2148
        %v2297 = vpack.c.b16 %v2151, %v2149
        %v2298 = vpack.c.b16 %v2154, %v2152
        %v2299 = vpack.c.b16 %v2155, %v2153
        %2444 = vmatpush.bf16.msra.mxu0 %v2170
        %2445 = vmatpush.bf16.msra.mxu0 %v2168
        %2446 = vmatpush.bf16.msra.mxu0 %v2166
        %2447 = vmatpush.bf16.msra.mxu0 %v2164
        %2448 = vmatpush.bf16.msra.mxu0 %v2162
        %2449 = vmatpush.bf16.msra.mxu0 %v2160
        %2450 = vmatpush.bf16.msra.mxu0 %v2158
        %2451 = vmatpush.bf16.msra.mxu0 %v2156
        %2452 = vmatmul.bf16.gmra.mxu0 %v1571
        %v2453 = vpop.f32.mrf.mxu0
        %v2454 = vadd.f32 0.0, %v2453
        %v2455 = vpop.f32.mrf.mxu0
        %v2456 = vadd.f32 0.0, %v2455
        %2457 = vdwg.mxu0
        %2458 = vmatpush.bf16.msra.mxu0 %v2186
        %2459 = vmatpush.bf16.msra.mxu0 %v2184
        %2460 = vmatpush.bf16.msra.mxu0 %v2182
        %2461 = vmatpush.bf16.msra.mxu0 %v2180
        %2462 = vmatpush.bf16.msra.mxu0 %v2178
        %2463 = vmatpush.bf16.msra.mxu0 %v2176
        %2464 = vmatpush.bf16.msra.mxu0 %v2174
        %2465 = vmatpush.bf16.msra.mxu0 %v2172
        %2466 = vmatmul.bf16.gmra.mxu0 %v1572
        %v2467 = vpop.f32.mrf.mxu0
        %v2468 = vadd.f32 %v2454, %v2467
        %v2469 = vpop.f32.mrf.mxu0
        %v2470 = vadd.f32 %v2456, %v2469
        %2471 = vdwg.mxu0
        %2472 = vmatpush.bf16.msra.mxu0 %v2202
        %2473 = vmatpush.bf16.msra.mxu0 %v2200
        %2474 = vmatpush.bf16.msra.mxu0 %v2198
        %2475 = vmatpush.bf16.msra.mxu0 %v2196
        %2476 = vmatpush.bf16.msra.mxu0 %v2194
        %2477 = vmatpush.bf16.msra.mxu0 %v2192
        %2478 = vmatpush.bf16.msra.mxu0 %v2190
        %2479 = vmatpush.bf16.msra.mxu0 %v2188
        %2480 = vmatmul.bf16.gmra.mxu0 %v1573
        %v2481 = vpop.f32.mrf.mxu0
        %v2482 = vadd.f32 %v2468, %v2481
        %v2483 = vpop.f32.mrf.mxu0
        %v2484 = vadd.f32 %v2470, %v2483
        %2485 = vdwg.mxu0
        %2486 = vmatpush.bf16.msra.mxu0 %v2218
        %2487 = vmatpush.bf16.msra.mxu0 %v2216
        %2488 = vmatpush.bf16.msra.mxu0 %v2214
        %2489 = vmatpush.bf16.msra.mxu0 %v2212
        %2490 = vmatpush.bf16.msra.mxu0 %v2210
        %2491 = vmatpush.bf16.msra.mxu0 %v2208
        %2492 = vmatpush.bf16.msra.mxu0 %v2206
        %2493 = vmatpush.bf16.msra.mxu0 %v2204
        %2494 = vmatmul.bf16.gmra.mxu0 %v1574
        %v2495 = vpop.f32.mrf.mxu0
        %v2496 = vadd.f32 %v2482, %v2495
        %v2497 = vpop.f32.mrf.mxu0
        %v2498 = vadd.f32 %v2484, %v2497
        %2499 = vdwg.mxu0
        %2500 = vmatpush.bf16.msra.mxu0 %v2234
        %2501 = vmatpush.bf16.msra.mxu0 %v2232
        %2502 = vmatpush.bf16.msra.mxu0 %v2230
        %2503 = vmatpush.bf16.msra.mxu0 %v2228
        %2504 = vmatpush.bf16.msra.mxu0 %v2226
        %2505 = vmatpush.bf16.msra.mxu0 %v2224
        %2506 = vmatpush.bf16.msra.mxu0 %v2222
        %2507 = vmatpush.bf16.msra.mxu0 %v2220
        %2508 = vmatmul.bf16.gmra.mxu0 %v1575
        %v2509 = vpop.f32.mrf.mxu0
        %v2510 = vadd.f32 %v2496, %v2509
        %v2511 = vpop.f32.mrf.mxu0
        %v2512 = vadd.f32 %v2498, %v2511
        %2513 = vdwg.mxu0
        %2514 = vmatpush.bf16.msra.mxu0 %v2250
        %2515 = vmatpush.bf16.msra.mxu0 %v2248
        %2516 = vmatpush.bf16.msra.mxu0 %v2246
        %2517 = vmatpush.bf16.msra.mxu0 %v2244
        %2518 = vmatpush.bf16.msra.mxu0 %v2242
        %2519 = vmatpush.bf16.msra.mxu0 %v2240
        %2520 = vmatpush.bf16.msra.mxu0 %v2238
        %2521 = vmatpush.bf16.msra.mxu0 %v2236
        %2522 = vmatmul.bf16.gmra.mxu0 %v1576
        %v2523 = vpop.f32.mrf.mxu0
        %v2524 = vadd.f32 %v2510, %v2523
        %v2525 = vpop.f32.mrf.mxu0
        %v2526 = vadd.f32 %v2512, %v2525
        %2527 = vdwg.mxu0
        %2528 = vmatpush.bf16.msra.mxu0 %v2266
        %2529 = vmatpush.bf16.msra.mxu0 %v2264
        %2530 = vmatpush.bf16.msra.mxu0 %v2262
        %2531 = vmatpush.bf16.msra.mxu0 %v2260
        %2532 = vmatpush.bf16.msra.mxu0 %v2258
        %2533 = vmatpush.bf16.msra.mxu0 %v2256
        %2534 = vmatpush.bf16.msra.mxu0 %v2254
        %2535 = vmatpush.bf16.msra.mxu0 %v2252
        %2536 = vmatmul.bf16.gmra.mxu0 %v1577
        %v2537 = vpop.f32.mrf.mxu0
        %v2538 = vadd.f32 %v2524, %v2537
        %v2539 = vpop.f32.mrf.mxu0
        %v2540 = vadd.f32 %v2526, %v2539
        %2541 = vdwg.mxu0
        %2542 = vmatpush.bf16.msra.mxu0 %v2282
        %2543 = vmatpush.bf16.msra.mxu0 %v2280
        %2544 = vmatpush.bf16.msra.mxu0 %v2278
        %2545 = vmatpush.bf16.msra.mxu0 %v2276
        %2546 = vmatpush.bf16.msra.mxu0 %v2274
        %2547 = vmatpush.bf16.msra.mxu0 %v2272
        %2548 = vmatpush.bf16.msra.mxu0 %v2270
        %2549 = vmatpush.bf16.msra.mxu0 %v2268
        %2550 = vmatmul.bf16.gmra.mxu0 %v1578
        %v2551 = vpop.f32.mrf.mxu0
        %v2552 = vadd.f32 %v2538, %v2551
        %v2553 = vpop.f32.mrf.mxu0
        %v2554 = vadd.f32 %v2540, %v2553
        %2555 = vdwg.mxu0
        %2556 = vmatpush.bf16.msra.mxu0 %v2298
        %2557 = vmatpush.bf16.msra.mxu0 %v2296
        %2558 = vmatpush.bf16.msra.mxu0 %v2294
        %2559 = vmatpush.bf16.msra.mxu0 %v2292
        %2560 = vmatpush.bf16.msra.mxu0 %v2290
        %2561 = vmatpush.bf16.msra.mxu0 %v2288
        %2562 = vmatpush.bf16.msra.mxu0 %v2286
        %2563 = vmatpush.bf16.msra.mxu0 %v2284
        %2564 = vmatmul.bf16.gmra.mxu0 %v1579
        %v2565 = vpop.f32.mrf.mxu0
        %v2566 = vadd.f32 %v2552, %v2565
        %v2567 = vpop.f32.mrf.mxu0
        %v2568 = vadd.f32 %v2554, %v2567
        %2569 = vdwg.mxu0
        %2570 = vmatpush.bf16.msra.mxu0 %v2171
        %2571 = vmatpush.bf16.msra.mxu0 %v2169
        %2572 = vmatpush.bf16.msra.mxu0 %v2167
        %2573 = vmatpush.bf16.msra.mxu0 %v2165
        %2574 = vmatpush.bf16.msra.mxu0 %v2163
        %2575 = vmatpush.bf16.msra.mxu0 %v2161
        %2576 = vmatpush.bf16.msra.mxu0 %v2159
        %2577 = vmatpush.bf16.msra.mxu0 %v2157
        %2578 = vmatmul.bf16.gmra.mxu0 %v1571
        %v2579 = vpop.f32.mrf.mxu0
        %v2580 = vadd.f32 0.0, %v2579
        %v2581 = vpop.f32.mrf.mxu0
        %v2582 = vadd.f32 0.0, %v2581
        %2583 = vdwg.mxu0
        %2584 = vmatpush.bf16.msra.mxu0 %v2187
        %2585 = vmatpush.bf16.msra.mxu0 %v2185
        %2586 = vmatpush.bf16.msra.mxu0 %v2183
        %2587 = vmatpush.bf16.msra.mxu0 %v2181
        %2588 = vmatpush.bf16.msra.mxu0 %v2179
        %2589 = vmatpush.bf16.msra.mxu0 %v2177
        %2590 = vmatpush.bf16.msra.mxu0 %v2175
        %2591 = vmatpush.bf16.msra.mxu0 %v2173
        %2592 = vmatmul.bf16.gmra.mxu0 %v1572
        %v2593 = vpop.f32.mrf.mxu0
        %v2594 = vadd.f32 %v2580, %v2593
        %v2595 = vpop.f32.mrf.mxu0
        %v2596 = vadd.f32 %v2582, %v2595
        %2597 = vdwg.mxu0
        %2598 = vmatpush.bf16.msra.mxu0 %v2203
        %2599 = vmatpush.bf16.msra.mxu0 %v2201
        %2600 = vmatpush.bf16.msra.mxu0 %v2199
        %2601 = vmatpush.bf16.msra.mxu0 %v2197
        %2602 = vmatpush.bf16.msra.mxu0 %v2195
        %2603 = vmatpush.bf16.msra.mxu0 %v2193
        %2604 = vmatpush.bf16.msra.mxu0 %v2191
        %2605 = vmatpush.bf16.msra.mxu0 %v2189
        %2606 = vmatmul.bf16.gmra.mxu0 %v1573
        %v2607 = vpop.f32.mrf.mxu0
        %v2608 = vadd.f32 %v2594, %v2607
        %v2609 = vpop.f32.mrf.mxu0
        %v2610 = vadd.f32 %v2596, %v2609
        %2611 = vdwg.mxu0
        %2612 = vmatpush.bf16.msra.mxu0 %v2219
        %2613 = vmatpush.bf16.msra.mxu0 %v2217
        %2614 = vmatpush.bf16.msra.mxu0 %v2215
        %2615 = vmatpush.bf16.msra.mxu0 %v2213
        %2616 = vmatpush.bf16.msra.mxu0 %v2211
        %2617 = vmatpush.bf16.msra.mxu0 %v2209
        %2618 = vmatpush.bf16.msra.mxu0 %v2207
        %2619 = vmatpush.bf16.msra.mxu0 %v2205
        %2620 = vmatmul.bf16.gmra.mxu0 %v1574
        %v2621 = vpop.f32.mrf.mxu0
        %v2622 = vadd.f32 %v2608, %v2621
        %v2623 = vpop.f32.mrf.mxu0
        %v2624 = vadd.f32 %v2610, %v2623
        %2625 = vdwg.mxu0
        %2626 = vmatpush.bf16.msra.mxu0 %v2235
        %2627 = vmatpush.bf16.msra.mxu0 %v2233
        %2628 = vmatpush.bf16.msra.mxu0 %v2231
        %2629 = vmatpush.bf16.msra.mxu0 %v2229
        %2630 = vmatpush.bf16.msra.mxu0 %v2227
        %2631 = vmatpush.bf16.msra.mxu0 %v2225
        %2632 = vmatpush.bf16.msra.mxu0 %v2223
        %2633 = vmatpush.bf16.msra.mxu0 %v2221
        %2634 = vmatmul.bf16.gmra.mxu0 %v1575
        %v2635 = vpop.f32.mrf.mxu0
        %v2636 = vadd.f32 %v2622, %v2635
        %v2637 = vpop.f32.mrf.mxu0
        %v2638 = vadd.f32 %v2624, %v2637
        %2639 = vdwg.mxu0
        %2640 = vmatpush.bf16.msra.mxu0 %v2251
        %2641 = vmatpush.bf16.msra.mxu0 %v2249
        %2642 = vmatpush.bf16.msra.mxu0 %v2247
        %2643 = vmatpush.bf16.msra.mxu0 %v2245
        %2644 = vmatpush.bf16.msra.mxu0 %v2243
        %2645 = vmatpush.bf16.msra.mxu0 %v2241
        %2646 = vmatpush.bf16.msra.mxu0 %v2239
        %2647 = vmatpush.bf16.msra.mxu0 %v2237
        %2648 = vmatmul.bf16.gmra.mxu0 %v1576
        %v2649 = vpop.f32.mrf.mxu0
        %v2650 = vadd.f32 %v2636, %v2649
        %v2651 = vpop.f32.mrf.mxu0
        %v2652 = vadd.f32 %v2638, %v2651
        %2653 = vdwg.mxu0
        %2654 = vmatpush.bf16.msra.mxu0 %v2267
        %2655 = vmatpush.bf16.msra.mxu0 %v2265
        %2656 = vmatpush.bf16.msra.mxu0 %v2263
        %2657 = vmatpush.bf16.msra.mxu0 %v2261
        %2658 = vmatpush.bf16.msra.mxu0 %v2259
        %2659 = vmatpush.bf16.msra.mxu0 %v2257
        %2660 = vmatpush.bf16.msra.mxu0 %v2255
        %2661 = vmatpush.bf16.msra.mxu0 %v2253
        %2662 = vmatmul.bf16.gmra.mxu0 %v1577
        %v2663 = vpop.f32.mrf.mxu0
        %v2664 = vadd.f32 %v2650, %v2663
        %v2665 = vpop.f32.mrf.mxu0
        %v2666 = vadd.f32 %v2652, %v2665
        %2667 = vdwg.mxu0
        %2668 = vmatpush.bf16.msra.mxu0 %v2283
        %2669 = vmatpush.bf16.msra.mxu0 %v2281
        %2670 = vmatpush.bf16.msra.mxu0 %v2279
        %2671 = vmatpush.bf16.msra.mxu0 %v2277
        %2672 = vmatpush.bf16.msra.mxu0 %v2275
        %2673 = vmatpush.bf16.msra.mxu0 %v2273
        %2674 = vmatpush.bf16.msra.mxu0 %v2271
        %2675 = vmatpush.bf16.msra.mxu0 %v2269
        %2676 = vmatmul.bf16.gmra.mxu0 %v1578
        %v2677 = vpop.f32.mrf.mxu0
        %v2678 = vadd.f32 %v2664, %v2677
        %v2679 = vpop.f32.mrf.mxu0
        %v2680 = vadd.f32 %v2666, %v2679
        %2681 = vdwg.mxu0
        %2682 = vmatpush.bf16.msra.mxu0 %v2299
        %2683 = vmatpush.bf16.msra.mxu0 %v2297
        %2684 = vmatpush.bf16.msra.mxu0 %v2295
        %2685 = vmatpush.bf16.msra.mxu0 %v2293
        %2686 = vmatpush.bf16.msra.mxu0 %v2291
        %2687 = vmatpush.bf16.msra.mxu0 %v2289
        %2688 = vmatpush.bf16.msra.mxu0 %v2287
        %2689 = vmatpush.bf16.msra.mxu0 %v2285
        %2690 = vmatmul.bf16.gmra.mxu0 %v1579
        %v2691 = vpop.f32.mrf.mxu0
        %v2692 = vadd.f32 %v2678, %v2691
        %v2693 = vpop.f32.mrf.mxu0
        %v2694 = vadd.f32 %v2680, %v2693
        %2695 = vdwg.mxu0
        %v2696 = vmax.f32 %v2566, 0.0
        %v2697 = vmax.f32 %v2692, 0.0
        %v2698 = vmax.f32 %v2568, 0.0
        %v2699 = vmax.f32 %v2694, 0.0
        %v2700 = vld [vmem:[%s2] ss:$2 sm:$0x3]
        %v2702 = vperm.slane %v2700, 0
        %v2703 = vperm.slane %v2700, 1
        %v2706 = vmul.f32 %v2696, %v2702
        %v2707 = vmul.f32 %v2697, %v2703
        %v2708 = vmul.f32 %v2698, %v2702
        %v2709 = vmul.f32 %v2699, %v2703
        %s2710 = scalar_lea.vmem %s2, 1
        %v2711 = vld [vmem:[%s2710] ss:$2 sm:$0x3]
        %v2713 = vperm.slane %v2711, 0
        %v2714 = vperm.slane %v2711, 1
        %v2717 = vadd.f32 %v2706, %v2713
        %v2718 = vadd.f32 %v2707, %v2714
        %v2719 = vadd.f32 %v2708, %v2713
        %v2720 = vadd.f32 %v2709, %v2714
        %v2723 = vrot.slane %v2717, 4
        %v2724 = vrot.slane %v2718, 4
        %v2727 = vmax.f32 %v2717, %v2723
        %v2728 = vmax.f32 %v2718, %v2724
        %v2729 = vmax.f32 %v2727, %v2719
        %v2730 = vmax.f32 %v2728, %v2720
        %v2733 = vrot.slane %v2719, 4
        %v2734 = vrot.slane %v2720, 4
        %v2737 = vmax.f32 %v2729, %v2733
        %v2738 = vmax.f32 %v2730, %v2734
        %v2739 = vpack.c.bf16 %v2737, %v2737
        %v2740 = vpack.c.bf16 %v2738, %v2738
        %v2741 = vld [vmem:[%s3] sm:$0xf]
        %v2742 = vld [vmem:[%s3 + $0x4] sm:$0xf]
        %v2743 = vld [vmem:[%s3 + $0x8] sm:$0xf]
        %v2744 = vld [vmem:[%s3 + $0xc] sm:$0xf]
        %v2745 = vld [vmem:[%s3 + $0x10] sm:$0xf]
        %v2746 = vld [vmem:[%s3 + $0x14] sm:$0xf]
        %v2747 = vld [vmem:[%s3 + $0x18] sm:$0xf]
        %v2748 = vld [vmem:[%s3 + $0x1c] sm:$0xf]
        %v2749 = vld [vmem:[%s3 + $0x20] sm:$0xf]
        %v2750 = vld [vmem:[%s3 + $0x24] sm:$0xf]
        %v2751 = vld [vmem:[%s3 + $0x28] sm:$0xf]
        %v2752 = vld [vmem:[%s3 + $0x2c] sm:$0xf]
        %v2753 = vld [vmem:[%s3 + $0x30] sm:$0xf]
        %v2754 = vld [vmem:[%s3 + $0x34] sm:$0xf]
        %v2755 = vld [vmem:[%s3 + $0x38] sm:$0xf]
        %v2756 = vld [vmem:[%s3 + $0x3c] sm:$0xf]
        %v2757 = vld [vmem:[%s3 + $0x40] sm:$0xf]
        %v2758 = vld [vmem:[%s3 + $0x44] sm:$0xf]
        %v2759 = vld [vmem:[%s3 + $0x48] sm:$0xf]
        %v2760 = vld [vmem:[%s3 + $0x4c] sm:$0xf]
        %v2761 = vld [vmem:[%s3 + $0x50] sm:$0xf]
        %v2762 = vld [vmem:[%s3 + $0x54] sm:$0xf]
        %v2763 = vld [vmem:[%s3 + $0x58] sm:$0xf]
        %v2764 = vld [vmem:[%s3 + $0x5c] sm:$0xf]
        %v2765 = vld [vmem:[%s3 + $0x60] sm:$0xf]
        %v2766 = vld [vmem:[%s3 + $0x64] sm:$0xf]
        %v2767 = vld [vmem:[%s3 + $0x68] sm:$0xf]
        %v2768 = vld [vmem:[%s3 + $0x6c] sm:$0xf]
        %v2769 = vld [vmem:[%s3 + $0x70] sm:$0xf]
        %v2770 = vld [vmem:[%s3 + $0x74] sm:$0xf]
        %v2771 = vld [vmem:[%s3 + $0x78] sm:$0xf]
        %v2772 = vld [vmem:[%s3 + $0x7c] sm:$0xf]
        %v2805 = vunpack.c.l.b16 %v2741
        %v2806 = vunpack.c.l.b16 %v2742
        %v2807 = vunpack.c.l.b16 %v2743
        %v2808 = vunpack.c.l.b16 %v2744
        %v2809 = vunpack.c.l.b16 %v2745
        %v2810 = vunpack.c.l.b16 %v2746
        %v2811 = vunpack.c.l.b16 %v2747
        %v2812 = vunpack.c.l.b16 %v2748
        %v2813 = vunpack.c.l.b16 %v2749
        %v2814 = vunpack.c.l.b16 %v2750
        %v2815 = vunpack.c.l.b16 %v2751
        %v2816 = vunpack.c.l.b16 %v2752
        %v2817 = vunpack.c.l.b16 %v2753
        %v2818 = vunpack.c.l.b16 %v2754
        %v2819 = vunpack.c.l.b16 %v2755
        %v2820 = vunpack.c.l.b16 %v2756
        %v2821 = vunpack.c.l.b16 %v2757
        %v2822 = vunpack.c.l.b16 %v2758
        %v2823 = vunpack.c.l.b16 %v2759
        %v2824 = vunpack.c.l.b16 %v2760
        %v2825 = vunpack.c.l.b16 %v2761
        %v2826 = vunpack.c.l.b16 %v2762
        %v2827 = vunpack.c.l.b16 %v2763
        %v2828 = vunpack.c.l.b16 %v2764
        %v2829 = vunpack.c.l.b16 %v2765
        %v2830 = vunpack.c.l.b16 %v2766
        %v2831 = vunpack.c.l.b16 %v2767
        %v2832 = vunpack.c.l.b16 %v2768
        %v2833 = vunpack.c.l.b16 %v2769
        %v2834 = vunpack.c.l.b16 %v2770
        %v2835 = vunpack.c.l.b16 %v2771
        %v2836 = vunpack.c.l.b16 %v2772
        %v2837 = vpack.c.b16 %v2806, %v2805
        %v2838 = vpack.c.b16 %v2808, %v2807
        %v2839 = vpack.c.b16 %v2810, %v2809
        %v2840 = vpack.c.b16 %v2812, %v2811
        %v2841 = vpack.c.b16 %v2814, %v2813
        %v2842 = vpack.c.b16 %v2816, %v2815
        %v2843 = vpack.c.b16 %v2818, %v2817
        %v2844 = vpack.c.b16 %v2820, %v2819
        %v2845 = vpack.c.b16 %v2822, %v2821
        %v2846 = vpack.c.b16 %v2824, %v2823
        %v2847 = vpack.c.b16 %v2826, %v2825
        %v2848 = vpack.c.b16 %v2828, %v2827
        %v2849 = vpack.c.b16 %v2830, %v2829
        %v2850 = vpack.c.b16 %v2832, %v2831
        %v2851 = vpack.c.b16 %v2834, %v2833
        %v2852 = vpack.c.b16 %v2836, %v2835
        %2869 = vmatpush.bf16.msra.mxu0 %v2844
        %2870 = vmatpush.bf16.msra.mxu0 %v2843
        %2871 = vmatpush.bf16.msra.mxu0 %v2842
        %2872 = vmatpush.bf16.msra.mxu0 %v2841
        %2873 = vmatpush.bf16.msra.mxu0 %v2840
        %2874 = vmatpush.bf16.msra.mxu0 %v2839
        %2875 = vmatpush.bf16.msra.mxu0 %v2838
        %2876 = vmatpush.bf16.msra.mxu0 %v2837
        %2877 = vmatmul.bf16.gmra.mxu0 %v2739
        %v2878 = vpop.f32.mrf.mxu0
        %v2879 = vadd.f32 0.0, %v2878
        %v2880 = vpop.f32.mrf.mxu0
        %2881 = vdwg.mxu0
        %2882 = vmatpush.bf16.msra.mxu0 %v2852
        %2883 = vmatpush.bf16.msra.mxu0 %v2851
        %2884 = vmatpush.bf16.msra.mxu0 %v2850
        %2885 = vmatpush.bf16.msra.mxu0 %v2849
        %2886 = vmatpush.bf16.msra.mxu0 %v2848
        %2887 = vmatpush.bf16.msra.mxu0 %v2847
        %2888 = vmatpush.bf16.msra.mxu0 %v2846
        %2889 = vmatpush.bf16.msra.mxu0 %v2845
        %2890 = vmatmul.bf16.gmra.mxu0 %v2740
        %v2891 = vpop.f32.mrf.mxu0
        %v2892 = vadd.f32 %v2879, %v2891
        %v2893 = vpop.f32.mrf.mxu0
        %2894 = vdwg.mxu0
        %v2895 = vmax.f32 %v2892, 0.0
        %v2896 = vld [vmem:[%s4] sm:$0x1]
        %v2897 = vperm.slane %v2896, 0
        %v2898 = vmul.f32 %v2895, %v2897
        %v2899 = vld [vmem:[%s4 + $0x1] sm:$0x1]
        %v2900 = vperm.slane %v2899, 0
        %v2901 = vadd.f32 %v2898, %v2900
        %v2903 = vrot.slane %v2901, 1
        %v2905 = vadd.f32 %v2901, %v2903
        %v2906 = vrot.slane %v2901, 2
        %v2908 = vadd.f32 %v2905, %v2906
        %v2909 = vrot.slane %v2901, 3
        %v2911 = vadd.f32 %v2908, %v2909
        %v2912 = vmul.f32 %v2911, 0.25
        %v2913 = vpack.c.bf16 %v2912, %v2912
        %v2914 = vld [vmem:[%s5] sm:$0xf]
        %v2915 = vld [vmem:[%s5 + $0x4] sm:$0xf]
        %v2916 = vld [vmem:[%s5 + $0x8] sm:$0xf]
        %v2917 = vld [vmem:[%s5 + $0xc] sm:$0xf]
        %v2918 = vld [vmem:[%s5 + $0x10] sm:$0xf]
        %v2919 = vld [vmem:[%s5 + $0x14] sm:$0xf]
        %v2920 = vld [vmem:[%s5 + $0x18] sm:$0xf]
        %v2921 = vld [vmem:[%s5 + $0x1c] sm:$0xf]
        %v2922 = vld [vmem:[%s5 + $0x20] sm:$0xf]
        %v2923 = vld [vmem:[%s5 + $0x24] sm:$0xf]
        %v2924 = vld [vmem:[%s5 + $0x28] sm:$0xf]
        %v2925 = vld [vmem:[%s5 + $0x2c] sm:$0xf]
        %v2926 = vld [vmem:[%s5 + $0x30] sm:$0xf]
        %v2927 = vld [vmem:[%s5 + $0x34] sm:$0xf]
        %v2928 = vld [vmem:[%s5 + $0x38] sm:$0xf]
        %v2929 = vld [vmem:[%s5 + $0x3c] sm:$0xf]
        %v2946 = vunpack.c.l.b16 %v2914
        %v2947 = vunpack.c.l.b16 %v2915
        %v2948 = vunpack.c.l.b16 %v2916
        %v2949 = vunpack.c.l.b16 %v2917
        %v2950 = vunpack.c.l.b16 %v2918
        %v2951 = vunpack.c.l.b16 %v2919
        %v2952 = vunpack.c.l.b16 %v2920
        %v2953 = vunpack.c.l.b16 %v2921
        %v2954 = vunpack.c.l.b16 %v2922
        %v2955 = vunpack.c.l.b16 %v2923
        %v2956 = vunpack.c.l.b16 %v2924
        %v2957 = vunpack.c.l.b16 %v2925
        %v2958 = vunpack.c.l.b16 %v2926
        %v2959 = vunpack.c.l.b16 %v2927
        %v2960 = vunpack.c.l.b16 %v2928
        %v2961 = vunpack.c.l.b16 %v2929
        %v2962 = vpack.c.b16 %v2947, %v2946
        %v2963 = vpack.c.b16 %v2949, %v2948
        %v2964 = vpack.c.b16 %v2951, %v2950
        %v2965 = vpack.c.b16 %v2953, %v2952
        %v2966 = vpack.c.b16 %v2955, %v2954
        %v2967 = vpack.c.b16 %v2957, %v2956
        %v2968 = vpack.c.b16 %v2959, %v2958
        %v2969 = vpack.c.b16 %v2961, %v2960
        %2978 = vmatpush.bf16.msra.mxu0 %v2969
        %2979 = vmatpush.bf16.msra.mxu0 %v2968
        %2980 = vmatpush.bf16.msra.mxu0 %v2967
        %2981 = vmatpush.bf16.msra.mxu0 %v2966
        %2982 = vmatpush.bf16.msra.mxu0 %v2965
        %2983 = vmatpush.bf16.msra.mxu0 %v2964
        %2984 = vmatpush.bf16.msra.mxu0 %v2963
        %2985 = vmatpush.bf16.msra.mxu0 %v2962
        %2986 = vmatmul.bf16.gmra.mxu0 %v2913
        %v2987 = vpop.f32.mrf.mxu0
        %v2988 = vadd.f32 0.0, %v2987
        %v2989 = vpop.f32.mrf.mxu0
        %2990 = vdwg.mxu0
        %v2991 = vmax.f32 %v2988, 0.0
        %v2992 = vld [vmem:[%s6] sm:$0x1]
        %v2993 = vmul.f32 %v2991, %v2992
        %v2994 = vld [vmem:[%s6 + $0x1] sm:$0x1]
        %v2995 = vadd.f32 %v2993, %v2994
        %v2996 = vpack.c.bf16 %v2995, %v2995
        %v2997 = vld [vmem:[%s7] sm:$0xf]
        %v2998 = vld [vmem:[%s7 + $0x4] sm:$0xf]
        %v2999 = vld [vmem:[%s7 + $0x8] sm:$0xf]
        %v3000 = vld [vmem:[%s7 + $0xc] sm:$0xf]
        %v3001 = vld [vmem:[%s7 + $0x10] sm:$0xf]
        %v3002 = vld [vmem:[%s7 + $0x14] sm:$0xf]
        %v3003 = vld [vmem:[%s7 + $0x18] sm:$0xf]
        %v3004 = vld [vmem:[%s7 + $0x1c] sm:$0xf]
        %v3013 = vunpack.c.l.b16 %v2997
        %v3014 = vunpack.c.l.b16 %v2998
        %v3015 = vunpack.c.l.b16 %v2999
        %v3016 = vunpack.c.l.b16 %v3000
        %v3017 = vunpack.c.l.b16 %v3001
        %v3018 = vunpack.c.l.b16 %v3002
        %v3019 = vunpack.c.l.b16 %v3003
        %v3020 = vunpack.c.l.b16 %v3004
        %v3021 = vpack.c.b16 %v3014, %v3013
        %v3022 = vpack.c.b16 %v3016, %v3015
        %v3023 = vpack.c.b16 %v3018, %v3017
        %v3024 = vpack.c.b16 %v3020, %v3019
        %vm3029 = vcmask 523264
        %v3031 = vsel %vm3029, %v2996, 0
        %3033 = vmatpush.bf16.msra.mxu0 0
        %3034 = vmatpush.bf16.msra.mxu0 0
        %3035 = vmatpush.bf16.msra.mxu0 0
        %3036 = vmatpush.bf16.msra.mxu0 0
        %3037 = vmatpush.bf16.msra.mxu0 %v3024
        %3038 = vmatpush.bf16.msra.mxu0 %v3023
        %3039 = vmatpush.bf16.msra.mxu0 %v3022
        %3040 = vmatpush.bf16.msra.mxu0 %v3021
        %3041 = vmatmul.bf16.gmra.mxu0 %v3031
        %v3042 = vpop.f32.mrf.mxu0
        %v3043 = vadd.f32 0.0, %v3042
        %v3044 = vpop.f32.mrf.mxu0
        %3045 = vdwg.mxu0
        %vm3046 = vcmask 73728
        %3047 = vst.msk [vmem:[%s297] sm:$0x1] %vm3046, %v3043
        %s3048 = sand.u32 %s203, 1
        %s3049 = scalar_lea.sflag [#allocation4], %s3048
        %s3050 = sand.u32 %s203, 1
        %s3051 = scalar_lea.vmem [#allocation3], %s3050
        // Predicated region
        $region53: #{_lambda_.3} parent=51 // pred_check
          %p3052 = pneg %p213
        $region54: #{_lambda_.3} parent=51 // pred_check_branch
          %3054 = sbr.rel (%p3052) target = $region56
        $region55: #{_lambda_.3} parent=51 // pred_region
          %3056 = vsyncadd %s3049, 0
          %s3057 = scalar_lea.hbm %s8, %s22
          %s3059 = sshll.u32 %s3051, 4
          %s3060 = int_to_ptr.vmem [resolvable:$true] %s3059
          %s3061 = sshll.u32 %s3057, 4
          %s3062 = int_to_ptr.hbm [resolvable:$true] %s3061
          %3064 = dma.vmem_to_hbm [thread:$0]  %s3060, 16, %s3062, %s3049
        $region56: #{_lambda_.3} parent=51 // pred_fallthru
          _
      $region52: #{_lambda_.3} parent=5 // pred_fallthru
        _
      %p3065 = scmp.le.s32.totalorder 2, %s17
      // Predicated region
      $region57: #{_lambda_.3} parent=5 // pred_check
        %p3066 = pneg %p3065
      $region58: #{_lambda_.3} parent=5 // pred_check_branch
        %3068 = sbr.rel (%p3066) target = $region60
      $region59: #{_lambda_.3} parent=5 // pred_region
        %s3069 = ssub.s32 %s17, 2
        // Predicated region
        $region61: #{_lambda_.3} parent=59 // pred_check
          %p3070 = pneg %p219
        $region62: #{_lambda_.3} parent=59 // pred_check_branch
          %3072 = sbr.rel (%p3070) target = $region64
        $region63: #{_lambda_.3} parent=59 // pred_region
          %s3073 = sand.u32 %s204, 1
          %s3074 = scalar_lea.sflag [#allocation4], %s3073
          %s3075 = sand.u32 %s204, 1
          %s3076 = scalar_lea.vmem [#allocation3], %s3075
          %3078 = dma.done %s3074, 16
        $region64: #{_lambda_.3} parent=59 // pred_fallthru
          _
      $region60: #{_lambda_.3} parent=5 // pred_fallthru
        _
    $region6: #{_lambda_.3} parent=1 // loop_footer
      %s21 = sadd.s32 1, %s17
    $region7: #{_lambda_.3} parent=1 // loop_footer_branch
      %16 = sbr.rel target = $region3
    $region8: #{_lambda_.3} parent=1 // loop_exit
      _
    %3079 = vsyncpa [#allocation4], 1
    %s3080 = scalar_lea.sflag [#allocation4], 1
    %3081 = vsyncpa %s3080, 1

</llo_original>
